<compile_context>
chip_gen: v7x
topology: tpu7x:2x2x1
jax: 0.10.0
libtpu: 0.0.40
codegen_flags: <defaults>
</compile_context>

<pallas_src>
import jax
import jax.numpy as jnp
from jax.experimental import pallas as pl
from jax.experimental.pallas import tpu as pltpu


def _tpu_generation():
    """Best-effort TPU generation (4/5/6/7); 0 if unknown."""
    try:
        kind = jax.devices()[0].device_kind.lower()
    except Exception:
        return 0
    for g in (7, 6, 5, 4):
        if f"v{g}" in kind or f"{g}x" in kind:
            return g
    return 0


def _largest_aligned_divisor(c, target, align=128):
    """Largest divisor of c that is a multiple of `align` and <= target."""
    if c % align != 0:
        return c
    best = align
    d = align
    while d <= min(c, target):
        if c % d == 0:
            best = d
        d += align
    return best


def _se_kernel_nat(gate_ref, x_ref, w_ref, o_ref):
    """out[tn, HW] += (W_blk * sigmoid(g)) @ X_blk   (gate folded into W)."""
    k = pl.program_id(1)
    sg = jax.nn.sigmoid(gate_ref[...].astype(jnp.float32))      # (1, tk), lane-dense EUP
    w_s = w_ref[...] * sg.astype(w_ref.dtype)                   # (tn, tk) bf16, lane bcast
    xs = x_ref[...].astype(w_ref.dtype)                         # (tk, HW) bf16
    contrib = jnp.dot(w_s, xs, preferred_element_type=jnp.float32)   # (tn, HW) f32

    @pl.when(k == 0)
    def _():
        o_ref[...] = contrib

    @pl.when(k != 0)
    def _():
        o_ref[...] += contrib


def _se_kernel_tr(gate_ref, x_ref, wt_ref, o_ref):
    """out.T[HW, tn] += (X_blk.T * sigmoid(g)) @ WT_blk   (lane-dense MXU/out)."""
    k = pl.program_id(1)
    sg = jax.nn.sigmoid(gate_ref[...].astype(jnp.float32))      # (1, tk) f32
    xt = jnp.transpose(x_ref[...], (1, 0))                      # (HW, tk) f32, XLU
    xs = (xt * sg).astype(wt_ref.dtype)                         # (HW, tk) bf16
    contrib = jnp.dot(xs, wt_ref[...], preferred_element_type=jnp.float32)  # (HW, tn)

    @pl.when(k == 0)
    def _():
        o_ref[...] = contrib

    @pl.when(k != 0)
    def _():
        o_ref[...] += contrib


def se_scale_conv1x1(x_nchw, gate_nc11, w, *, formulation=None, tk=None, tn=None):
    """sigmoid(gate) * x followed by a 1x1 conv (no bias). NCHW in / NCHW out.

    x_nchw    : (1, C, H, W) activations (f32)
    gate_nc11 : (1, C, 1, 1) gate logits (f32)
    w         : (Cout, C) or (Cout, C, 1, 1) conv weight in native layout.
                Cast to bf16 here if needed (do it once at load time in a real
                model); accumulation is f32.
    """
    N, C, H, W = x_nchw.shape
    assert N == 1, "kernel assumes N == 1 (gates are per-channel only)"
    HW = H * W
    if w.ndim == 4:
        assert w.shape[2:] == (1, 1)
        w = w.reshape(w.shape[0], w.shape[1])
    Cout = w.shape[0]
    assert w.shape == (Cout, C)
    assert gate_nc11.shape == (N, C, 1, 1)

    # Guard the dominant HBM stream: bf16 weight, f32 accumulation.
    if w.dtype != jnp.bfloat16:
        w = w.astype(jnp.bfloat16)

    gen = _tpu_generation()
    is_v7x = gen >= 7
    if formulation is None:
        formulation = "tr" if is_v7x else "nat"
    if tk is None:
        tk = _largest_aligned_divisor(C, 1920 if is_v7x else 1280)
    if tn is None:
        half = Cout // 2
        if is_v7x and Cout % 2 == 0 and half % 16 == 0:
            tn = half           # split the weight stream across both TCs (v7x)
        else:
            tn = Cout           # single Cout block on single-TC chips

    assert C % tk == 0 and tk % 128 == 0, "K tile must divide C and be lane-aligned"
    assert Cout % tn == 0 and tn % 16 == 0, "Cout tile must respect bf16 packing"
    nj, nk = Cout // tn, C // tk

    x2d = x_nchw.reshape(C, HW)            # pure reshape -- no HBM transpose
    gate1c = gate_nc11.reshape(1, C)       # lane-major gate

    dims = ((pltpu.CORE_PARALLEL, pltpu.ARBITRARY) if (is_v7x and nj >= 2)
            else ("parallel", "arbitrary"))
    cost = pl.CostEstimate(
        flops=2 * Cout * C * HW,
        transcendentals=C,
        bytes_accessed=Cout * C * 2 + C * HW * 4 + C * 4 + Cout * HW * 4)
    cparams = pltpu.CompilerParams(dimension_semantics=dims,
                                   vmem_limit_bytes=32 << 20)

    if formulation == "nat":
        out2d = pl.pallas_call(
            _se_kernel_nat,
            out_shape=jax.ShapeDtypeStruct((Cout, HW), jnp.float32),
            grid_spec=pltpu.PrefetchScalarGridSpec(
                num_scalar_prefetch=0,
                grid=(nj, nk),
                in_specs=[
                    pl.BlockSpec((1, tk), lambda j, k: (0, k)),      # gate (lane-major)
                    pl.BlockSpec((tk, HW), lambda j, k: (k, 0)),     # x (conv-natural)
                    pl.BlockSpec((tn, tk), lambda j, k: (j, k)),     # W (native layout)
                ],
                out_specs=pl.BlockSpec((tn, HW), lambda j, k: (j, 0)),
            ),
            compiler_params=cparams,
            cost_estimate=cost,
        )(gate1c, x2d, w)
        return out2d.reshape(N, Cout, H, W)          # pure reshape back to NCHW

    assert formulation == "tr"
    # Static-weight prep (Cout, C) -> (nj, C, tn): one-time cost in a real
    # model -- hoist next to the bf16 cast at weight-load time.
    wt3 = w.reshape(nj, tn, C).transpose(0, 2, 1)

    out3 = pl.pallas_call(
        _se_kernel_tr,
        out_shape=jax.ShapeDtypeStruct((nj, HW, tn), jnp.float32),
        grid_spec=pltpu.PrefetchScalarGridSpec(
            num_scalar_prefetch=0,
            grid=(nj, nk),
            in_specs=[
                pl.BlockSpec((1, tk), lambda j, k: (0, k)),           # gate (lane-major)
                # TODO(synk): x is re-fetched per j (nj=2 on v7x); DMA it once
                # into VMEM_SHARED scratch if chasing the last ~10% there.
                pl.BlockSpec((tk, HW), lambda j, k: (k, 0)),          # x
                pl.BlockSpec((None, tk, tn), lambda j, k: (j, k, 0)), # W^T
            ],
            out_specs=pl.BlockSpec((None, HW, tn), lambda j, k: (j, 0, 0)),
        ),
        compiler_params=cparams,
        cost_estimate=cost,
    )(gate1c, x2d, wt3)

    # (nj, HW, tn) -> (Cout, HW) -> NCHW.  ~125 KB transpose, negligible.
    out2d = out3.transpose(0, 2, 1).reshape(Cout, HW)
    return out2d.reshape(N, Cout, H, W)


if __name__ == "__main__":
    key = jax.random.PRNGKey(0)
    k1, k2, k3 = jax.random.split(key, 3)

    # Shapes implied by the module: SE gate + 1x1 conv 3840 -> 640 at 7x7.
    N, C, Cout, Hs, Ws = 1, 3840, 640, 7, 7

    x1027 = jax.random.normal(k1, (N, C, Hs, Ws), dtype=jnp.float32)
    x1031 = jax.random.normal(k2, (N, C, 1, 1), dtype=jnp.float32)
    bound = 1.0 / (C ** 0.5)
    w = jax.random.uniform(k3, (Cout, C, 1, 1), dtype=jnp.float32,
                           minval=-bound, maxval=bound)
    # Weight cast done once outside the hot path (simulates stored bf16 weights).
    w_bf16 = w.reshape(Cout, C).astype(jnp.bfloat16)

    # f32 module semantics (loose tol covers the deliberate bf16 operand rounding).
    ref = jnp.einsum("nchw,oc->nohw", jax.nn.sigmoid(x1031) * x1027,
                     w.reshape(Cout, C), precision=jax.lax.Precision.HIGHEST)

    # 1) conv-natural formulation (v5e/v6e default) -- hard-checked on any chip.
    out_nat = se_scale_conv1x1(x1027, x1031, w_bf16, formulation="nat")
    out_nat = jax.block_until_ready(out_nat)
    assert out_nat.shape == (N, Cout, Hs, Ws)
    assert jnp.allclose(out_nat, ref, atol=5e-2, rtol=5e-2), "nat path mismatch"

    # 2) transposed formulation (v7x default, lane-dense MXU/output), exercised
    #    opportunistically with its v7x tiling.  Only a Mosaic lowering failure
    #    (e.g. the in-kernel XLU transpose on an old toolchain) is tolerated;
    #    if it runs, numerical errors still fail hard.
    out_tr = None
    try:
        out_tr = jax.block_until_ready(
            se_scale_conv1x1(x1027, x1031, w_bf16, formulation="tr",
                             tk=1920, tn=320))
    except Exception:
        out_tr = None   # not the formulation selected on this chip generation
    if out_tr is not None:
        assert out_tr.shape == (N, Cout, Hs, Ws)
        assert jnp.allclose(out_tr, ref, atol=5e-2, rtol=5e-2), "tr path mismatch"

    print("KERNEL_OK")
</pallas_src>

<mosaic_0001>
module attributes {stable_mosaic.version = 11 : i64} {
  func.func @_se_kernel_nat(%arg0: i32, %arg1: i32, %arg2: memref<1x1280xf32, #tpu.memory_space<vmem>>, %arg3: memref<1280x49xf32, #tpu.memory_space<vmem>>, %arg4: memref<640x1280xbf16, #tpu.memory_space<vmem>>, %arg5: memref<640x49xf32, #tpu.memory_space<vmem>>) attributes {dimension_semantics = [#tpu.dimension_semantics<parallel>, #tpu.dimension_semantics<arbitrary>], iteration_bounds = array<i64: 1, 3>, scalar_prefetch = 0 : i64, scratch_operands = 0 : i64, tpu.core_type = #tpu.core_type<tc>, window_params = [{transform_indices = @transform_0, window_bounds = array<i64: 1, 1280>}, {transform_indices = @transform_1, window_bounds = array<i64: 1280, 49>}, {transform_indices = @transform_2, window_bounds = array<i64: 640, 1280>}, {transform_indices = @transform_3, window_bounds = array<i64: 640, 49>}]} {
    %c0 = arith.constant 0 : index
    %c0_0 = arith.constant 0 : index
    %0 = vector.load %arg2[%c0, %c0_0] : memref<1x1280xf32, #tpu.memory_space<vmem>>, vector<1x1280xf32>
    %1 = arith.negf %0 : vector<1x1280xf32>
    %2 = math.exp %1 : vector<1x1280xf32>
    %cst = arith.constant 1.000000e+00 : f32
    %3 = vector.broadcast %cst : f32 to vector<1x1280xf32>
    %4 = arith.addf %3, %2 : vector<1x1280xf32>
    %5 = arith.divf %3, %4 : vector<1x1280xf32>
    %c0_1 = arith.constant 0 : index
    %c0_2 = arith.constant 0 : index
    %6 = vector.load %arg4[%c0_1, %c0_2] : memref<640x1280xbf16, #tpu.memory_space<vmem>>, vector<640x1280xbf16>
    %7 = arith.truncf %5 : vector<1x1280xf32> to vector<1x1280xbf16>
    %8 = vector.broadcast %7 : vector<1x1280xbf16> to vector<640x1280xbf16>
    %9 = arith.mulf %6, %8 : vector<640x1280xbf16>
    %c0_3 = arith.constant 0 : index
    %c0_4 = arith.constant 0 : index
    %10 = vector.load %arg3[%c0_3, %c0_4] : memref<1280x49xf32, #tpu.memory_space<vmem>>, vector<1280x49xf32>
    %11 = arith.truncf %10 : vector<1280x49xf32> to vector<1280x49xbf16>
    %cst_5 = arith.constant dense<0.000000e+00> : vector<640x49xf32>
    %12 = tpu.matmul %9, %11, %cst_5 {dimension_numbers = #tpu.dot_dimension_numbers<[1], [0], [0], [1], [0, 0, 1, 1], [], []>} : vector<640x1280xbf16>, vector<1280x49xbf16>, vector<640x49xf32> -> vector<640x49xf32>
    %c0_i32 = arith.constant 0 : i32
    %13 = arith.cmpi eq, %arg1, %c0_i32 : i32
    %14 = arith.extui %13 : i1 to i32
    %c0_i32_6 = arith.constant 0 : i32
    %15 = arith.cmpi ne, %14, %c0_i32_6 : i32
    scf.if %15 {
      %c0_9 = arith.constant 0 : index
      %c0_10 = arith.constant 0 : index
      %19 = vector.load %arg5[%c0_9, %c0_10] : memref<640x49xf32, #tpu.memory_space<vmem>>, vector<640x49xf32>
      tpu.vector_store %arg5[%c0_9, %c0_10], %12 {strides = array<i32>} : memref<640x49xf32, #tpu.memory_space<vmem>>, vector<640x49xf32>,
    } else {
    }
    %c0_i32_7 = arith.constant 0 : i32
    %16 = arith.cmpi ne, %arg1, %c0_i32_7 : i32
    %17 = arith.extui %16 : i1 to i32
    %c0_i32_8 = arith.constant 0 : i32
    %18 = arith.cmpi ne, %17, %c0_i32_8 : i32
    scf.if %18 {
      %c0_9 = arith.constant 0 : index
      %c0_10 = arith.constant 0 : index
      %19 = vector.load %arg5[%c0_9, %c0_10] : memref<640x49xf32, #tpu.memory_space<vmem>>, vector<640x49xf32>
      %20 = arith.addf %19, %12 : vector<640x49xf32>
      %c0_11 = arith.constant 0 : index
      %c0_12 = arith.constant 0 : index
      %21 = vector.load %arg5[%c0_11, %c0_12] : memref<640x49xf32, #tpu.memory_space<vmem>>, vector<640x49xf32>
      tpu.vector_store %arg5[%c0_11, %c0_12], %20 {strides = array<i32>} : memref<640x49xf32, #tpu.memory_space<vmem>>, vector<640x49xf32>,
    } else {
    }
    return
  }
  func.func @transform_0(%arg0: i32, %arg1: i32) -> (i32, i32) {
    %c0_i32 = arith.constant 0 : i32
    %c0_i32_0 = arith.constant 0 : i32
    return %c0_i32, %arg1 : i32, i32
  }
  func.func @transform_1(%arg0: i32, %arg1: i32) -> (i32, i32) {
    %c0_i32 = arith.constant 0 : i32
    %c0_i32_0 = arith.constant 0 : i32
    return %arg1, %c0_i32 : i32, i32
  }
  func.func @transform_2(%arg0: i32, %arg1: i32) -> (i32, i32) {
    %c0_i32 = arith.constant 0 : i32
    return %arg0, %arg1 : i32, i32
  }
  func.func @transform_3(%arg0: i32, %arg1: i32) -> (i32, i32) {
    %c0_i32 = arith.constant 0 : i32
    %c0_i32_0 = arith.constant 0 : i32
    return %arg0, %c0_i32 : i32, i32
  }
}

</mosaic_0001>

<llo_original>
// kernel: tpu_custom_call.1
$region0: #{tpu_custom_call.1}
  #allocation0 [shape = 'u32[]', space=smem, size = 0x4, offset = 0x4, fixed_abs, tag = 'smem constant byte address 0x4 - core index']
  #allocation1 [shape = 'u32[144,128]{1,0:T(1,128)}', space=vmem, size = 0x12000, scoped, tag = 'internal scratch']
  %s0 = inlined_call_operand.hbm [shape: f32[1,3840], index: 0, kind: input, shape index: {}]
  %s1 = inlined_call_operand.vmem [shape: f32[3840,49], index: 1, kind: input, shape index: {}]
  %s2 = inlined_call_operand.hbm [shape: bf16[640,3840], index: 2, kind: input, shape index: {}]
  %s3 = inlined_call_operand.vmem [shape: f32[640,49], index: 3, kind: output, shape index: {}]
  %s4 = sld [smem:[#allocation0]]
  $region61: #{tpu_custom_call.1} parent=0
    _
  %s6 = ssub.s32 1, %s4
  %s7 = scalar_select 0, %s6, %s4
  $region1: #{tpu_custom_call.1} parent=0
    #allocation2 [shape = 'u8[10240]{0}', space=vmem, size = 0x2800, scoped, tag = 'input window, operand 0']
    #allocation3 [shape = 's32[2]{0}', space=sflag, size = 0x8, scoped, tag = 'scoped memory for tpu_custom_call.1']
    #allocation4 [shape = 'u8[3276800]{0}', space=vmem, size = 0x320000, scoped, tag = 'input window, operand 2']
    #allocation5 [shape = 's32[2]{0}', space=sflag, size = 0x8, scoped, tag = 'scoped memory for tpu_custom_call.1']
    %8 = vsyncpa [#allocation3], 0
    %s9 = scalar_lea.sflag [#allocation3], 1
    %10 = vsyncpa %s9, 0
    %11 = vsyncpa [#allocation5], 0
    %s12 = scalar_lea.sflag [#allocation5], 1
    %13 = vsyncpa %s12, 0
    loop: start=0, step=1, limit=5
    $region2: #{tpu_custom_call.1} parent=1 // loop_pre_header
      _
    $region3: #{tpu_custom_call.1} parent=1 // loop_header
      %s15 = sphi 0, %s19
      %p16 = scmp.ge.s32.totalorder %s15, 5
      %s22 = sphi 0, %s34
      %s23 = sphi 0, %s30
      %s24 = sphi 0, %s22
      %s25 = sphi 0, %s23
      %s26 = sphi 0, %s24
      %s27 = sphi 0, %s25
      %s37 = sphi 0, %s39
      %s40 = sphi 0, %s37
      %s41 = sphi 0, %s40
      %s57 = sphi 0, %s41
      %s63 = sphi 0, %s65
      %s66 = sphi 0, %s63
      %s67 = sphi 0, %s66
      %s83 = sphi 0, %s67
      %s91 = sphi 0, %s93
      %s94 = sphi 0, %s91
      %s95 = sphi 0, %s94
      %s111 = sphi 0, %s95
      %s117 = sphi 0, %s119
      %s120 = sphi 0, %s117
      %s121 = sphi 0, %s120
      %s137 = sphi 0, %s121
    $region4: #{tpu_custom_call.1} parent=1 // loop_header_branch
      %18 = sbr.rel (%p16) target = $region8
    $region5: #{tpu_custom_call.1} parent=1 // loop_body
      %s20 = ssub.s32 %s15, 1
      %s21 = ssub.s32 %s15, 2
      %s28 = sadd.s32 1, %s23
      %p29 = scmp.ge.s32.totalorder %s28, 3
      %s30 = scalar_select %p29, 0, %s28
      %s31 = sadd.s32 1, %s22
      %s32 = scalar_select %p29, %s31, %s22
      %p33 = scmp.ge.s32.totalorder %s32, 1
      %s34 = scalar_select %p33, 0, %s32
      %s35 = ssub.s32 %s23, %s30
      %p36 = scmp.eq.s32.totalorder %s35, 0
      %s38 = sadd.s32 %s37, 1
      %s39 = scalar_select %p36, %s37, %s38
      %p42 = pneg %p36
      %p43 = scmp.eq.s32.totalorder %s15, 2
      %p44 = por %p42, %p43
      %p45 = scmp.ne.s32.totalorder %s37, %s40
      %p46 = scmp.eq.s32.totalorder %s15, 0
      %p47 = por %p45, %p46
      %p48 = scmp.ne.s32.totalorder %s37, %s40
      %p49 = scmp.eq.s32.totalorder %s20, 2
      %p50 = por %p48, %p49
      %p51 = scmp.ne.s32.totalorder %s40, %s41
      %p52 = scmp.eq.s32.totalorder %s20, 0
      %p53 = por %p51, %p52
      %p54 = scmp.ne.s32.totalorder %s40, %s41
      %p55 = scmp.eq.s32.totalorder %s21, 2
      %p56 = por %p54, %p55
      %p58 = scmp.ne.s32.totalorder %s41, %s57
      %p59 = scmp.eq.s32.totalorder %s21, 0
      %p60 = por %p58, %p59
      %s61 = ssub.s32 %s23, %s30
      %p62 = scmp.eq.s32.totalorder %s61, 0
      %s64 = sadd.s32 %s63, 1
      %s65 = scalar_select %p62, %s63, %s64
      %p68 = pneg %p62
      %p69 = scmp.eq.s32.totalorder %s15, 2
      %p70 = por %p68, %p69
      %p71 = scmp.ne.s32.totalorder %s63, %s66
      %p72 = scmp.eq.s32.totalorder %s15, 0
      %p73 = por %p71, %p72
      %p74 = scmp.ne.s32.totalorder %s63, %s66
      %p75 = scmp.eq.s32.totalorder %s20, 2
      %p76 = por %p74, %p75
      %p77 = scmp.ne.s32.totalorder %s66, %s67
      %p78 = scmp.eq.s32.totalorder %s20, 0
      %p79 = por %p77, %p78
      %p80 = scmp.ne.s32.totalorder %s66, %s67
      %p81 = scmp.eq.s32.totalorder %s21, 2
      %p82 = por %p80, %p81
      %p84 = scmp.ne.s32.totalorder %s67, %s83
      %p85 = scmp.eq.s32.totalorder %s21, 0
      %p86 = por %p84, %p85
      %s87 = ssub.s32 %s22, %s34
      %s88 = ssub.s32 %s23, %s30
      %s89 = sor.u32 %s87, %s88
      %p90 = scmp.eq.s32.totalorder %s89, 0
      %s92 = sadd.s32 %s91, 1
      %s93 = scalar_select %p90, %s91, %s92
      %p96 = pneg %p90
      %p97 = scmp.eq.s32.totalorder %s15, 2
      %p98 = por %p96, %p97
      %p99 = scmp.ne.s32.totalorder %s91, %s94
      %p100 = scmp.eq.s32.totalorder %s15, 0
      %p101 = por %p99, %p100
      %p102 = scmp.ne.s32.totalorder %s91, %s94
      %p103 = scmp.eq.s32.totalorder %s20, 2
      %p104 = por %p102, %p103
      %p105 = scmp.ne.s32.totalorder %s94, %s95
      %p106 = scmp.eq.s32.totalorder %s20, 0
      %p107 = por %p105, %p106
      %p108 = scmp.ne.s32.totalorder %s94, %s95
      %p109 = scmp.eq.s32.totalorder %s21, 2
      %p110 = por %p108, %p109
      %p112 = scmp.ne.s32.totalorder %s95, %s111
      %p113 = scmp.eq.s32.totalorder %s21, 0
      %p114 = por %p112, %p113
      %s115 = ssub.s32 %s22, %s34
      %p116 = scmp.eq.s32.totalorder %s115, 0
      %s118 = sadd.s32 %s117, 1
      %s119 = scalar_select %p116, %s117, %s118
      %p122 = pneg %p116
      %p123 = scmp.eq.s32.totalorder %s15, 2
      %p124 = por %p122, %p123
      %p125 = scmp.ne.s32.totalorder %s117, %s120
      %p126 = scmp.eq.s32.totalorder %s15, 0
      %p127 = por %p125, %p126
      %p128 = scmp.ne.s32.totalorder %s117, %s120
      %p129 = scmp.eq.s32.totalorder %s20, 2
      %p130 = por %p128, %p129
      %p131 = scmp.ne.s32.totalorder %s120, %s121
      %p132 = scmp.eq.s32.totalorder %s20, 0
      %p133 = por %p131, %p132
      %p134 = scmp.ne.s32.totalorder %s120, %s121
      %p135 = scmp.eq.s32.totalorder %s21, 2
      %p136 = por %p134, %p135
      %p138 = scmp.ne.s32.totalorder %s121, %s137
      %p139 = scmp.eq.s32.totalorder %s21, 0
      %p140 = por %p138, %p139
      %p141 = scmp.le.s32.totalorder 1, %s15
      %p142 = scmp.lt.s32.totalorder %s15, 4
      %p143 = pnand %p141, %p142
      %p144 = pneg %p143
      // Predicated region
      $region9: #{tpu_custom_call.1} parent=5 // pred_check
        _
      $region10: #{tpu_custom_call.1} parent=5 // pred_check_branch
        %146 = sbr.rel (%p143) target = $region12
      $region11: #{tpu_custom_call.1} parent=5 // pred_region
        %s147 = ssub.s32 %s15, 1
      $region12: #{tpu_custom_call.1} parent=5 // pred_fallthru
        _
      %p148 = scmp.lt.s32.totalorder %s15, 3
      // Predicated region
      $region13: #{tpu_custom_call.1} parent=5 // pred_check
        %p149 = pneg %p148
      $region14: #{tpu_custom_call.1} parent=5 // pred_check_branch
        %151 = sbr.rel (%p149) target = $region16
      $region15: #{tpu_custom_call.1} parent=5 // pred_region
        // Predicated region
        $region17: #{tpu_custom_call.1} parent=15 // pred_check
          %p152 = pneg %p47
        $region18: #{tpu_custom_call.1} parent=15 // pred_check_branch
          %154 = sbr.rel (%p152) target = $region20
        $region19: #{tpu_custom_call.1} parent=15 // pred_region
          %s155 = sand.u32 %s37, 1
          %s156 = scalar_lea.sflag [#allocation3], %s155
          %s157 = sand.u32 %s37, 1
          %s158 = smul.addr %s157, 10
          %s159 = scalar_lea.vmem [#allocation2], %s158
          %s160 = smul.u32 10, %s23
          %s162 = ssub.s32 160, 160
          %163 = vsyncadd %s156, %s162
          %s164 = smul.addr %s160, 16
          %s165 = scalar_lea.hbm %s0, %s164
          %s167 = sshll.u32 %s159, 4
          %s168 = int_to_ptr.vmem [resolvable:$true] %s167
          %170 = dma.hbm_to_vmem [thread:$0]  %s165, 160, %s168, %s156
        $region20: #{tpu_custom_call.1} parent=15 // pred_fallthru
          _
        // Predicated region
        $region21: #{tpu_custom_call.1} parent=15 // pred_check
          %p171 = pneg %p73
        $region22: #{tpu_custom_call.1} parent=15 // pred_check_branch
          %173 = sbr.rel (%p171) target = $region24
        $region23: #{tpu_custom_call.1} parent=15 // pred_region
          %s174 = smul.u32 160, %s23
          %p175 = scmp.lt.s32.totalorder %s174, 479
          %s176 = scalar_select %p175, %s174, 479
          %s177 = smul.addr %s176, 8
          %s178 = scalar_lea.vmem %s1, %s177
          %s179 = smul.u32 160, %s23
        $region24: #{tpu_custom_call.1} parent=15 // pred_fallthru
          _
        // Predicated region
        $region25: #{tpu_custom_call.1} parent=15 // pred_check
          %p180 = pneg %p101
        $region26: #{tpu_custom_call.1} parent=15 // pred_check_branch
          %182 = sbr.rel (%p180) target = $region28
        $region27: #{tpu_custom_call.1} parent=15 // pred_region
          %s183 = sand.u32 %s91, 1
          %s184 = scalar_lea.sflag [#allocation5], %s183
          %s185 = sand.u32 %s91, 1
          %s186 = smul.addr %s185, 3200
          %s187 = scalar_lea.vmem [#allocation4], %s186
          %s188 = smul.u32 80, %s22
          %s189 = smul.u32 10, %s23
          %s191 = ssub.s32 51200, 51200
          %192 = vsyncadd %s184, %s191
          %s193 = smul.addr %s188, 30
          %s194 = sadd.s32 %s189, %s193
          %s195 = smul.addr %s194, 64
          %s196 = scalar_lea.hbm %s2, %s195
          %s197 = sshll.u32 %s187, 4
          %s198 = int_to_ptr.vmem [resolvable:$true] %s197
          %203 = dma.hbm_to_vmem [thread:$0]  %s196, 51200, %s198, %s184, 1920, 640, 40
        $region28: #{tpu_custom_call.1} parent=15 // pred_fallthru
          _
      $region16: #{tpu_custom_call.1} parent=5 // pred_fallthru
        _
      %p204 = scmp.le.s32.totalorder 1, %s15
      %p205 = scmp.lt.s32.totalorder %s15, 4
      %p206 = pnand %p204, %p205
      %p207 = pneg %p206
      // Predicated region
      $region29: #{tpu_custom_call.1} parent=5 // pred_check
        _
      $region30: #{tpu_custom_call.1} parent=5 // pred_check_branch
        %209 = sbr.rel (%p206) target = $region32
      $region31: #{tpu_custom_call.1} parent=5 // pred_region
        %s210 = ssub.s32 %s15, 1
        %s211 = sand.u32 %s40, 1
        %s212 = scalar_lea.sflag [#allocation3], %s211
        %s213 = sand.u32 %s40, 1
        %s214 = smul.addr %s213, 10
        %s215 = scalar_lea.vmem [#allocation2], %s214
        // Predicated region
        $region33: #{tpu_custom_call.1} parent=31 // pred_check
          %p216 = pneg %p53
        $region34: #{tpu_custom_call.1} parent=31 // pred_check_branch
          %218 = sbr.rel (%p216) target = $region36
        $region35: #{tpu_custom_call.1} parent=31 // pred_region
          %219 = dma.done %s212, 160
        $region36: #{tpu_custom_call.1} parent=31 // pred_fallthru
          _
        %s220 = sand.u32 %s94, 1
        %s221 = scalar_lea.sflag [#allocation5], %s220
        %s222 = sand.u32 %s94, 1
        %s223 = smul.addr %s222, 3200
        %s224 = scalar_lea.vmem [#allocation4], %s223
        // Predicated region
        $region37: #{tpu_custom_call.1} parent=31 // pred_check
          %p225 = pneg %p107
        $region38: #{tpu_custom_call.1} parent=31 // pred_check_branch
          %227 = sbr.rel (%p225) target = $region40
        $region39: #{tpu_custom_call.1} parent=31 // pred_region
          %228 = dma.done %s221, 51200
        $region40: #{tpu_custom_call.1} parent=31 // pred_fallthru
          _
        %s229 = sand.u32 %s40, 1
        %s230 = scalar_lea.sflag [#allocation3], %s229
        %s231 = sand.u32 %s40, 1
        %s232 = smul.addr %s231, 10
        %s233 = scalar_lea.vmem [#allocation2], %s232
        %p234 = pneg %p53
        %p235 = pneg %p50
        %s236 = smul.u32 160, %s25
        %p237 = scmp.lt.s32.totalorder %s236, 479
        %s238 = scalar_select %p237, %s236, 479
        %s239 = smul.addr %s238, 8
        %s240 = scalar_lea.vmem %s1, %s239
        %p241 = pneg %p79
        %p242 = pneg %p76
        %s243 = sand.u32 %s94, 1
        %s244 = scalar_lea.sflag [#allocation5], %s243
        %s245 = sand.u32 %s94, 1
        %s246 = smul.addr %s245, 3200
        %s247 = scalar_lea.vmem [#allocation4], %s246
        %p248 = pneg %p107
        %p249 = pneg %p104
        %p250 = pneg %p133
        %p251 = pneg %p130
        %s252 = smul.u32 80, %s24
        %p253 = scmp.lt.s32.totalorder %s252, 79
        %s254 = scalar_select %p253, %s252, 79
        %s255 = smul.addr %s254, 8
        %s256 = scalar_lea.vmem %s3, %s255
        %s257 = smul.u32 10, %s25
        %s258 = smul.u32 160, %s25
        %p259 = scmp.lt.s32.totalorder %s258, 479
        %s260 = scalar_select %p259, %s258, 479
        %s261 = smul.addr %s260, 8
        %s262 = scalar_lea.vmem %s1, %s261
        %s263 = smul.u32 160, %s25
        %s264 = smul.u32 80, %s24
        %s265 = smul.u32 10, %s25
        %s266 = smul.u32 80, %s24
        %p267 = scmp.lt.s32.totalorder %s266, 79
        %s268 = scalar_select %p267, %s266, 79
        %s269 = smul.addr %s268, 8
        %s270 = scalar_lea.vmem %s3, %s269
        %s271 = smul.u32 80, %s24
        %v273 = vld [vmem:[%s215] sm:$0xff]
        %v274 = vld [vmem:[%s215 + $0x8] sm:$0x3]
        %v275 = vxor.u32 %v273, 2147483648
        %v276 = vxor.u32 %v274, 2147483648
        %v277 = vmul.f32 %v275, 1.442695
        %v278 = vpow.pop %v277
        %v279 = vmul.f32 %v276, 1.442695
        %v280 = vpow.pop %v279
        %v281 = vadd.f32 %v278, 1.0
        %v282 = vadd.f32 %v280, 1.0
        %v283 = vrcp.pop %v281
        %v284 = vmul.f32 1.0, %v283
        %v285 = vrcp.pop %v282
        %v286 = vmul.f32 1.0, %v285
        %v287 = vld [vmem:[%s224] sm:$0xff]
        %v288 = vld [vmem:[%s224 + $0x8] sm:$0xff]
        %v289 = vld [vmem:[%s224 + $0x10] sm:$0xff]
        %v290 = vld [vmem:[%s224 + $0x18] sm:$0xff]
        %v291 = vld [vmem:[%s224 + $0x20] sm:$0xff]
        %v292 = vld [vmem:[%s224 + $0x28] sm:$0xff]
        %v293 = vld [vmem:[%s224 + $0x30] sm:$0xff]
        %v294 = vld [vmem:[%s224 + $0x38] sm:$0xff]
        %v295 = vld [vmem:[%s224 + $0x40] sm:$0xff]
        %v296 = vld [vmem:[%s224 + $0x48] sm:$0xff]
        %v297 = vld [vmem:[%s224 + $0x50] sm:$0xff]
        %v298 = vld [vmem:[%s224 + $0x58] sm:$0xff]
        %v299 = vld [vmem:[%s224 + $0x60] sm:$0xff]
        %v300 = vld [vmem:[%s224 + $0x68] sm:$0xff]
        %v301 = vld [vmem:[%s224 + $0x70] sm:$0xff]
        %v302 = vld [vmem:[%s224 + $0x78] sm:$0xff]
        %v303 = vld [vmem:[%s224 + $0x80] sm:$0xff]
        %v304 = vld [vmem:[%s224 + $0x88] sm:$0xff]
        %v305 = vld [vmem:[%s224 + $0x90] sm:$0xff]
        %v306 = vld [vmem:[%s224 + $0x98] sm:$0xff]
        %v307 = vld [vmem:[%s224 + $0xa0] sm:$0xff]
        %v308 = vld [vmem:[%s224 + $0xa8] sm:$0xff]
        %v309 = vld [vmem:[%s224 + $0xb0] sm:$0xff]
        %v310 = vld [vmem:[%s224 + $0xb8] sm:$0xff]
        %v311 = vld [vmem:[%s224 + $0xc0] sm:$0xff]
        %v312 = vld [vmem:[%s224 + $0xc8] sm:$0xff]
        %v313 = vld [vmem:[%s224 + $0xd0] sm:$0xff]
        %v314 = vld [vmem:[%s224 + $0xd8] sm:$0xff]
        %v315 = vld [vmem:[%s224 + $0xe0] sm:$0xff]
        %v316 = vld [vmem:[%s224 + $0xe8] sm:$0xff]
        %v317 = vld [vmem:[%s224 + $0xf0] sm:$0xff]
        %v318 = vld [vmem:[%s224 + $0xf8] sm:$0xff]
        %v319 = vld [vmem:[%s224 + $0x100] sm:$0xff]
        %v320 = vld [vmem:[%s224 + $0x108] sm:$0xff]
        %v321 = vld [vmem:[%s224 + $0x110] sm:$0xff]
        %v322 = vld [vmem:[%s224 + $0x118] sm:$0xff]
        %v323 = vld [vmem:[%s224 + $0x120] sm:$0xff]
        %v324 = vld [vmem:[%s224 + $0x128] sm:$0xff]
        %v325 = vld [vmem:[%s224 + $0x130] sm:$0xff]
        %v326 = vld [vmem:[%s224 + $0x138] sm:$0xff]
        %v327 = vld [vmem:[%s224 + $0x140] sm:$0xff]
        %v328 = vld [vmem:[%s224 + $0x148] sm:$0xff]
        %v329 = vld [vmem:[%s224 + $0x150] sm:$0xff]
        %v330 = vld [vmem:[%s224 + $0x158] sm:$0xff]
        %v331 = vld [vmem:[%s224 + $0x160] sm:$0xff]
        %v332 = vld [vmem:[%s224 + $0x168] sm:$0xff]
        %v333 = vld [vmem:[%s224 + $0x170] sm:$0xff]
        %v334 = vld [vmem:[%s224 + $0x178] sm:$0xff]
        %v335 = vld [vmem:[%s224 + $0x180] sm:$0xff]
        %v336 = vld [vmem:[%s224 + $0x188] sm:$0xff]
        %v337 = vld [vmem:[%s224 + $0x190] sm:$0xff]
        %v338 = vld [vmem:[%s224 + $0x198] sm:$0xff]
        %v339 = vld [vmem:[%s224 + $0x1a0] sm:$0xff]
        %v340 = vld [vmem:[%s224 + $0x1a8] sm:$0xff]
        %v341 = vld [vmem:[%s224 + $0x1b0] sm:$0xff]
        %v342 = vld [vmem:[%s224 + $0x1b8] sm:$0xff]
        %v343 = vld [vmem:[%s224 + $0x1c0] sm:$0xff]
        %v344 = vld [vmem:[%s224 + $0x1c8] sm:$0xff]
        %v345 = vld [vmem:[%s224 + $0x1d0] sm:$0xff]
        %v346 = vld [vmem:[%s224 + $0x1d8] sm:$0xff]
        %v347 = vld [vmem:[%s224 + $0x1e0] sm:$0xff]
        %v348 = vld [vmem:[%s224 + $0x1e8] sm:$0xff]
        %v349 = vld [vmem:[%s224 + $0x1f0] sm:$0xff]
        %v350 = vld [vmem:[%s224 + $0x1f8] sm:$0xff]
        %v351 = vld [vmem:[%s224 + $0x200] sm:$0xff]
        %v352 = vld [vmem:[%s224 + $0x208] sm:$0xff]
        %v353 = vld [vmem:[%s224 + $0x210] sm:$0xff]
        %v354 = vld [vmem:[%s224 + $0x218] sm:$0xff]
        %v355 = vld [vmem:[%s224 + $0x220] sm:$0xff]
        %v356 = vld [vmem:[%s224 + $0x228] sm:$0xff]
        %v357 = vld [vmem:[%s224 + $0x230] sm:$0xff]
        %v358 = vld [vmem:[%s224 + $0x238] sm:$0xff]
        %v359 = vld [vmem:[%s224 + $0x240] sm:$0xff]
        %v360 = vld [vmem:[%s224 + $0x248] sm:$0xff]
        %v361 = vld [vmem:[%s224 + $0x250] sm:$0xff]
        %v362 = vld [vmem:[%s224 + $0x258] sm:$0xff]
        %v363 = vld [vmem:[%s224 + $0x260] sm:$0xff]
        %v364 = vld [vmem:[%s224 + $0x268] sm:$0xff]
        %v365 = vld [vmem:[%s224 + $0x270] sm:$0xff]
        %v366 = vld [vmem:[%s224 + $0x278] sm:$0xff]
        %v367 = vld [vmem:[%s224 + $0x280] sm:$0xff]
        %v368 = vld [vmem:[%s224 + $0x288] sm:$0xff]
        %v369 = vld [vmem:[%s224 + $0x290] sm:$0xff]
        %v370 = vld [vmem:[%s224 + $0x298] sm:$0xff]
        %v371 = vld [vmem:[%s224 + $0x2a0] sm:$0xff]
        %v372 = vld [vmem:[%s224 + $0x2a8] sm:$0xff]
        %v373 = vld [vmem:[%s224 + $0x2b0] sm:$0xff]
        %v374 = vld [vmem:[%s224 + $0x2b8] sm:$0xff]
        %v375 = vld [vmem:[%s224 + $0x2c0] sm:$0xff]
        %v376 = vld [vmem:[%s224 + $0x2c8] sm:$0xff]
        %v377 = vld [vmem:[%s224 + $0x2d0] sm:$0xff]
        %v378 = vld [vmem:[%s224 + $0x2d8] sm:$0xff]
        %v379 = vld [vmem:[%s224 + $0x2e0] sm:$0xff]
        %v380 = vld [vmem:[%s224 + $0x2e8] sm:$0xff]
        %v381 = vld [vmem:[%s224 + $0x2f0] sm:$0xff]
        %v382 = vld [vmem:[%s224 + $0x2f8] sm:$0xff]
        %v383 = vld [vmem:[%s224 + $0x300] sm:$0xff]
        %v384 = vld [vmem:[%s224 + $0x308] sm:$0xff]
        %v385 = vld [vmem:[%s224 + $0x310] sm:$0xff]
        %v386 = vld [vmem:[%s224 + $0x318] sm:$0xff]
        %v387 = vld [vmem:[%s224 + $0x320] sm:$0xff]
        %v388 = vld [vmem:[%s224 + $0x328] sm:$0xff]
        %v389 = vld [vmem:[%s224 + $0x330] sm:$0xff]
        %v390 = vld [vmem:[%s224 + $0x338] sm:$0xff]
        %v391 = vld [vmem:[%s224 + $0x340] sm:$0xff]
        %v392 = vld [vmem:[%s224 + $0x348] sm:$0xff]
        %v393 = vld [vmem:[%s224 + $0x350] sm:$0xff]
        %v394 = vld [vmem:[%s224 + $0x358] sm:$0xff]
        %v395 = vld [vmem:[%s224 + $0x360] sm:$0xff]
        %v396 = vld [vmem:[%s224 + $0x368] sm:$0xff]
        %v397 = vld [vmem:[%s224 + $0x370] sm:$0xff]
        %v398 = vld [vmem:[%s224 + $0x378] sm:$0xff]
        %v399 = vld [vmem:[%s224 + $0x380] sm:$0xff]
        %v400 = vld [vmem:[%s224 + $0x388] sm:$0xff]
        %v401 = vld [vmem:[%s224 + $0x390] sm:$0xff]
        %v402 = vld [vmem:[%s224 + $0x398] sm:$0xff]
        %v403 = vld [vmem:[%s224 + $0x3a0] sm:$0xff]
        %v404 = vld [vmem:[%s224 + $0x3a8] sm:$0xff]
        %v405 = vld [vmem:[%s224 + $0x3b0] sm:$0xff]
        %v406 = vld [vmem:[%s224 + $0x3b8] sm:$0xff]
        %v407 = vld [vmem:[%s224 + $0x3c0] sm:$0xff]
        %v408 = vld [vmem:[%s224 + $0x3c8] sm:$0xff]
        %v409 = vld [vmem:[%s224 + $0x3d0] sm:$0xff]
        %v410 = vld [vmem:[%s224 + $0x3d8] sm:$0xff]
        %v411 = vld [vmem:[%s224 + $0x3e0] sm:$0xff]
        %v412 = vld [vmem:[%s224 + $0x3e8] sm:$0xff]
        %v413 = vld [vmem:[%s224 + $0x3f0] sm:$0xff]
        %v414 = vld [vmem:[%s224 + $0x3f8] sm:$0xff]
        %v415 = vld [vmem:[%s224 + $0x400] sm:$0xff]
        %v416 = vld [vmem:[%s224 + $0x408] sm:$0xff]
        %v417 = vld [vmem:[%s224 + $0x410] sm:$0xff]
        %v418 = vld [vmem:[%s224 + $0x418] sm:$0xff]
        %v419 = vld [vmem:[%s224 + $0x420] sm:$0xff]
        %v420 = vld [vmem:[%s224 + $0x428] sm:$0xff]
        %v421 = vld [vmem:[%s224 + $0x430] sm:$0xff]
        %v422 = vld [vmem:[%s224 + $0x438] sm:$0xff]
        %v423 = vld [vmem:[%s224 + $0x440] sm:$0xff]
        %v424 = vld [vmem:[%s224 + $0x448] sm:$0xff]
        %v425 = vld [vmem:[%s224 + $0x450] sm:$0xff]
        %v426 = vld [vmem:[%s224 + $0x458] sm:$0xff]
        %v427 = vld [vmem:[%s224 + $0x460] sm:$0xff]
        %v428 = vld [vmem:[%s224 + $0x468] sm:$0xff]
        %v429 = vld [vmem:[%s224 + $0x470] sm:$0xff]
        %v430 = vld [vmem:[%s224 + $0x478] sm:$0xff]
        %v431 = vld [vmem:[%s224 + $0x480] sm:$0xff]
        %v432 = vld [vmem:[%s224 + $0x488] sm:$0xff]
        %v433 = vld [vmem:[%s224 + $0x490] sm:$0xff]
        %v434 = vld [vmem:[%s224 + $0x498] sm:$0xff]
        %v435 = vld [vmem:[%s224 + $0x4a0] sm:$0xff]
        %v436 = vld [vmem:[%s224 + $0x4a8] sm:$0xff]
        %v437 = vld [vmem:[%s224 + $0x4b0] sm:$0xff]
        %v438 = vld [vmem:[%s224 + $0x4b8] sm:$0xff]
        %v439 = vld [vmem:[%s224 + $0x4c0] sm:$0xff]
        %v440 = vld [vmem:[%s224 + $0x4c8] sm:$0xff]
        %v441 = vld [vmem:[%s224 + $0x4d0] sm:$0xff]
        %v442 = vld [vmem:[%s224 + $0x4d8] sm:$0xff]
        %v443 = vld [vmem:[%s224 + $0x4e0] sm:$0xff]
        %v444 = vld [vmem:[%s224 + $0x4e8] sm:$0xff]
        %v445 = vld [vmem:[%s224 + $0x4f0] sm:$0xff]
        %v446 = vld [vmem:[%s224 + $0x4f8] sm:$0xff]
        %v447 = vld [vmem:[%s224 + $0x500] sm:$0xff]
        %v448 = vld [vmem:[%s224 + $0x508] sm:$0xff]
        %v449 = vld [vmem:[%s224 + $0x510] sm:$0xff]
        %v450 = vld [vmem:[%s224 + $0x518] sm:$0xff]
        %v451 = vld [vmem:[%s224 + $0x520] sm:$0xff]
        %v452 = vld [vmem:[%s224 + $0x528] sm:$0xff]
        %v453 = vld [vmem:[%s224 + $0x530] sm:$0xff]
        %v454 = vld [vmem:[%s224 + $0x538] sm:$0xff]
        %v455 = vld [vmem:[%s224 + $0x540] sm:$0xff]
        %v456 = vld [vmem:[%s224 + $0x548] sm:$0xff]
        %v457 = vld [vmem:[%s224 + $0x550] sm:$0xff]
        %v458 = vld [vmem:[%s224 + $0x558] sm:$0xff]
        %v459 = vld [vmem:[%s224 + $0x560] sm:$0xff]
        %v460 = vld [vmem:[%s224 + $0x568] sm:$0xff]
        %v461 = vld [vmem:[%s224 + $0x570] sm:$0xff]
        %v462 = vld [vmem:[%s224 + $0x578] sm:$0xff]
        %v463 = vld [vmem:[%s224 + $0x580] sm:$0xff]
        %v464 = vld [vmem:[%s224 + $0x588] sm:$0xff]
        %v465 = vld [vmem:[%s224 + $0x590] sm:$0xff]
        %v466 = vld [vmem:[%s224 + $0x598] sm:$0xff]
        %v467 = vld [vmem:[%s224 + $0x5a0] sm:$0xff]
        %v468 = vld [vmem:[%s224 + $0x5a8] sm:$0xff]
        %v469 = vld [vmem:[%s224 + $0x5b0] sm:$0xff]
        %v470 = vld [vmem:[%s224 + $0x5b8] sm:$0xff]
        %v471 = vld [vmem:[%s224 + $0x5c0] sm:$0xff]
        %v472 = vld [vmem:[%s224 + $0x5c8] sm:$0xff]
        %v473 = vld [vmem:[%s224 + $0x5d0] sm:$0xff]
        %v474 = vld [vmem:[%s224 + $0x5d8] sm:$0xff]
        %v475 = vld [vmem:[%s224 + $0x5e0] sm:$0xff]
        %v476 = vld [vmem:[%s224 + $0x5e8] sm:$0xff]
        %v477 = vld [vmem:[%s224 + $0x5f0] sm:$0xff]
        %v478 = vld [vmem:[%s224 + $0x5f8] sm:$0xff]
        %v479 = vld [vmem:[%s224 + $0x600] sm:$0xff]
        %v480 = vld [vmem:[%s224 + $0x608] sm:$0xff]
        %v481 = vld [vmem:[%s224 + $0x610] sm:$0xff]
        %v482 = vld [vmem:[%s224 + $0x618] sm:$0xff]
        %v483 = vld [vmem:[%s224 + $0x620] sm:$0xff]
        %v484 = vld [vmem:[%s224 + $0x628] sm:$0xff]
        %v485 = vld [vmem:[%s224 + $0x630] sm:$0xff]
        %v486 = vld [vmem:[%s224 + $0x638] sm:$0xff]
        %v487 = vld [vmem:[%s224 + $0x640] sm:$0xff]
        %v488 = vld [vmem:[%s224 + $0x648] sm:$0xff]
        %v489 = vld [vmem:[%s224 + $0x650] sm:$0xff]
        %v490 = vld [vmem:[%s224 + $0x658] sm:$0xff]
        %v491 = vld [vmem:[%s224 + $0x660] sm:$0xff]
        %v492 = vld [vmem:[%s224 + $0x668] sm:$0xff]
        %v493 = vld [vmem:[%s224 + $0x670] sm:$0xff]
        %v494 = vld [vmem:[%s224 + $0x678] sm:$0xff]
        %v495 = vld [vmem:[%s224 + $0x680] sm:$0xff]
        %v496 = vld [vmem:[%s224 + $0x688] sm:$0xff]
        %v497 = vld [vmem:[%s224 + $0x690] sm:$0xff]
        %v498 = vld [vmem:[%s224 + $0x698] sm:$0xff]
        %v499 = vld [vmem:[%s224 + $0x6a0] sm:$0xff]
        %v500 = vld [vmem:[%s224 + $0x6a8] sm:$0xff]
        %v501 = vld [vmem:[%s224 + $0x6b0] sm:$0xff]
        %v502 = vld [vmem:[%s224 + $0x6b8] sm:$0xff]
        %v503 = vld [vmem:[%s224 + $0x6c0] sm:$0xff]
        %v504 = vld [vmem:[%s224 + $0x6c8] sm:$0xff]
        %v505 = vld [vmem:[%s224 + $0x6d0] sm:$0xff]
        %v506 = vld [vmem:[%s224 + $0x6d8] sm:$0xff]
        %v507 = vld [vmem:[%s224 + $0x6e0] sm:$0xff]
        %v508 = vld [vmem:[%s224 + $0x6e8] sm:$0xff]
        %v509 = vld [vmem:[%s224 + $0x6f0] sm:$0xff]
        %v510 = vld [vmem:[%s224 + $0x6f8] sm:$0xff]
        %v511 = vld [vmem:[%s224 + $0x700] sm:$0xff]
        %v512 = vld [vmem:[%s224 + $0x708] sm:$0xff]
        %v513 = vld [vmem:[%s224 + $0x710] sm:$0xff]
        %v514 = vld [vmem:[%s224 + $0x718] sm:$0xff]
        %v515 = vld [vmem:[%s224 + $0x720] sm:$0xff]
        %v516 = vld [vmem:[%s224 + $0x728] sm:$0xff]
        %v517 = vld [vmem:[%s224 + $0x730] sm:$0xff]
        %v518 = vld [vmem:[%s224 + $0x738] sm:$0xff]
        %v519 = vld [vmem:[%s224 + $0x740] sm:$0xff]
        %v520 = vld [vmem:[%s224 + $0x748] sm:$0xff]
        %v521 = vld [vmem:[%s224 + $0x750] sm:$0xff]
        %v522 = vld [vmem:[%s224 + $0x758] sm:$0xff]
        %v523 = vld [vmem:[%s224 + $0x760] sm:$0xff]
        %v524 = vld [vmem:[%s224 + $0x768] sm:$0xff]
        %v525 = vld [vmem:[%s224 + $0x770] sm:$0xff]
        %v526 = vld [vmem:[%s224 + $0x778] sm:$0xff]
        %v527 = vld [vmem:[%s224 + $0x780] sm:$0xff]
        %v528 = vld [vmem:[%s224 + $0x788] sm:$0xff]
        %v529 = vld [vmem:[%s224 + $0x790] sm:$0xff]
        %v530 = vld [vmem:[%s224 + $0x798] sm:$0xff]
        %v531 = vld [vmem:[%s224 + $0x7a0] sm:$0xff]
        %v532 = vld [vmem:[%s224 + $0x7a8] sm:$0xff]
        %v533 = vld [vmem:[%s224 + $0x7b0] sm:$0xff]
        %v534 = vld [vmem:[%s224 + $0x7b8] sm:$0xff]
        %v535 = vld [vmem:[%s224 + $0x7c0] sm:$0xff]
        %v536 = vld [vmem:[%s224 + $0x7c8] sm:$0xff]
        %v537 = vld [vmem:[%s224 + $0x7d0] sm:$0xff]
        %v538 = vld [vmem:[%s224 + $0x7d8] sm:$0xff]
        %v539 = vld [vmem:[%s224 + $0x7e0] sm:$0xff]
        %v540 = vld [vmem:[%s224 + $0x7e8] sm:$0xff]
        %v541 = vld [vmem:[%s224 + $0x7f0] sm:$0xff]
        %v542 = vld [vmem:[%s224 + $0x7f8] sm:$0xff]
        %v543 = vld [vmem:[%s224 + $0x800] sm:$0xff]
        %v544 = vld [vmem:[%s224 + $0x808] sm:$0xff]
        %v545 = vld [vmem:[%s224 + $0x810] sm:$0xff]
        %v546 = vld [vmem:[%s224 + $0x818] sm:$0xff]
        %v547 = vld [vmem:[%s224 + $0x820] sm:$0xff]
        %v548 = vld [vmem:[%s224 + $0x828] sm:$0xff]
        %v549 = vld [vmem:[%s224 + $0x830] sm:$0xff]
        %v550 = vld [vmem:[%s224 + $0x838] sm:$0xff]
        %v551 = vld [vmem:[%s224 + $0x840] sm:$0xff]
        %v552 = vld [vmem:[%s224 + $0x848] sm:$0xff]
        %v553 = vld [vmem:[%s224 + $0x850] sm:$0xff]
        %v554 = vld [vmem:[%s224 + $0x858] sm:$0xff]
        %v555 = vld [vmem:[%s224 + $0x860] sm:$0xff]
        %v556 = vld [vmem:[%s224 + $0x868] sm:$0xff]
        %v557 = vld [vmem:[%s224 + $0x870] sm:$0xff]
        %v558 = vld [vmem:[%s224 + $0x878] sm:$0xff]
        %v559 = vld [vmem:[%s224 + $0x880] sm:$0xff]
        %v560 = vld [vmem:[%s224 + $0x888] sm:$0xff]
        %v561 = vld [vmem:[%s224 + $0x890] sm:$0xff]
        %v562 = vld [vmem:[%s224 + $0x898] sm:$0xff]
        %v563 = vld [vmem:[%s224 + $0x8a0] sm:$0xff]
        %v564 = vld [vmem:[%s224 + $0x8a8] sm:$0xff]
        %v565 = vld [vmem:[%s224 + $0x8b0] sm:$0xff]
        %v566 = vld [vmem:[%s224 + $0x8b8] sm:$0xff]
        %v567 = vld [vmem:[%s224 + $0x8c0] sm:$0xff]
        %v568 = vld [vmem:[%s224 + $0x8c8] sm:$0xff]
        %v569 = vld [vmem:[%s224 + $0x8d0] sm:$0xff]
        %v570 = vld [vmem:[%s224 + $0x8d8] sm:$0xff]
        %v571 = vld [vmem:[%s224 + $0x8e0] sm:$0xff]
        %v572 = vld [vmem:[%s224 + $0x8e8] sm:$0xff]
        %v573 = vld [vmem:[%s224 + $0x8f0] sm:$0xff]
        %v574 = vld [vmem:[%s224 + $0x8f8] sm:$0xff]
        %v575 = vld [vmem:[%s224 + $0x900] sm:$0xff]
        %v576 = vld [vmem:[%s224 + $0x908] sm:$0xff]
        %v577 = vld [vmem:[%s224 + $0x910] sm:$0xff]
        %v578 = vld [vmem:[%s224 + $0x918] sm:$0xff]
        %v579 = vld [vmem:[%s224 + $0x920] sm:$0xff]
        %v580 = vld [vmem:[%s224 + $0x928] sm:$0xff]
        %v581 = vld [vmem:[%s224 + $0x930] sm:$0xff]
        %v582 = vld [vmem:[%s224 + $0x938] sm:$0xff]
        %v583 = vld [vmem:[%s224 + $0x940] sm:$0xff]
        %v584 = vld [vmem:[%s224 + $0x948] sm:$0xff]
        %v585 = vld [vmem:[%s224 + $0x950] sm:$0xff]
        %v586 = vld [vmem:[%s224 + $0x958] sm:$0xff]
        %v587 = vld [vmem:[%s224 + $0x960] sm:$0xff]
        %v588 = vld [vmem:[%s224 + $0x968] sm:$0xff]
        %v589 = vld [vmem:[%s224 + $0x970] sm:$0xff]
        %v590 = vld [vmem:[%s224 + $0x978] sm:$0xff]
        %v591 = vld [vmem:[%s224 + $0x980] sm:$0xff]
        %v592 = vld [vmem:[%s224 + $0x988] sm:$0xff]
        %v593 = vld [vmem:[%s224 + $0x990] sm:$0xff]
        %v594 = vld [vmem:[%s224 + $0x998] sm:$0xff]
        %v595 = vld [vmem:[%s224 + $0x9a0] sm:$0xff]
        %v596 = vld [vmem:[%s224 + $0x9a8] sm:$0xff]
        %v597 = vld [vmem:[%s224 + $0x9b0] sm:$0xff]
        %v598 = vld [vmem:[%s224 + $0x9b8] sm:$0xff]
        %v599 = vld [vmem:[%s224 + $0x9c0] sm:$0xff]
        %v600 = vld [vmem:[%s224 + $0x9c8] sm:$0xff]
        %v601 = vld [vmem:[%s224 + $0x9d0] sm:$0xff]
        %v602 = vld [vmem:[%s224 + $0x9d8] sm:$0xff]
        %v603 = vld [vmem:[%s224 + $0x9e0] sm:$0xff]
        %v604 = vld [vmem:[%s224 + $0x9e8] sm:$0xff]
        %v605 = vld [vmem:[%s224 + $0x9f0] sm:$0xff]
        %v606 = vld [vmem:[%s224 + $0x9f8] sm:$0xff]
        %v607 = vld [vmem:[%s224 + $0xa00] sm:$0xff]
        %v608 = vld [vmem:[%s224 + $0xa08] sm:$0xff]
        %v609 = vld [vmem:[%s224 + $0xa10] sm:$0xff]
        %v610 = vld [vmem:[%s224 + $0xa18] sm:$0xff]
        %v611 = vld [vmem:[%s224 + $0xa20] sm:$0xff]
        %v612 = vld [vmem:[%s224 + $0xa28] sm:$0xff]
        %v613 = vld [vmem:[%s224 + $0xa30] sm:$0xff]
        %v614 = vld [vmem:[%s224 + $0xa38] sm:$0xff]
        %v615 = vld [vmem:[%s224 + $0xa40] sm:$0xff]
        %v616 = vld [vmem:[%s224 + $0xa48] sm:$0xff]
        %v617 = vld [vmem:[%s224 + $0xa50] sm:$0xff]
        %v618 = vld [vmem:[%s224 + $0xa58] sm:$0xff]
        %v619 = vld [vmem:[%s224 + $0xa60] sm:$0xff]
        %v620 = vld [vmem:[%s224 + $0xa68] sm:$0xff]
        %v621 = vld [vmem:[%s224 + $0xa70] sm:$0xff]
        %v622 = vld [vmem:[%s224 + $0xa78] sm:$0xff]
        %v623 = vld [vmem:[%s224 + $0xa80] sm:$0xff]
        %v624 = vld [vmem:[%s224 + $0xa88] sm:$0xff]
        %v625 = vld [vmem:[%s224 + $0xa90] sm:$0xff]
        %v626 = vld [vmem:[%s224 + $0xa98] sm:$0xff]
        %v627 = vld [vmem:[%s224 + $0xaa0] sm:$0xff]
        %v628 = vld [vmem:[%s224 + $0xaa8] sm:$0xff]
        %v629 = vld [vmem:[%s224 + $0xab0] sm:$0xff]
        %v630 = vld [vmem:[%s224 + $0xab8] sm:$0xff]
        %v631 = vld [vmem:[%s224 + $0xac0] sm:$0xff]
        %v632 = vld [vmem:[%s224 + $0xac8] sm:$0xff]
        %v633 = vld [vmem:[%s224 + $0xad0] sm:$0xff]
        %v634 = vld [vmem:[%s224 + $0xad8] sm:$0xff]
        %v635 = vld [vmem:[%s224 + $0xae0] sm:$0xff]
        %v636 = vld [vmem:[%s224 + $0xae8] sm:$0xff]
        %v637 = vld [vmem:[%s224 + $0xaf0] sm:$0xff]
        %v638 = vld [vmem:[%s224 + $0xaf8] sm:$0xff]
        %v639 = vld [vmem:[%s224 + $0xb00] sm:$0xff]
        %v640 = vld [vmem:[%s224 + $0xb08] sm:$0xff]
        %v641 = vld [vmem:[%s224 + $0xb10] sm:$0xff]
        %v642 = vld [vmem:[%s224 + $0xb18] sm:$0xff]
        %v643 = vld [vmem:[%s224 + $0xb20] sm:$0xff]
        %v644 = vld [vmem:[%s224 + $0xb28] sm:$0xff]
        %v645 = vld [vmem:[%s224 + $0xb30] sm:$0xff]
        %v646 = vld [vmem:[%s224 + $0xb38] sm:$0xff]
        %v647 = vld [vmem:[%s224 + $0xb40] sm:$0xff]
        %v648 = vld [vmem:[%s224 + $0xb48] sm:$0xff]
        %v649 = vld [vmem:[%s224 + $0xb50] sm:$0xff]
        %v650 = vld [vmem:[%s224 + $0xb58] sm:$0xff]
        %v651 = vld [vmem:[%s224 + $0xb60] sm:$0xff]
        %v652 = vld [vmem:[%s224 + $0xb68] sm:$0xff]
        %v653 = vld [vmem:[%s224 + $0xb70] sm:$0xff]
        %v654 = vld [vmem:[%s224 + $0xb78] sm:$0xff]
        %v655 = vld [vmem:[%s224 + $0xb80] sm:$0xff]
        %v656 = vld [vmem:[%s224 + $0xb88] sm:$0xff]
        %v657 = vld [vmem:[%s224 + $0xb90] sm:$0xff]
        %v658 = vld [vmem:[%s224 + $0xb98] sm:$0xff]
        %v659 = vld [vmem:[%s224 + $0xba0] sm:$0xff]
        %v660 = vld [vmem:[%s224 + $0xba8] sm:$0xff]
        %v661 = vld [vmem:[%s224 + $0xbb0] sm:$0xff]
        %v662 = vld [vmem:[%s224 + $0xbb8] sm:$0xff]
        %v663 = vld [vmem:[%s224 + $0xbc0] sm:$0xff]
        %v664 = vld [vmem:[%s224 + $0xbc8] sm:$0xff]
        %v665 = vld [vmem:[%s224 + $0xbd0] sm:$0xff]
        %v666 = vld [vmem:[%s224 + $0xbd8] sm:$0xff]
        %v667 = vld [vmem:[%s224 + $0xbe0] sm:$0xff]
        %v668 = vld [vmem:[%s224 + $0xbe8] sm:$0xff]
        %v669 = vld [vmem:[%s224 + $0xbf0] sm:$0xff]
        %v670 = vld [vmem:[%s224 + $0xbf8] sm:$0xff]
        %v671 = vld [vmem:[%s224 + $0xc00] sm:$0xff]
        %v672 = vld [vmem:[%s224 + $0xc08] sm:$0xff]
        %v673 = vld [vmem:[%s224 + $0xc10] sm:$0xff]
        %v674 = vld [vmem:[%s224 + $0xc18] sm:$0xff]
        %v675 = vld [vmem:[%s224 + $0xc20] sm:$0xff]
        %v676 = vld [vmem:[%s224 + $0xc28] sm:$0xff]
        %v677 = vld [vmem:[%s224 + $0xc30] sm:$0xff]
        %v678 = vld [vmem:[%s224 + $0xc38] sm:$0xff]
        %v679 = vld [vmem:[%s224 + $0xc40] sm:$0xff]
        %v680 = vld [vmem:[%s224 + $0xc48] sm:$0xff]
        %v681 = vld [vmem:[%s224 + $0xc50] sm:$0xff]
        %v682 = vld [vmem:[%s224 + $0xc58] sm:$0xff]
        %v683 = vld [vmem:[%s224 + $0xc60] sm:$0xff]
        %v684 = vld [vmem:[%s224 + $0xc68] sm:$0xff]
        %v685 = vld [vmem:[%s224 + $0xc70] sm:$0xff]
        %v686 = vld [vmem:[%s224 + $0xc78] sm:$0xff]
        %v689 = vlaneseq
        %v690 = vshrl.u32 %v689, 7
        %v691 = vsub.s32 0, %v690
        %v692 = vrot.slane %v284, %v691
        %v693 = vlaneseq
        %v694 = vshrl.u32 %v693, 7
        %v695 = vsub.s32 1, %v694
        %v696 = vrot.slane %v284, %v695
        %v697 = vlaneseq
        %v698 = vshrl.u32 %v697, 7
        %v699 = vsub.s32 2, %v698
        %v700 = vrot.slane %v284, %v699
        %v701 = vlaneseq
        %v702 = vshrl.u32 %v701, 7
        %v703 = vsub.s32 3, %v702
        %v704 = vrot.slane %v284, %v703
        %v705 = vlaneseq
        %v706 = vshrl.u32 %v705, 7
        %v707 = vsub.s32 4, %v706
        %v708 = vrot.slane %v284, %v707
        %v709 = vlaneseq
        %v710 = vshrl.u32 %v709, 7
        %v711 = vsub.s32 5, %v710
        %v712 = vrot.slane %v284, %v711
        %v713 = vlaneseq
        %v714 = vshrl.u32 %v713, 7
        %v715 = vsub.s32 6, %v714
        %v716 = vrot.slane %v284, %v715
        %v717 = vlaneseq
        %v718 = vshrl.u32 %v717, 7
        %v719 = vsub.s32 7, %v718
        %v720 = vrot.slane %v284, %v719
        %v721 = vlaneseq
        %v722 = vshrl.u32 %v721, 7
        %v723 = vsub.s32 0, %v722
        %v724 = vrot.slane %v286, %v723
        %v725 = vlaneseq
        %v726 = vshrl.u32 %v725, 7
        %v727 = vsub.s32 1, %v726
        %v728 = vrot.slane %v286, %v727
        %v739 = vpack.c.bf16 %v692, %v692
        %v740 = vpack.c.bf16 %v696, %v696
        %v741 = vpack.c.bf16 %v700, %v700
        %v742 = vpack.c.bf16 %v704, %v704
        %v743 = vpack.c.bf16 %v708, %v708
        %v744 = vpack.c.bf16 %v712, %v712
        %v745 = vpack.c.bf16 %v716, %v716
        %v746 = vpack.c.bf16 %v720, %v720
        %v747 = vpack.c.bf16 %v724, %v724
        %v748 = vpack.c.bf16 %v728, %v728
        %v750 = vpack.i.b16 %v739, %v739
        %v752 = vlaneseq
        %v753 = vshrl.u32 %v752, 7
        %v754 = vsub.s32 0, %v753
        %v755 = vrot.slane %v750, %v754
        %v757 = vpack.i.b16 %v740, %v740
        %v759 = vlaneseq
        %v760 = vshrl.u32 %v759, 7
        %v761 = vsub.s32 0, %v760
        %v762 = vrot.slane %v757, %v761
        %v764 = vpack.i.b16 %v741, %v741
        %v766 = vlaneseq
        %v767 = vshrl.u32 %v766, 7
        %v768 = vsub.s32 0, %v767
        %v769 = vrot.slane %v764, %v768
        %v771 = vpack.i.b16 %v742, %v742
        %v773 = vlaneseq
        %v774 = vshrl.u32 %v773, 7
        %v775 = vsub.s32 0, %v774
        %v776 = vrot.slane %v771, %v775
        %v778 = vpack.i.b16 %v743, %v743
        %v780 = vlaneseq
        %v781 = vshrl.u32 %v780, 7
        %v782 = vsub.s32 0, %v781
        %v783 = vrot.slane %v778, %v782
        %v785 = vpack.i.b16 %v744, %v744
        %v787 = vlaneseq
        %v788 = vshrl.u32 %v787, 7
        %v789 = vsub.s32 0, %v788
        %v790 = vrot.slane %v785, %v789
        %v792 = vpack.i.b16 %v745, %v745
        %v794 = vlaneseq
        %v795 = vshrl.u32 %v794, 7
        %v796 = vsub.s32 0, %v795
        %v797 = vrot.slane %v792, %v796
        %v799 = vpack.i.b16 %v746, %v746
        %v801 = vlaneseq
        %v802 = vshrl.u32 %v801, 7
        %v803 = vsub.s32 0, %v802
        %v804 = vrot.slane %v799, %v803
        %v806 = vpack.i.b16 %v747, %v747
        %v808 = vlaneseq
        %v809 = vshrl.u32 %v808, 7
        %v810 = vsub.s32 0, %v809
        %v811 = vrot.slane %v806, %v810
        %v813 = vpack.i.b16 %v748, %v748
        %v815 = vlaneseq
        %v816 = vshrl.u32 %v815, 7
        %v817 = vsub.s32 0, %v816
        %v818 = vrot.slane %v813, %v817
        %v829 = vunpack.c.l.b16 %v755
        %v830 = vunpack.c.l.b16 %v762
        %v831 = vunpack.c.l.b16 %v769
        %v832 = vunpack.c.l.b16 %v776
        %v833 = vunpack.c.l.b16 %v783
        %v834 = vunpack.c.l.b16 %v790
        %v835 = vunpack.c.l.b16 %v797
        %v836 = vunpack.c.l.b16 %v804
        %v837 = vunpack.c.l.b16 %v811
        %v838 = vunpack.c.l.b16 %v818
        %v839 = vpack.c.b16 %v830, %v829
        %v840 = vpack.c.b16 %v832, %v831
        %v841 = vpack.c.b16 %v834, %v833
        %v842 = vpack.c.b16 %v836, %v835
        %v843 = vpack.c.b16 %v838, %v837
        %v849 = vmul.bf16 %v287, %v839
        %v850 = vmul.bf16 %v288, %v840
        %v851 = vmul.bf16 %v289, %v841
        %v852 = vmul.bf16 %v290, %v842
        %v853 = vmul.bf16 %v291, %v843
        %v854 = vmul.bf16 %v292, %v839
        %v855 = vmul.bf16 %v293, %v840
        %v856 = vmul.bf16 %v294, %v841
        %v857 = vmul.bf16 %v295, %v842
        %v858 = vmul.bf16 %v296, %v843
        %v859 = vmul.bf16 %v297, %v839
        %v860 = vmul.bf16 %v298, %v840
        %v861 = vmul.bf16 %v299, %v841
        %v862 = vmul.bf16 %v300, %v842
        %v863 = vmul.bf16 %v301, %v843
        %v864 = vmul.bf16 %v302, %v839
        %v865 = vmul.bf16 %v303, %v840
        %v866 = vmul.bf16 %v304, %v841
        %v867 = vmul.bf16 %v305, %v842
        %v868 = vmul.bf16 %v306, %v843
        %v869 = vmul.bf16 %v307, %v839
        %v870 = vmul.bf16 %v308, %v840
        %v871 = vmul.bf16 %v309, %v841
        %v872 = vmul.bf16 %v310, %v842
        %v873 = vmul.bf16 %v311, %v843
        %v874 = vmul.bf16 %v312, %v839
        %v875 = vmul.bf16 %v313, %v840
        %v876 = vmul.bf16 %v314, %v841
        %v877 = vmul.bf16 %v315, %v842
        %v878 = vmul.bf16 %v316, %v843
        %v879 = vmul.bf16 %v317, %v839
        %v880 = vmul.bf16 %v318, %v840
        %v881 = vmul.bf16 %v319, %v841
        %v882 = vmul.bf16 %v320, %v842
        %v883 = vmul.bf16 %v321, %v843
        %v884 = vmul.bf16 %v322, %v839
        %v885 = vmul.bf16 %v323, %v840
        %v886 = vmul.bf16 %v324, %v841
        %v887 = vmul.bf16 %v325, %v842
        %v888 = vmul.bf16 %v326, %v843
        %v889 = vmul.bf16 %v327, %v839
        %v890 = vmul.bf16 %v328, %v840
        %v891 = vmul.bf16 %v329, %v841
        %v892 = vmul.bf16 %v330, %v842
        %v893 = vmul.bf16 %v331, %v843
        %v894 = vmul.bf16 %v332, %v839
        %v895 = vmul.bf16 %v333, %v840
        %v896 = vmul.bf16 %v334, %v841
        %v897 = vmul.bf16 %v335, %v842
        %v898 = vmul.bf16 %v336, %v843
        %v899 = vmul.bf16 %v337, %v839
        %v900 = vmul.bf16 %v338, %v840
        %v901 = vmul.bf16 %v339, %v841
        %v902 = vmul.bf16 %v340, %v842
        %v903 = vmul.bf16 %v341, %v843
        %v904 = vmul.bf16 %v342, %v839
        %v905 = vmul.bf16 %v343, %v840
        %v906 = vmul.bf16 %v344, %v841
        %v907 = vmul.bf16 %v345, %v842
        %v908 = vmul.bf16 %v346, %v843
        %v909 = vmul.bf16 %v347, %v839
        %v910 = vmul.bf16 %v348, %v840
        %v911 = vmul.bf16 %v349, %v841
        %v912 = vmul.bf16 %v350, %v842
        %v913 = vmul.bf16 %v351, %v843
        %v914 = vmul.bf16 %v352, %v839
        %v915 = vmul.bf16 %v353, %v840
        %v916 = vmul.bf16 %v354, %v841
        %v917 = vmul.bf16 %v355, %v842
        %v918 = vmul.bf16 %v356, %v843
        %v919 = vmul.bf16 %v357, %v839
        %v920 = vmul.bf16 %v358, %v840
        %v921 = vmul.bf16 %v359, %v841
        %v922 = vmul.bf16 %v360, %v842
        %v923 = vmul.bf16 %v361, %v843
        %v924 = vmul.bf16 %v362, %v839
        %v925 = vmul.bf16 %v363, %v840
        %v926 = vmul.bf16 %v364, %v841
        %v927 = vmul.bf16 %v365, %v842
        %v928 = vmul.bf16 %v366, %v843
        %v929 = vmul.bf16 %v367, %v839
        %v930 = vmul.bf16 %v368, %v840
        %v931 = vmul.bf16 %v369, %v841
        %v932 = vmul.bf16 %v370, %v842
        %v933 = vmul.bf16 %v371, %v843
        %v934 = vmul.bf16 %v372, %v839
        %v935 = vmul.bf16 %v373, %v840
        %v936 = vmul.bf16 %v374, %v841
        %v937 = vmul.bf16 %v375, %v842
        %v938 = vmul.bf16 %v376, %v843
        %v939 = vmul.bf16 %v377, %v839
        %v940 = vmul.bf16 %v378, %v840
        %v941 = vmul.bf16 %v379, %v841
        %v942 = vmul.bf16 %v380, %v842
        %v943 = vmul.bf16 %v381, %v843
        %v944 = vmul.bf16 %v382, %v839
        %v945 = vmul.bf16 %v383, %v840
        %v946 = vmul.bf16 %v384, %v841
        %v947 = vmul.bf16 %v385, %v842
        %v948 = vmul.bf16 %v386, %v843
        %v949 = vmul.bf16 %v387, %v839
        %v950 = vmul.bf16 %v388, %v840
        %v951 = vmul.bf16 %v389, %v841
        %v952 = vmul.bf16 %v390, %v842
        %v953 = vmul.bf16 %v391, %v843
        %v954 = vmul.bf16 %v392, %v839
        %v955 = vmul.bf16 %v393, %v840
        %v956 = vmul.bf16 %v394, %v841
        %v957 = vmul.bf16 %v395, %v842
        %v958 = vmul.bf16 %v396, %v843
        %v959 = vmul.bf16 %v397, %v839
        %v960 = vmul.bf16 %v398, %v840
        %v961 = vmul.bf16 %v399, %v841
        %v962 = vmul.bf16 %v400, %v842
        %v963 = vmul.bf16 %v401, %v843
        %v964 = vmul.bf16 %v402, %v839
        %v965 = vmul.bf16 %v403, %v840
        %v966 = vmul.bf16 %v404, %v841
        %v967 = vmul.bf16 %v405, %v842
        %v968 = vmul.bf16 %v406, %v843
        %v969 = vmul.bf16 %v407, %v839
        %v970 = vmul.bf16 %v408, %v840
        %v971 = vmul.bf16 %v409, %v841
        %v972 = vmul.bf16 %v410, %v842
        %v973 = vmul.bf16 %v411, %v843
        %v974 = vmul.bf16 %v412, %v839
        %v975 = vmul.bf16 %v413, %v840
        %v976 = vmul.bf16 %v414, %v841
        %v977 = vmul.bf16 %v415, %v842
        %v978 = vmul.bf16 %v416, %v843
        %v979 = vmul.bf16 %v417, %v839
        %v980 = vmul.bf16 %v418, %v840
        %v981 = vmul.bf16 %v419, %v841
        %v982 = vmul.bf16 %v420, %v842
        %v983 = vmul.bf16 %v421, %v843
        %v984 = vmul.bf16 %v422, %v839
        %v985 = vmul.bf16 %v423, %v840
        %v986 = vmul.bf16 %v424, %v841
        %v987 = vmul.bf16 %v425, %v842
        %v988 = vmul.bf16 %v426, %v843
        %v989 = vmul.bf16 %v427, %v839
        %v990 = vmul.bf16 %v428, %v840
        %v991 = vmul.bf16 %v429, %v841
        %v992 = vmul.bf16 %v430, %v842
        %v993 = vmul.bf16 %v431, %v843
        %v994 = vmul.bf16 %v432, %v839
        %v995 = vmul.bf16 %v433, %v840
        %v996 = vmul.bf16 %v434, %v841
        %v997 = vmul.bf16 %v435, %v842
        %v998 = vmul.bf16 %v436, %v843
        %v999 = vmul.bf16 %v437, %v839
        %v1000 = vmul.bf16 %v438, %v840
        %v1001 = vmul.bf16 %v439, %v841
        %v1002 = vmul.bf16 %v440, %v842
        %v1003 = vmul.bf16 %v441, %v843
        %v1004 = vmul.bf16 %v442, %v839
        %v1005 = vmul.bf16 %v443, %v840
        %v1006 = vmul.bf16 %v444, %v841
        %v1007 = vmul.bf16 %v445, %v842
        %v1008 = vmul.bf16 %v446, %v843
        %v1009 = vmul.bf16 %v447, %v839
        %v1010 = vmul.bf16 %v448, %v840
        %v1011 = vmul.bf16 %v449, %v841
        %v1012 = vmul.bf16 %v450, %v842
        %v1013 = vmul.bf16 %v451, %v843
        %v1014 = vmul.bf16 %v452, %v839
        %v1015 = vmul.bf16 %v453, %v840
        %v1016 = vmul.bf16 %v454, %v841
        %v1017 = vmul.bf16 %v455, %v842
        %v1018 = vmul.bf16 %v456, %v843
        %v1019 = vmul.bf16 %v457, %v839
        %v1020 = vmul.bf16 %v458, %v840
        %v1021 = vmul.bf16 %v459, %v841
        %v1022 = vmul.bf16 %v460, %v842
        %v1023 = vmul.bf16 %v461, %v843
        %v1024 = vmul.bf16 %v462, %v839
        %v1025 = vmul.bf16 %v463, %v840
        %v1026 = vmul.bf16 %v464, %v841
        %v1027 = vmul.bf16 %v465, %v842
        %v1028 = vmul.bf16 %v466, %v843
        %v1029 = vmul.bf16 %v467, %v839
        %v1030 = vmul.bf16 %v468, %v840
        %v1031 = vmul.bf16 %v469, %v841
        %v1032 = vmul.bf16 %v470, %v842
        %v1033 = vmul.bf16 %v471, %v843
        %v1034 = vmul.bf16 %v472, %v839
        %v1035 = vmul.bf16 %v473, %v840
        %v1036 = vmul.bf16 %v474, %v841
        %v1037 = vmul.bf16 %v475, %v842
        %v1038 = vmul.bf16 %v476, %v843
        %v1039 = vmul.bf16 %v477, %v839
        %v1040 = vmul.bf16 %v478, %v840
        %v1041 = vmul.bf16 %v479, %v841
        %v1042 = vmul.bf16 %v480, %v842
        %v1043 = vmul.bf16 %v481, %v843
        %v1044 = vmul.bf16 %v482, %v839
        %v1045 = vmul.bf16 %v483, %v840
        %v1046 = vmul.bf16 %v484, %v841
        %v1047 = vmul.bf16 %v485, %v842
        %v1048 = vmul.bf16 %v486, %v843
        %v1049 = vmul.bf16 %v487, %v839
        %v1050 = vmul.bf16 %v488, %v840
        %v1051 = vmul.bf16 %v489, %v841
        %v1052 = vmul.bf16 %v490, %v842
        %v1053 = vmul.bf16 %v491, %v843
        %v1054 = vmul.bf16 %v492, %v839
        %v1055 = vmul.bf16 %v493, %v840
        %v1056 = vmul.bf16 %v494, %v841
        %v1057 = vmul.bf16 %v495, %v842
        %v1058 = vmul.bf16 %v496, %v843
        %v1059 = vmul.bf16 %v497, %v839
        %v1060 = vmul.bf16 %v498, %v840
        %v1061 = vmul.bf16 %v499, %v841
        %v1062 = vmul.bf16 %v500, %v842
        %v1063 = vmul.bf16 %v501, %v843
        %v1064 = vmul.bf16 %v502, %v839
        %v1065 = vmul.bf16 %v503, %v840
        %v1066 = vmul.bf16 %v504, %v841
        %v1067 = vmul.bf16 %v505, %v842
        %v1068 = vmul.bf16 %v506, %v843
        %v1069 = vmul.bf16 %v507, %v839
        %v1070 = vmul.bf16 %v508, %v840
        %v1071 = vmul.bf16 %v509, %v841
        %v1072 = vmul.bf16 %v510, %v842
        %v1073 = vmul.bf16 %v511, %v843
        %v1074 = vmul.bf16 %v512, %v839
        %v1075 = vmul.bf16 %v513, %v840
        %v1076 = vmul.bf16 %v514, %v841
        %v1077 = vmul.bf16 %v515, %v842
        %v1078 = vmul.bf16 %v516, %v843
        %v1079 = vmul.bf16 %v517, %v839
        %v1080 = vmul.bf16 %v518, %v840
        %v1081 = vmul.bf16 %v519, %v841
        %v1082 = vmul.bf16 %v520, %v842
        %v1083 = vmul.bf16 %v521, %v843
        %v1084 = vmul.bf16 %v522, %v839
        %v1085 = vmul.bf16 %v523, %v840
        %v1086 = vmul.bf16 %v524, %v841
        %v1087 = vmul.bf16 %v525, %v842
        %v1088 = vmul.bf16 %v526, %v843
        %v1089 = vmul.bf16 %v527, %v839
        %v1090 = vmul.bf16 %v528, %v840
        %v1091 = vmul.bf16 %v529, %v841
        %v1092 = vmul.bf16 %v530, %v842
        %v1093 = vmul.bf16 %v531, %v843
        %v1094 = vmul.bf16 %v532, %v839
        %v1095 = vmul.bf16 %v533, %v840
        %v1096 = vmul.bf16 %v534, %v841
        %v1097 = vmul.bf16 %v535, %v842
        %v1098 = vmul.bf16 %v536, %v843
        %v1099 = vmul.bf16 %v537, %v839
        %v1100 = vmul.bf16 %v538, %v840
        %v1101 = vmul.bf16 %v539, %v841
        %v1102 = vmul.bf16 %v540, %v842
        %v1103 = vmul.bf16 %v541, %v843
        %v1104 = vmul.bf16 %v542, %v839
        %v1105 = vmul.bf16 %v543, %v840
        %v1106 = vmul.bf16 %v544, %v841
        %v1107 = vmul.bf16 %v545, %v842
        %v1108 = vmul.bf16 %v546, %v843
        %v1109 = vmul.bf16 %v547, %v839
        %v1110 = vmul.bf16 %v548, %v840
        %v1111 = vmul.bf16 %v549, %v841
        %v1112 = vmul.bf16 %v550, %v842
        %v1113 = vmul.bf16 %v551, %v843
        %v1114 = vmul.bf16 %v552, %v839
        %v1115 = vmul.bf16 %v553, %v840
        %v1116 = vmul.bf16 %v554, %v841
        %v1117 = vmul.bf16 %v555, %v842
        %v1118 = vmul.bf16 %v556, %v843
        %v1119 = vmul.bf16 %v557, %v839
        %v1120 = vmul.bf16 %v558, %v840
        %v1121 = vmul.bf16 %v559, %v841
        %v1122 = vmul.bf16 %v560, %v842
        %v1123 = vmul.bf16 %v561, %v843
        %v1124 = vmul.bf16 %v562, %v839
        %v1125 = vmul.bf16 %v563, %v840
        %v1126 = vmul.bf16 %v564, %v841
        %v1127 = vmul.bf16 %v565, %v842
        %v1128 = vmul.bf16 %v566, %v843
        %v1129 = vmul.bf16 %v567, %v839
        %v1130 = vmul.bf16 %v568, %v840
        %v1131 = vmul.bf16 %v569, %v841
        %v1132 = vmul.bf16 %v570, %v842
        %v1133 = vmul.bf16 %v571, %v843
        %v1134 = vmul.bf16 %v572, %v839
        %v1135 = vmul.bf16 %v573, %v840
        %v1136 = vmul.bf16 %v574, %v841
        %v1137 = vmul.bf16 %v575, %v842
        %v1138 = vmul.bf16 %v576, %v843
        %v1139 = vmul.bf16 %v577, %v839
        %v1140 = vmul.bf16 %v578, %v840
        %v1141 = vmul.bf16 %v579, %v841
        %v1142 = vmul.bf16 %v580, %v842
        %v1143 = vmul.bf16 %v581, %v843
        %v1144 = vmul.bf16 %v582, %v839
        %v1145 = vmul.bf16 %v583, %v840
        %v1146 = vmul.bf16 %v584, %v841
        %v1147 = vmul.bf16 %v585, %v842
        %v1148 = vmul.bf16 %v586, %v843
        %v1149 = vmul.bf16 %v587, %v839
        %v1150 = vmul.bf16 %v588, %v840
        %v1151 = vmul.bf16 %v589, %v841
        %v1152 = vmul.bf16 %v590, %v842
        %v1153 = vmul.bf16 %v591, %v843
        %v1154 = vmul.bf16 %v592, %v839
        %v1155 = vmul.bf16 %v593, %v840
        %v1156 = vmul.bf16 %v594, %v841
        %v1157 = vmul.bf16 %v595, %v842
        %v1158 = vmul.bf16 %v596, %v843
        %v1159 = vmul.bf16 %v597, %v839
        %v1160 = vmul.bf16 %v598, %v840
        %v1161 = vmul.bf16 %v599, %v841
        %v1162 = vmul.bf16 %v600, %v842
        %v1163 = vmul.bf16 %v601, %v843
        %v1164 = vmul.bf16 %v602, %v839
        %v1165 = vmul.bf16 %v603, %v840
        %v1166 = vmul.bf16 %v604, %v841
        %v1167 = vmul.bf16 %v605, %v842
        %v1168 = vmul.bf16 %v606, %v843
        %v1169 = vmul.bf16 %v607, %v839
        %v1170 = vmul.bf16 %v608, %v840
        %v1171 = vmul.bf16 %v609, %v841
        %v1172 = vmul.bf16 %v610, %v842
        %v1173 = vmul.bf16 %v611, %v843
        %v1174 = vmul.bf16 %v612, %v839
        %v1175 = vmul.bf16 %v613, %v840
        %v1176 = vmul.bf16 %v614, %v841
        %v1177 = vmul.bf16 %v615, %v842
        %v1178 = vmul.bf16 %v616, %v843
        %v1179 = vmul.bf16 %v617, %v839
        %v1180 = vmul.bf16 %v618, %v840
        %v1181 = vmul.bf16 %v619, %v841
        %v1182 = vmul.bf16 %v620, %v842
        %v1183 = vmul.bf16 %v621, %v843
        %v1184 = vmul.bf16 %v622, %v839
        %v1185 = vmul.bf16 %v623, %v840
        %v1186 = vmul.bf16 %v624, %v841
        %v1187 = vmul.bf16 %v625, %v842
        %v1188 = vmul.bf16 %v626, %v843
        %v1189 = vmul.bf16 %v627, %v839
        %v1190 = vmul.bf16 %v628, %v840
        %v1191 = vmul.bf16 %v629, %v841
        %v1192 = vmul.bf16 %v630, %v842
        %v1193 = vmul.bf16 %v631, %v843
        %v1194 = vmul.bf16 %v632, %v839
        %v1195 = vmul.bf16 %v633, %v840
        %v1196 = vmul.bf16 %v634, %v841
        %v1197 = vmul.bf16 %v635, %v842
        %v1198 = vmul.bf16 %v636, %v843
        %v1199 = vmul.bf16 %v637, %v839
        %v1200 = vmul.bf16 %v638, %v840
        %v1201 = vmul.bf16 %v639, %v841
        %v1202 = vmul.bf16 %v640, %v842
        %v1203 = vmul.bf16 %v641, %v843
        %v1204 = vmul.bf16 %v642, %v839
        %v1205 = vmul.bf16 %v643, %v840
        %v1206 = vmul.bf16 %v644, %v841
        %v1207 = vmul.bf16 %v645, %v842
        %v1208 = vmul.bf16 %v646, %v843
        %v1209 = vmul.bf16 %v647, %v839
        %v1210 = vmul.bf16 %v648, %v840
        %v1211 = vmul.bf16 %v649, %v841
        %v1212 = vmul.bf16 %v650, %v842
        %v1213 = vmul.bf16 %v651, %v843
        %v1214 = vmul.bf16 %v652, %v839
        %v1215 = vmul.bf16 %v653, %v840
        %v1216 = vmul.bf16 %v654, %v841
        %v1217 = vmul.bf16 %v655, %v842
        %v1218 = vmul.bf16 %v656, %v843
        %v1219 = vmul.bf16 %v657, %v839
        %v1220 = vmul.bf16 %v658, %v840
        %v1221 = vmul.bf16 %v659, %v841
        %v1222 = vmul.bf16 %v660, %v842
        %v1223 = vmul.bf16 %v661, %v843
        %v1224 = vmul.bf16 %v662, %v839
        %v1225 = vmul.bf16 %v663, %v840
        %v1226 = vmul.bf16 %v664, %v841
        %v1227 = vmul.bf16 %v665, %v842
        %v1228 = vmul.bf16 %v666, %v843
        %v1229 = vmul.bf16 %v667, %v839
        %v1230 = vmul.bf16 %v668, %v840
        %v1231 = vmul.bf16 %v669, %v841
        %v1232 = vmul.bf16 %v670, %v842
        %v1233 = vmul.bf16 %v671, %v843
        %v1234 = vmul.bf16 %v672, %v839
        %v1235 = vmul.bf16 %v673, %v840
        %v1236 = vmul.bf16 %v674, %v841
        %v1237 = vmul.bf16 %v675, %v842
        %v1238 = vmul.bf16 %v676, %v843
        %v1239 = vmul.bf16 %v677, %v839
        %v1240 = vmul.bf16 %v678, %v840
        %v1241 = vmul.bf16 %v679, %v841
        %v1242 = vmul.bf16 %v680, %v842
        %v1243 = vmul.bf16 %v681, %v843
        %v1244 = vmul.bf16 %v682, %v839
        %v1245 = vmul.bf16 %v683, %v840
        %v1246 = vmul.bf16 %v684, %v841
        %v1247 = vmul.bf16 %v685, %v842
        %v1248 = vmul.bf16 %v686, %v843
        %v1249 = vld [vmem:[%s262] sm:$0xff]
        %v1250 = vld [vmem:[%s262 + $0x8] sm:$0xff]
        %v1251 = vld [vmem:[%s262 + $0x10] sm:$0xff]
        %v1252 = vld [vmem:[%s262 + $0x18] sm:$0xff]
        %v1253 = vld [vmem:[%s262 + $0x20] sm:$0xff]
        %v1254 = vld [vmem:[%s262 + $0x28] sm:$0xff]
        %v1255 = vld [vmem:[%s262 + $0x30] sm:$0xff]
        %v1256 = vld [vmem:[%s262 + $0x38] sm:$0xff]
        %v1257 = vld [vmem:[%s262 + $0x40] sm:$0xff]
        %v1258 = vld [vmem:[%s262 + $0x48] sm:$0xff]
        %v1259 = vld [vmem:[%s262 + $0x50] sm:$0xff]
        %v1260 = vld [vmem:[%s262 + $0x58] sm:$0xff]
        %v1261 = vld [vmem:[%s262 + $0x60] sm:$0xff]
        %v1262 = vld [vmem:[%s262 + $0x68] sm:$0xff]
        %v1263 = vld [vmem:[%s262 + $0x70] sm:$0xff]
        %v1264 = vld [vmem:[%s262 + $0x78] sm:$0xff]
        %v1265 = vld [vmem:[%s262 + $0x80] sm:$0xff]
        %v1266 = vld [vmem:[%s262 + $0x88] sm:$0xff]
        %v1267 = vld [vmem:[%s262 + $0x90] sm:$0xff]
        %v1268 = vld [vmem:[%s262 + $0x98] sm:$0xff]
        %v1269 = vld [vmem:[%s262 + $0xa0] sm:$0xff]
        %v1270 = vld [vmem:[%s262 + $0xa8] sm:$0xff]
        %v1271 = vld [vmem:[%s262 + $0xb0] sm:$0xff]
        %v1272 = vld [vmem:[%s262 + $0xb8] sm:$0xff]
        %v1273 = vld [vmem:[%s262 + $0xc0] sm:$0xff]
        %v1274 = vld [vmem:[%s262 + $0xc8] sm:$0xff]
        %v1275 = vld [vmem:[%s262 + $0xd0] sm:$0xff]
        %v1276 = vld [vmem:[%s262 + $0xd8] sm:$0xff]
        %v1277 = vld [vmem:[%s262 + $0xe0] sm:$0xff]
        %v1278 = vld [vmem:[%s262 + $0xe8] sm:$0xff]
        %v1279 = vld [vmem:[%s262 + $0xf0] sm:$0xff]
        %v1280 = vld [vmem:[%s262 + $0xf8] sm:$0xff]
        %v1281 = vld [vmem:[%s262 + $0x100] sm:$0xff]
        %v1282 = vld [vmem:[%s262 + $0x108] sm:$0xff]
        %v1283 = vld [vmem:[%s262 + $0x110] sm:$0xff]
        %v1284 = vld [vmem:[%s262 + $0x118] sm:$0xff]
        %v1285 = vld [vmem:[%s262 + $0x120] sm:$0xff]
        %v1286 = vld [vmem:[%s262 + $0x128] sm:$0xff]
        %v1287 = vld [vmem:[%s262 + $0x130] sm:$0xff]
        %v1288 = vld [vmem:[%s262 + $0x138] sm:$0xff]
        %v1289 = vld [vmem:[%s262 + $0x140] sm:$0xff]
        %v1290 = vld [vmem:[%s262 + $0x148] sm:$0xff]
        %v1291 = vld [vmem:[%s262 + $0x150] sm:$0xff]
        %v1292 = vld [vmem:[%s262 + $0x158] sm:$0xff]
        %v1293 = vld [vmem:[%s262 + $0x160] sm:$0xff]
        %v1294 = vld [vmem:[%s262 + $0x168] sm:$0xff]
        %v1295 = vld [vmem:[%s262 + $0x170] sm:$0xff]
        %v1296 = vld [vmem:[%s262 + $0x178] sm:$0xff]
        %v1297 = vld [vmem:[%s262 + $0x180] sm:$0xff]
        %v1298 = vld [vmem:[%s262 + $0x188] sm:$0xff]
        %v1299 = vld [vmem:[%s262 + $0x190] sm:$0xff]
        %v1300 = vld [vmem:[%s262 + $0x198] sm:$0xff]
        %v1301 = vld [vmem:[%s262 + $0x1a0] sm:$0xff]
        %v1302 = vld [vmem:[%s262 + $0x1a8] sm:$0xff]
        %v1303 = vld [vmem:[%s262 + $0x1b0] sm:$0xff]
        %v1304 = vld [vmem:[%s262 + $0x1b8] sm:$0xff]
        %v1305 = vld [vmem:[%s262 + $0x1c0] sm:$0xff]
        %v1306 = vld [vmem:[%s262 + $0x1c8] sm:$0xff]
        %v1307 = vld [vmem:[%s262 + $0x1d0] sm:$0xff]
        %v1308 = vld [vmem:[%s262 + $0x1d8] sm:$0xff]
        %v1309 = vld [vmem:[%s262 + $0x1e0] sm:$0xff]
        %v1310 = vld [vmem:[%s262 + $0x1e8] sm:$0xff]
        %v1311 = vld [vmem:[%s262 + $0x1f0] sm:$0xff]
        %v1312 = vld [vmem:[%s262 + $0x1f8] sm:$0xff]
        %v1313 = vld [vmem:[%s262 + $0x200] sm:$0xff]
        %v1314 = vld [vmem:[%s262 + $0x208] sm:$0xff]
        %v1315 = vld [vmem:[%s262 + $0x210] sm:$0xff]
        %v1316 = vld [vmem:[%s262 + $0x218] sm:$0xff]
        %v1317 = vld [vmem:[%s262 + $0x220] sm:$0xff]
        %v1318 = vld [vmem:[%s262 + $0x228] sm:$0xff]
        %v1319 = vld [vmem:[%s262 + $0x230] sm:$0xff]
        %v1320 = vld [vmem:[%s262 + $0x238] sm:$0xff]
        %v1321 = vld [vmem:[%s262 + $0x240] sm:$0xff]
        %v1322 = vld [vmem:[%s262 + $0x248] sm:$0xff]
        %v1323 = vld [vmem:[%s262 + $0x250] sm:$0xff]
        %v1324 = vld [vmem:[%s262 + $0x258] sm:$0xff]
        %v1325 = vld [vmem:[%s262 + $0x260] sm:$0xff]
        %v1326 = vld [vmem:[%s262 + $0x268] sm:$0xff]
        %v1327 = vld [vmem:[%s262 + $0x270] sm:$0xff]
        %v1328 = vld [vmem:[%s262 + $0x278] sm:$0xff]
        %v1329 = vld [vmem:[%s262 + $0x280] sm:$0xff]
        %v1330 = vld [vmem:[%s262 + $0x288] sm:$0xff]
        %v1331 = vld [vmem:[%s262 + $0x290] sm:$0xff]
        %v1332 = vld [vmem:[%s262 + $0x298] sm:$0xff]
        %v1333 = vld [vmem:[%s262 + $0x2a0] sm:$0xff]
        %v1334 = vld [vmem:[%s262 + $0x2a8] sm:$0xff]
        %v1335 = vld [vmem:[%s262 + $0x2b0] sm:$0xff]
        %v1336 = vld [vmem:[%s262 + $0x2b8] sm:$0xff]
        %v1337 = vld [vmem:[%s262 + $0x2c0] sm:$0xff]
        %v1338 = vld [vmem:[%s262 + $0x2c8] sm:$0xff]
        %v1339 = vld [vmem:[%s262 + $0x2d0] sm:$0xff]
        %v1340 = vld [vmem:[%s262 + $0x2d8] sm:$0xff]
        %v1341 = vld [vmem:[%s262 + $0x2e0] sm:$0xff]
        %v1342 = vld [vmem:[%s262 + $0x2e8] sm:$0xff]
        %v1343 = vld [vmem:[%s262 + $0x2f0] sm:$0xff]
        %v1344 = vld [vmem:[%s262 + $0x2f8] sm:$0xff]
        %v1345 = vld [vmem:[%s262 + $0x300] sm:$0xff]
        %v1346 = vld [vmem:[%s262 + $0x308] sm:$0xff]
        %v1347 = vld [vmem:[%s262 + $0x310] sm:$0xff]
        %v1348 = vld [vmem:[%s262 + $0x318] sm:$0xff]
        %v1349 = vld [vmem:[%s262 + $0x320] sm:$0xff]
        %v1350 = vld [vmem:[%s262 + $0x328] sm:$0xff]
        %v1351 = vld [vmem:[%s262 + $0x330] sm:$0xff]
        %v1352 = vld [vmem:[%s262 + $0x338] sm:$0xff]
        %v1353 = vld [vmem:[%s262 + $0x340] sm:$0xff]
        %v1354 = vld [vmem:[%s262 + $0x348] sm:$0xff]
        %v1355 = vld [vmem:[%s262 + $0x350] sm:$0xff]
        %v1356 = vld [vmem:[%s262 + $0x358] sm:$0xff]
        %v1357 = vld [vmem:[%s262 + $0x360] sm:$0xff]
        %v1358 = vld [vmem:[%s262 + $0x368] sm:$0xff]
        %v1359 = vld [vmem:[%s262 + $0x370] sm:$0xff]
        %v1360 = vld [vmem:[%s262 + $0x378] sm:$0xff]
        %v1361 = vld [vmem:[%s262 + $0x380] sm:$0xff]
        %v1362 = vld [vmem:[%s262 + $0x388] sm:$0xff]
        %v1363 = vld [vmem:[%s262 + $0x390] sm:$0xff]
        %v1364 = vld [vmem:[%s262 + $0x398] sm:$0xff]
        %v1365 = vld [vmem:[%s262 + $0x3a0] sm:$0xff]
        %v1366 = vld [vmem:[%s262 + $0x3a8] sm:$0xff]
        %v1367 = vld [vmem:[%s262 + $0x3b0] sm:$0xff]
        %v1368 = vld [vmem:[%s262 + $0x3b8] sm:$0xff]
        %v1369 = vld [vmem:[%s262 + $0x3c0] sm:$0xff]
        %v1370 = vld [vmem:[%s262 + $0x3c8] sm:$0xff]
        %v1371 = vld [vmem:[%s262 + $0x3d0] sm:$0xff]
        %v1372 = vld [vmem:[%s262 + $0x3d8] sm:$0xff]
        %v1373 = vld [vmem:[%s262 + $0x3e0] sm:$0xff]
        %v1374 = vld [vmem:[%s262 + $0x3e8] sm:$0xff]
        %v1375 = vld [vmem:[%s262 + $0x3f0] sm:$0xff]
        %v1376 = vld [vmem:[%s262 + $0x3f8] sm:$0xff]
        %v1377 = vld [vmem:[%s262 + $0x400] sm:$0xff]
        %v1378 = vld [vmem:[%s262 + $0x408] sm:$0xff]
        %v1379 = vld [vmem:[%s262 + $0x410] sm:$0xff]
        %v1380 = vld [vmem:[%s262 + $0x418] sm:$0xff]
        %v1381 = vld [vmem:[%s262 + $0x420] sm:$0xff]
        %v1382 = vld [vmem:[%s262 + $0x428] sm:$0xff]
        %v1383 = vld [vmem:[%s262 + $0x430] sm:$0xff]
        %v1384 = vld [vmem:[%s262 + $0x438] sm:$0xff]
        %v1385 = vld [vmem:[%s262 + $0x440] sm:$0xff]
        %v1386 = vld [vmem:[%s262 + $0x448] sm:$0xff]
        %v1387 = vld [vmem:[%s262 + $0x450] sm:$0xff]
        %v1388 = vld [vmem:[%s262 + $0x458] sm:$0xff]
        %v1389 = vld [vmem:[%s262 + $0x460] sm:$0xff]
        %v1390 = vld [vmem:[%s262 + $0x468] sm:$0xff]
        %v1391 = vld [vmem:[%s262 + $0x470] sm:$0xff]
        %v1392 = vld [vmem:[%s262 + $0x478] sm:$0xff]
        %v1393 = vld [vmem:[%s262 + $0x480] sm:$0xff]
        %v1394 = vld [vmem:[%s262 + $0x488] sm:$0xff]
        %v1395 = vld [vmem:[%s262 + $0x490] sm:$0xff]
        %v1396 = vld [vmem:[%s262 + $0x498] sm:$0xff]
        %v1397 = vld [vmem:[%s262 + $0x4a0] sm:$0xff]
        %v1398 = vld [vmem:[%s262 + $0x4a8] sm:$0xff]
        %v1399 = vld [vmem:[%s262 + $0x4b0] sm:$0xff]
        %v1400 = vld [vmem:[%s262 + $0x4b8] sm:$0xff]
        %v1401 = vld [vmem:[%s262 + $0x4c0] sm:$0xff]
        %v1402 = vld [vmem:[%s262 + $0x4c8] sm:$0xff]
        %v1403 = vld [vmem:[%s262 + $0x4d0] sm:$0xff]
        %v1404 = vld [vmem:[%s262 + $0x4d8] sm:$0xff]
        %v1405 = vld [vmem:[%s262 + $0x4e0] sm:$0xff]
        %v1406 = vld [vmem:[%s262 + $0x4e8] sm:$0xff]
        %v1407 = vld [vmem:[%s262 + $0x4f0] sm:$0xff]
        %v1408 = vld [vmem:[%s262 + $0x4f8] sm:$0xff]
        %v1409 = vpack.c.bf16 %v1250, %v1249
        %v1410 = vpack.c.bf16 %v1252, %v1251
        %v1411 = vpack.c.bf16 %v1254, %v1253
        %v1412 = vpack.c.bf16 %v1256, %v1255
        %v1413 = vpack.c.bf16 %v1258, %v1257
        %v1414 = vpack.c.bf16 %v1260, %v1259
        %v1415 = vpack.c.bf16 %v1262, %v1261
        %v1416 = vpack.c.bf16 %v1264, %v1263
        %v1417 = vpack.c.bf16 %v1266, %v1265
        %v1418 = vpack.c.bf16 %v1268, %v1267
        %v1419 = vpack.c.bf16 %v1270, %v1269
        %v1420 = vpack.c.bf16 %v1272, %v1271
        %v1421 = vpack.c.bf16 %v1274, %v1273
        %v1422 = vpack.c.bf16 %v1276, %v1275
        %v1423 = vpack.c.bf16 %v1278, %v1277
        %v1424 = vpack.c.bf16 %v1280, %v1279
        %v1425 = vpack.c.bf16 %v1282, %v1281
        %v1426 = vpack.c.bf16 %v1284, %v1283
        %v1427 = vpack.c.bf16 %v1286, %v1285
        %v1428 = vpack.c.bf16 %v1288, %v1287
        %v1429 = vpack.c.bf16 %v1290, %v1289
        %v1430 = vpack.c.bf16 %v1292, %v1291
        %v1431 = vpack.c.bf16 %v1294, %v1293
        %v1432 = vpack.c.bf16 %v1296, %v1295
        %v1433 = vpack.c.bf16 %v1298, %v1297
        %v1434 = vpack.c.bf16 %v1300, %v1299
        %v1435 = vpack.c.bf16 %v1302, %v1301
        %v1436 = vpack.c.bf16 %v1304, %v1303
        %v1437 = vpack.c.bf16 %v1306, %v1305
        %v1438 = vpack.c.bf16 %v1308, %v1307
        %v1439 = vpack.c.bf16 %v1310, %v1309
        %v1440 = vpack.c.bf16 %v1312, %v1311
        %v1441 = vpack.c.bf16 %v1314, %v1313
        %v1442 = vpack.c.bf16 %v1316, %v1315
        %v1443 = vpack.c.bf16 %v1318, %v1317
        %v1444 = vpack.c.bf16 %v1320, %v1319
        %v1445 = vpack.c.bf16 %v1322, %v1321
        %v1446 = vpack.c.bf16 %v1324, %v1323
        %v1447 = vpack.c.bf16 %v1326, %v1325
        %v1448 = vpack.c.bf16 %v1328, %v1327
        %v1449 = vpack.c.bf16 %v1330, %v1329
        %v1450 = vpack.c.bf16 %v1332, %v1331
        %v1451 = vpack.c.bf16 %v1334, %v1333
        %v1452 = vpack.c.bf16 %v1336, %v1335
        %v1453 = vpack.c.bf16 %v1338, %v1337
        %v1454 = vpack.c.bf16 %v1340, %v1339
        %v1455 = vpack.c.bf16 %v1342, %v1341
        %v1456 = vpack.c.bf16 %v1344, %v1343
        %v1457 = vpack.c.bf16 %v1346, %v1345
        %v1458 = vpack.c.bf16 %v1348, %v1347
        %v1459 = vpack.c.bf16 %v1350, %v1349
        %v1460 = vpack.c.bf16 %v1352, %v1351
        %v1461 = vpack.c.bf16 %v1354, %v1353
        %v1462 = vpack.c.bf16 %v1356, %v1355
        %v1463 = vpack.c.bf16 %v1358, %v1357
        %v1464 = vpack.c.bf16 %v1360, %v1359
        %v1465 = vpack.c.bf16 %v1362, %v1361
        %v1466 = vpack.c.bf16 %v1364, %v1363
        %v1467 = vpack.c.bf16 %v1366, %v1365
        %v1468 = vpack.c.bf16 %v1368, %v1367
        %v1469 = vpack.c.bf16 %v1370, %v1369
        %v1470 = vpack.c.bf16 %v1372, %v1371
        %v1471 = vpack.c.bf16 %v1374, %v1373
        %v1472 = vpack.c.bf16 %v1376, %v1375
        %v1473 = vpack.c.bf16 %v1378, %v1377
        %v1474 = vpack.c.bf16 %v1380, %v1379
        %v1475 = vpack.c.bf16 %v1382, %v1381
        %v1476 = vpack.c.bf16 %v1384, %v1383
        %v1477 = vpack.c.bf16 %v1386, %v1385
        %v1478 = vpack.c.bf16 %v1388, %v1387
        %v1479 = vpack.c.bf16 %v1390, %v1389
        %v1480 = vpack.c.bf16 %v1392, %v1391
        %v1481 = vpack.c.bf16 %v1394, %v1393
        %v1482 = vpack.c.bf16 %v1396, %v1395
        %v1483 = vpack.c.bf16 %v1398, %v1397
        %v1484 = vpack.c.bf16 %v1400, %v1399
        %v1485 = vpack.c.bf16 %v1402, %v1401
        %v1486 = vpack.c.bf16 %v1404, %v1403
        %v1487 = vpack.c.bf16 %v1406, %v1405
        %v1488 = vpack.c.bf16 %v1408, %v1407
        %v1889 = vunpack.c.l.b16 %v849
        %v1890 = vunpack.c.h.b16 %v849
        %v1891 = vunpack.c.l.b16 %v850
        %v1892 = vunpack.c.h.b16 %v850
        %v1893 = vunpack.c.l.b16 %v851
        %v1894 = vunpack.c.h.b16 %v851
        %v1895 = vunpack.c.l.b16 %v852
        %v1896 = vunpack.c.h.b16 %v852
        %v1897 = vunpack.c.l.b16 %v853
        %v1898 = vunpack.c.h.b16 %v853
        %v1899 = vunpack.c.l.b16 %v854
        %v1900 = vunpack.c.h.b16 %v854
        %v1901 = vunpack.c.l.b16 %v855
        %v1902 = vunpack.c.h.b16 %v855
        %v1903 = vunpack.c.l.b16 %v856
        %v1904 = vunpack.c.h.b16 %v856
        %v1905 = vunpack.c.l.b16 %v857
        %v1906 = vunpack.c.h.b16 %v857
        %v1907 = vunpack.c.l.b16 %v858
        %v1908 = vunpack.c.h.b16 %v858
        %v1909 = vunpack.c.l.b16 %v859
        %v1910 = vunpack.c.h.b16 %v859
        %v1911 = vunpack.c.l.b16 %v860
        %v1912 = vunpack.c.h.b16 %v860
        %v1913 = vunpack.c.l.b16 %v861
        %v1914 = vunpack.c.h.b16 %v861
        %v1915 = vunpack.c.l.b16 %v862
        %v1916 = vunpack.c.h.b16 %v862
        %v1917 = vunpack.c.l.b16 %v863
        %v1918 = vunpack.c.h.b16 %v863
        %v1919 = vunpack.c.l.b16 %v864
        %v1920 = vunpack.c.h.b16 %v864
        %v1921 = vunpack.c.l.b16 %v865
        %v1922 = vunpack.c.h.b16 %v865
        %v1923 = vunpack.c.l.b16 %v866
        %v1924 = vunpack.c.h.b16 %v866
        %v1925 = vunpack.c.l.b16 %v867
        %v1926 = vunpack.c.h.b16 %v867
        %v1927 = vunpack.c.l.b16 %v868
        %v1928 = vunpack.c.h.b16 %v868
        %v1929 = vunpack.c.l.b16 %v869
        %v1930 = vunpack.c.h.b16 %v869
        %v1931 = vunpack.c.l.b16 %v870
        %v1932 = vunpack.c.h.b16 %v870
        %v1933 = vunpack.c.l.b16 %v871
        %v1934 = vunpack.c.h.b16 %v871
        %v1935 = vunpack.c.l.b16 %v872
        %v1936 = vunpack.c.h.b16 %v872
        %v1937 = vunpack.c.l.b16 %v873
        %v1938 = vunpack.c.h.b16 %v873
        %v1939 = vunpack.c.l.b16 %v874
        %v1940 = vunpack.c.h.b16 %v874
        %v1941 = vunpack.c.l.b16 %v875
        %v1942 = vunpack.c.h.b16 %v875
        %v1943 = vunpack.c.l.b16 %v876
        %v1944 = vunpack.c.h.b16 %v876
        %v1945 = vunpack.c.l.b16 %v877
        %v1946 = vunpack.c.h.b16 %v877
        %v1947 = vunpack.c.l.b16 %v878
        %v1948 = vunpack.c.h.b16 %v878
        %v1949 = vunpack.c.l.b16 %v879
        %v1950 = vunpack.c.h.b16 %v879
        %v1951 = vunpack.c.l.b16 %v880
        %v1952 = vunpack.c.h.b16 %v880
        %v1953 = vunpack.c.l.b16 %v881
        %v1954 = vunpack.c.h.b16 %v881
        %v1955 = vunpack.c.l.b16 %v882
        %v1956 = vunpack.c.h.b16 %v882
        %v1957 = vunpack.c.l.b16 %v883
        %v1958 = vunpack.c.h.b16 %v883
        %v1959 = vunpack.c.l.b16 %v884
        %v1960 = vunpack.c.h.b16 %v884
        %v1961 = vunpack.c.l.b16 %v885
        %v1962 = vunpack.c.h.b16 %v885
        %v1963 = vunpack.c.l.b16 %v886
        %v1964 = vunpack.c.h.b16 %v886
        %v1965 = vunpack.c.l.b16 %v887
        %v1966 = vunpack.c.h.b16 %v887
        %v1967 = vunpack.c.l.b16 %v888
        %v1968 = vunpack.c.h.b16 %v888
        %v1969 = vunpack.c.l.b16 %v889
        %v1970 = vunpack.c.h.b16 %v889
        %v1971 = vunpack.c.l.b16 %v890
        %v1972 = vunpack.c.h.b16 %v890
        %v1973 = vunpack.c.l.b16 %v891
        %v1974 = vunpack.c.h.b16 %v891
        %v1975 = vunpack.c.l.b16 %v892
        %v1976 = vunpack.c.h.b16 %v892
        %v1977 = vunpack.c.l.b16 %v893
        %v1978 = vunpack.c.h.b16 %v893
        %v1979 = vunpack.c.l.b16 %v894
        %v1980 = vunpack.c.h.b16 %v894
        %v1981 = vunpack.c.l.b16 %v895
        %v1982 = vunpack.c.h.b16 %v895
        %v1983 = vunpack.c.l.b16 %v896
        %v1984 = vunpack.c.h.b16 %v896
        %v1985 = vunpack.c.l.b16 %v897
        %v1986 = vunpack.c.h.b16 %v897
        %v1987 = vunpack.c.l.b16 %v898
        %v1988 = vunpack.c.h.b16 %v898
        %v1989 = vunpack.c.l.b16 %v899
        %v1990 = vunpack.c.h.b16 %v899
        %v1991 = vunpack.c.l.b16 %v900
        %v1992 = vunpack.c.h.b16 %v900
        %v1993 = vunpack.c.l.b16 %v901
        %v1994 = vunpack.c.h.b16 %v901
        %v1995 = vunpack.c.l.b16 %v902
        %v1996 = vunpack.c.h.b16 %v902
        %v1997 = vunpack.c.l.b16 %v903
        %v1998 = vunpack.c.h.b16 %v903
        %v1999 = vunpack.c.l.b16 %v904
        %v2000 = vunpack.c.h.b16 %v904
        %v2001 = vunpack.c.l.b16 %v905
        %v2002 = vunpack.c.h.b16 %v905
        %v2003 = vunpack.c.l.b16 %v906
        %v2004 = vunpack.c.h.b16 %v906
        %v2005 = vunpack.c.l.b16 %v907
        %v2006 = vunpack.c.h.b16 %v907
        %v2007 = vunpack.c.l.b16 %v908
        %v2008 = vunpack.c.h.b16 %v908
        %v2009 = vunpack.c.l.b16 %v909
        %v2010 = vunpack.c.h.b16 %v909
        %v2011 = vunpack.c.l.b16 %v910
        %v2012 = vunpack.c.h.b16 %v910
        %v2013 = vunpack.c.l.b16 %v911
        %v2014 = vunpack.c.h.b16 %v911
        %v2015 = vunpack.c.l.b16 %v912
        %v2016 = vunpack.c.h.b16 %v912
        %v2017 = vunpack.c.l.b16 %v913
        %v2018 = vunpack.c.h.b16 %v913
        %v2019 = vunpack.c.l.b16 %v914
        %v2020 = vunpack.c.h.b16 %v914
        %v2021 = vunpack.c.l.b16 %v915
        %v2022 = vunpack.c.h.b16 %v915
        %v2023 = vunpack.c.l.b16 %v916
        %v2024 = vunpack.c.h.b16 %v916
        %v2025 = vunpack.c.l.b16 %v917
        %v2026 = vunpack.c.h.b16 %v917
        %v2027 = vunpack.c.l.b16 %v918
        %v2028 = vunpack.c.h.b16 %v918
        %v2029 = vunpack.c.l.b16 %v919
        %v2030 = vunpack.c.h.b16 %v919
        %v2031 = vunpack.c.l.b16 %v920
        %v2032 = vunpack.c.h.b16 %v920
        %v2033 = vunpack.c.l.b16 %v921
        %v2034 = vunpack.c.h.b16 %v921
        %v2035 = vunpack.c.l.b16 %v922
        %v2036 = vunpack.c.h.b16 %v922
        %v2037 = vunpack.c.l.b16 %v923
        %v2038 = vunpack.c.h.b16 %v923
        %v2039 = vunpack.c.l.b16 %v924
        %v2040 = vunpack.c.h.b16 %v924
        %v2041 = vunpack.c.l.b16 %v925
        %v2042 = vunpack.c.h.b16 %v925
        %v2043 = vunpack.c.l.b16 %v926
        %v2044 = vunpack.c.h.b16 %v926
        %v2045 = vunpack.c.l.b16 %v927
        %v2046 = vunpack.c.h.b16 %v927
        %v2047 = vunpack.c.l.b16 %v928
        %v2048 = vunpack.c.h.b16 %v928
        %v2049 = vunpack.c.l.b16 %v929
        %v2050 = vunpack.c.h.b16 %v929
        %v2051 = vunpack.c.l.b16 %v930
        %v2052 = vunpack.c.h.b16 %v930
        %v2053 = vunpack.c.l.b16 %v931
        %v2054 = vunpack.c.h.b16 %v931
        %v2055 = vunpack.c.l.b16 %v932
        %v2056 = vunpack.c.h.b16 %v932
        %v2057 = vunpack.c.l.b16 %v933
        %v2058 = vunpack.c.h.b16 %v933
        %v2059 = vunpack.c.l.b16 %v934
        %v2060 = vunpack.c.h.b16 %v934
        %v2061 = vunpack.c.l.b16 %v935
        %v2062 = vunpack.c.h.b16 %v935
        %v2063 = vunpack.c.l.b16 %v936
        %v2064 = vunpack.c.h.b16 %v936
        %v2065 = vunpack.c.l.b16 %v937
        %v2066 = vunpack.c.h.b16 %v937
        %v2067 = vunpack.c.l.b16 %v938
        %v2068 = vunpack.c.h.b16 %v938
        %v2069 = vunpack.c.l.b16 %v939
        %v2070 = vunpack.c.h.b16 %v939
        %v2071 = vunpack.c.l.b16 %v940
        %v2072 = vunpack.c.h.b16 %v940
        %v2073 = vunpack.c.l.b16 %v941
        %v2074 = vunpack.c.h.b16 %v941
        %v2075 = vunpack.c.l.b16 %v942
        %v2076 = vunpack.c.h.b16 %v942
        %v2077 = vunpack.c.l.b16 %v943
        %v2078 = vunpack.c.h.b16 %v943
        %v2079 = vunpack.c.l.b16 %v944
        %v2080 = vunpack.c.h.b16 %v944
        %v2081 = vunpack.c.l.b16 %v945
        %v2082 = vunpack.c.h.b16 %v945
        %v2083 = vunpack.c.l.b16 %v946
        %v2084 = vunpack.c.h.b16 %v946
        %v2085 = vunpack.c.l.b16 %v947
        %v2086 = vunpack.c.h.b16 %v947
        %v2087 = vunpack.c.l.b16 %v948
        %v2088 = vunpack.c.h.b16 %v948
        %v2089 = vunpack.c.l.b16 %v949
        %v2090 = vunpack.c.h.b16 %v949
        %v2091 = vunpack.c.l.b16 %v950
        %v2092 = vunpack.c.h.b16 %v950
        %v2093 = vunpack.c.l.b16 %v951
        %v2094 = vunpack.c.h.b16 %v951
        %v2095 = vunpack.c.l.b16 %v952
        %v2096 = vunpack.c.h.b16 %v952
        %v2097 = vunpack.c.l.b16 %v953
        %v2098 = vunpack.c.h.b16 %v953
        %v2099 = vunpack.c.l.b16 %v954
        %v2100 = vunpack.c.h.b16 %v954
        %v2101 = vunpack.c.l.b16 %v955
        %v2102 = vunpack.c.h.b16 %v955
        %v2103 = vunpack.c.l.b16 %v956
        %v2104 = vunpack.c.h.b16 %v956
        %v2105 = vunpack.c.l.b16 %v957
        %v2106 = vunpack.c.h.b16 %v957
        %v2107 = vunpack.c.l.b16 %v958
        %v2108 = vunpack.c.h.b16 %v958
        %v2109 = vunpack.c.l.b16 %v959
        %v2110 = vunpack.c.h.b16 %v959
        %v2111 = vunpack.c.l.b16 %v960
        %v2112 = vunpack.c.h.b16 %v960
        %v2113 = vunpack.c.l.b16 %v961
        %v2114 = vunpack.c.h.b16 %v961
        %v2115 = vunpack.c.l.b16 %v962
        %v2116 = vunpack.c.h.b16 %v962
        %v2117 = vunpack.c.l.b16 %v963
        %v2118 = vunpack.c.h.b16 %v963
        %v2119 = vunpack.c.l.b16 %v964
        %v2120 = vunpack.c.h.b16 %v964
        %v2121 = vunpack.c.l.b16 %v965
        %v2122 = vunpack.c.h.b16 %v965
        %v2123 = vunpack.c.l.b16 %v966
        %v2124 = vunpack.c.h.b16 %v966
        %v2125 = vunpack.c.l.b16 %v967
        %v2126 = vunpack.c.h.b16 %v967
        %v2127 = vunpack.c.l.b16 %v968
        %v2128 = vunpack.c.h.b16 %v968
        %v2129 = vunpack.c.l.b16 %v969
        %v2130 = vunpack.c.h.b16 %v969
        %v2131 = vunpack.c.l.b16 %v970
        %v2132 = vunpack.c.h.b16 %v970
        %v2133 = vunpack.c.l.b16 %v971
        %v2134 = vunpack.c.h.b16 %v971
        %v2135 = vunpack.c.l.b16 %v972
        %v2136 = vunpack.c.h.b16 %v972
        %v2137 = vunpack.c.l.b16 %v973
        %v2138 = vunpack.c.h.b16 %v973
        %v2139 = vunpack.c.l.b16 %v974
        %v2140 = vunpack.c.h.b16 %v974
        %v2141 = vunpack.c.l.b16 %v975
        %v2142 = vunpack.c.h.b16 %v975
        %v2143 = vunpack.c.l.b16 %v976
        %v2144 = vunpack.c.h.b16 %v976
        %v2145 = vunpack.c.l.b16 %v977
        %v2146 = vunpack.c.h.b16 %v977
        %v2147 = vunpack.c.l.b16 %v978
        %v2148 = vunpack.c.h.b16 %v978
        %v2149 = vunpack.c.l.b16 %v979
        %v2150 = vunpack.c.h.b16 %v979
        %v2151 = vunpack.c.l.b16 %v980
        %v2152 = vunpack.c.h.b16 %v980
        %v2153 = vunpack.c.l.b16 %v981
        %v2154 = vunpack.c.h.b16 %v981
        %v2155 = vunpack.c.l.b16 %v982
        %v2156 = vunpack.c.h.b16 %v982
        %v2157 = vunpack.c.l.b16 %v983
        %v2158 = vunpack.c.h.b16 %v983
        %v2159 = vunpack.c.l.b16 %v984
        %v2160 = vunpack.c.h.b16 %v984
        %v2161 = vunpack.c.l.b16 %v985
        %v2162 = vunpack.c.h.b16 %v985
        %v2163 = vunpack.c.l.b16 %v986
        %v2164 = vunpack.c.h.b16 %v986
        %v2165 = vunpack.c.l.b16 %v987
        %v2166 = vunpack.c.h.b16 %v987
        %v2167 = vunpack.c.l.b16 %v988
        %v2168 = vunpack.c.h.b16 %v988
        %v2169 = vunpack.c.l.b16 %v989
        %v2170 = vunpack.c.h.b16 %v989
        %v2171 = vunpack.c.l.b16 %v990
        %v2172 = vunpack.c.h.b16 %v990
        %v2173 = vunpack.c.l.b16 %v991
        %v2174 = vunpack.c.h.b16 %v991
        %v2175 = vunpack.c.l.b16 %v992
        %v2176 = vunpack.c.h.b16 %v992
        %v2177 = vunpack.c.l.b16 %v993
        %v2178 = vunpack.c.h.b16 %v993
        %v2179 = vunpack.c.l.b16 %v994
        %v2180 = vunpack.c.h.b16 %v994
        %v2181 = vunpack.c.l.b16 %v995
        %v2182 = vunpack.c.h.b16 %v995
        %v2183 = vunpack.c.l.b16 %v996
        %v2184 = vunpack.c.h.b16 %v996
        %v2185 = vunpack.c.l.b16 %v997
        %v2186 = vunpack.c.h.b16 %v997
        %v2187 = vunpack.c.l.b16 %v998
        %v2188 = vunpack.c.h.b16 %v998
        %v2189 = vunpack.c.l.b16 %v999
        %v2190 = vunpack.c.h.b16 %v999
        %v2191 = vunpack.c.l.b16 %v1000
        %v2192 = vunpack.c.h.b16 %v1000
        %v2193 = vunpack.c.l.b16 %v1001
        %v2194 = vunpack.c.h.b16 %v1001
        %v2195 = vunpack.c.l.b16 %v1002
        %v2196 = vunpack.c.h.b16 %v1002
        %v2197 = vunpack.c.l.b16 %v1003
        %v2198 = vunpack.c.h.b16 %v1003
        %v2199 = vunpack.c.l.b16 %v1004
        %v2200 = vunpack.c.h.b16 %v1004
        %v2201 = vunpack.c.l.b16 %v1005
        %v2202 = vunpack.c.h.b16 %v1005
        %v2203 = vunpack.c.l.b16 %v1006
        %v2204 = vunpack.c.h.b16 %v1006
        %v2205 = vunpack.c.l.b16 %v1007
        %v2206 = vunpack.c.h.b16 %v1007
        %v2207 = vunpack.c.l.b16 %v1008
        %v2208 = vunpack.c.h.b16 %v1008
        %v2209 = vunpack.c.l.b16 %v1009
        %v2210 = vunpack.c.h.b16 %v1009
        %v2211 = vunpack.c.l.b16 %v1010
        %v2212 = vunpack.c.h.b16 %v1010
        %v2213 = vunpack.c.l.b16 %v1011
        %v2214 = vunpack.c.h.b16 %v1011
        %v2215 = vunpack.c.l.b16 %v1012
        %v2216 = vunpack.c.h.b16 %v1012
        %v2217 = vunpack.c.l.b16 %v1013
        %v2218 = vunpack.c.h.b16 %v1013
        %v2219 = vunpack.c.l.b16 %v1014
        %v2220 = vunpack.c.h.b16 %v1014
        %v2221 = vunpack.c.l.b16 %v1015
        %v2222 = vunpack.c.h.b16 %v1015
        %v2223 = vunpack.c.l.b16 %v1016
        %v2224 = vunpack.c.h.b16 %v1016
        %v2225 = vunpack.c.l.b16 %v1017
        %v2226 = vunpack.c.h.b16 %v1017
        %v2227 = vunpack.c.l.b16 %v1018
        %v2228 = vunpack.c.h.b16 %v1018
        %v2229 = vunpack.c.l.b16 %v1019
        %v2230 = vunpack.c.h.b16 %v1019
        %v2231 = vunpack.c.l.b16 %v1020
        %v2232 = vunpack.c.h.b16 %v1020
        %v2233 = vunpack.c.l.b16 %v1021
        %v2234 = vunpack.c.h.b16 %v1021
        %v2235 = vunpack.c.l.b16 %v1022
        %v2236 = vunpack.c.h.b16 %v1022
        %v2237 = vunpack.c.l.b16 %v1023
        %v2238 = vunpack.c.h.b16 %v1023
        %v2239 = vunpack.c.l.b16 %v1024
        %v2240 = vunpack.c.h.b16 %v1024
        %v2241 = vunpack.c.l.b16 %v1025
        %v2242 = vunpack.c.h.b16 %v1025
        %v2243 = vunpack.c.l.b16 %v1026
        %v2244 = vunpack.c.h.b16 %v1026
        %v2245 = vunpack.c.l.b16 %v1027
        %v2246 = vunpack.c.h.b16 %v1027
        %v2247 = vunpack.c.l.b16 %v1028
        %v2248 = vunpack.c.h.b16 %v1028
        %v2249 = vunpack.c.l.b16 %v1029
        %v2250 = vunpack.c.h.b16 %v1029
        %v2251 = vunpack.c.l.b16 %v1030
        %v2252 = vunpack.c.h.b16 %v1030
        %v2253 = vunpack.c.l.b16 %v1031
        %v2254 = vunpack.c.h.b16 %v1031
        %v2255 = vunpack.c.l.b16 %v1032
        %v2256 = vunpack.c.h.b16 %v1032
        %v2257 = vunpack.c.l.b16 %v1033
        %v2258 = vunpack.c.h.b16 %v1033
        %v2259 = vunpack.c.l.b16 %v1034
        %v2260 = vunpack.c.h.b16 %v1034
        %v2261 = vunpack.c.l.b16 %v1035
        %v2262 = vunpack.c.h.b16 %v1035
        %v2263 = vunpack.c.l.b16 %v1036
        %v2264 = vunpack.c.h.b16 %v1036
        %v2265 = vunpack.c.l.b16 %v1037
        %v2266 = vunpack.c.h.b16 %v1037
        %v2267 = vunpack.c.l.b16 %v1038
        %v2268 = vunpack.c.h.b16 %v1038
        %v2269 = vunpack.c.l.b16 %v1039
        %v2270 = vunpack.c.h.b16 %v1039
        %v2271 = vunpack.c.l.b16 %v1040
        %v2272 = vunpack.c.h.b16 %v1040
        %v2273 = vunpack.c.l.b16 %v1041
        %v2274 = vunpack.c.h.b16 %v1041
        %v2275 = vunpack.c.l.b16 %v1042
        %v2276 = vunpack.c.h.b16 %v1042
        %v2277 = vunpack.c.l.b16 %v1043
        %v2278 = vunpack.c.h.b16 %v1043
        %v2279 = vunpack.c.l.b16 %v1044
        %v2280 = vunpack.c.h.b16 %v1044
        %v2281 = vunpack.c.l.b16 %v1045
        %v2282 = vunpack.c.h.b16 %v1045
        %v2283 = vunpack.c.l.b16 %v1046
        %v2284 = vunpack.c.h.b16 %v1046
        %v2285 = vunpack.c.l.b16 %v1047
        %v2286 = vunpack.c.h.b16 %v1047
        %v2287 = vunpack.c.l.b16 %v1048
        %v2288 = vunpack.c.h.b16 %v1048
        %v2289 = vunpack.c.l.b16 %v1049
        %v2290 = vunpack.c.h.b16 %v1049
        %v2291 = vunpack.c.l.b16 %v1050
        %v2292 = vunpack.c.h.b16 %v1050
        %v2293 = vunpack.c.l.b16 %v1051
        %v2294 = vunpack.c.h.b16 %v1051
        %v2295 = vunpack.c.l.b16 %v1052
        %v2296 = vunpack.c.h.b16 %v1052
        %v2297 = vunpack.c.l.b16 %v1053
        %v2298 = vunpack.c.h.b16 %v1053
        %v2299 = vunpack.c.l.b16 %v1054
        %v2300 = vunpack.c.h.b16 %v1054
        %v2301 = vunpack.c.l.b16 %v1055
        %v2302 = vunpack.c.h.b16 %v1055
        %v2303 = vunpack.c.l.b16 %v1056
        %v2304 = vunpack.c.h.b16 %v1056
        %v2305 = vunpack.c.l.b16 %v1057
        %v2306 = vunpack.c.h.b16 %v1057
        %v2307 = vunpack.c.l.b16 %v1058
        %v2308 = vunpack.c.h.b16 %v1058
        %v2309 = vunpack.c.l.b16 %v1059
        %v2310 = vunpack.c.h.b16 %v1059
        %v2311 = vunpack.c.l.b16 %v1060
        %v2312 = vunpack.c.h.b16 %v1060
        %v2313 = vunpack.c.l.b16 %v1061
        %v2314 = vunpack.c.h.b16 %v1061
        %v2315 = vunpack.c.l.b16 %v1062
        %v2316 = vunpack.c.h.b16 %v1062
        %v2317 = vunpack.c.l.b16 %v1063
        %v2318 = vunpack.c.h.b16 %v1063
        %v2319 = vunpack.c.l.b16 %v1064
        %v2320 = vunpack.c.h.b16 %v1064
        %v2321 = vunpack.c.l.b16 %v1065
        %v2322 = vunpack.c.h.b16 %v1065
        %v2323 = vunpack.c.l.b16 %v1066
        %v2324 = vunpack.c.h.b16 %v1066
        %v2325 = vunpack.c.l.b16 %v1067
        %v2326 = vunpack.c.h.b16 %v1067
        %v2327 = vunpack.c.l.b16 %v1068
        %v2328 = vunpack.c.h.b16 %v1068
        %v2329 = vunpack.c.l.b16 %v1069
        %v2330 = vunpack.c.h.b16 %v1069
        %v2331 = vunpack.c.l.b16 %v1070
        %v2332 = vunpack.c.h.b16 %v1070
        %v2333 = vunpack.c.l.b16 %v1071
        %v2334 = vunpack.c.h.b16 %v1071
        %v2335 = vunpack.c.l.b16 %v1072
        %v2336 = vunpack.c.h.b16 %v1072
        %v2337 = vunpack.c.l.b16 %v1073
        %v2338 = vunpack.c.h.b16 %v1073
        %v2339 = vunpack.c.l.b16 %v1074
        %v2340 = vunpack.c.h.b16 %v1074
        %v2341 = vunpack.c.l.b16 %v1075
        %v2342 = vunpack.c.h.b16 %v1075
        %v2343 = vunpack.c.l.b16 %v1076
        %v2344 = vunpack.c.h.b16 %v1076
        %v2345 = vunpack.c.l.b16 %v1077
        %v2346 = vunpack.c.h.b16 %v1077
        %v2347 = vunpack.c.l.b16 %v1078
        %v2348 = vunpack.c.h.b16 %v1078
        %v2349 = vunpack.c.l.b16 %v1079
        %v2350 = vunpack.c.h.b16 %v1079
        %v2351 = vunpack.c.l.b16 %v1080
        %v2352 = vunpack.c.h.b16 %v1080
        %v2353 = vunpack.c.l.b16 %v1081
        %v2354 = vunpack.c.h.b16 %v1081
        %v2355 = vunpack.c.l.b16 %v1082
        %v2356 = vunpack.c.h.b16 %v1082
        %v2357 = vunpack.c.l.b16 %v1083
        %v2358 = vunpack.c.h.b16 %v1083
        %v2359 = vunpack.c.l.b16 %v1084
        %v2360 = vunpack.c.h.b16 %v1084
        %v2361 = vunpack.c.l.b16 %v1085
        %v2362 = vunpack.c.h.b16 %v1085
        %v2363 = vunpack.c.l.b16 %v1086
        %v2364 = vunpack.c.h.b16 %v1086
        %v2365 = vunpack.c.l.b16 %v1087
        %v2366 = vunpack.c.h.b16 %v1087
        %v2367 = vunpack.c.l.b16 %v1088
        %v2368 = vunpack.c.h.b16 %v1088
        %v2369 = vunpack.c.l.b16 %v1089
        %v2370 = vunpack.c.h.b16 %v1089
        %v2371 = vunpack.c.l.b16 %v1090
        %v2372 = vunpack.c.h.b16 %v1090
        %v2373 = vunpack.c.l.b16 %v1091
        %v2374 = vunpack.c.h.b16 %v1091
        %v2375 = vunpack.c.l.b16 %v1092
        %v2376 = vunpack.c.h.b16 %v1092
        %v2377 = vunpack.c.l.b16 %v1093
        %v2378 = vunpack.c.h.b16 %v1093
        %v2379 = vunpack.c.l.b16 %v1094
        %v2380 = vunpack.c.h.b16 %v1094
        %v2381 = vunpack.c.l.b16 %v1095
        %v2382 = vunpack.c.h.b16 %v1095
        %v2383 = vunpack.c.l.b16 %v1096
        %v2384 = vunpack.c.h.b16 %v1096
        %v2385 = vunpack.c.l.b16 %v1097
        %v2386 = vunpack.c.h.b16 %v1097
        %v2387 = vunpack.c.l.b16 %v1098
        %v2388 = vunpack.c.h.b16 %v1098
        %v2389 = vunpack.c.l.b16 %v1099
        %v2390 = vunpack.c.h.b16 %v1099
        %v2391 = vunpack.c.l.b16 %v1100
        %v2392 = vunpack.c.h.b16 %v1100
        %v2393 = vunpack.c.l.b16 %v1101
        %v2394 = vunpack.c.h.b16 %v1101
        %v2395 = vunpack.c.l.b16 %v1102
        %v2396 = vunpack.c.h.b16 %v1102
        %v2397 = vunpack.c.l.b16 %v1103
        %v2398 = vunpack.c.h.b16 %v1103
        %v2399 = vunpack.c.l.b16 %v1104
        %v2400 = vunpack.c.h.b16 %v1104
        %v2401 = vunpack.c.l.b16 %v1105
        %v2402 = vunpack.c.h.b16 %v1105
        %v2403 = vunpack.c.l.b16 %v1106
        %v2404 = vunpack.c.h.b16 %v1106
        %v2405 = vunpack.c.l.b16 %v1107
        %v2406 = vunpack.c.h.b16 %v1107
        %v2407 = vunpack.c.l.b16 %v1108
        %v2408 = vunpack.c.h.b16 %v1108
        %v2409 = vunpack.c.l.b16 %v1109
        %v2410 = vunpack.c.h.b16 %v1109
        %v2411 = vunpack.c.l.b16 %v1110
        %v2412 = vunpack.c.h.b16 %v1110
        %v2413 = vunpack.c.l.b16 %v1111
        %v2414 = vunpack.c.h.b16 %v1111
        %v2415 = vunpack.c.l.b16 %v1112
        %v2416 = vunpack.c.h.b16 %v1112
        %v2417 = vunpack.c.l.b16 %v1113
        %v2418 = vunpack.c.h.b16 %v1113
        %v2419 = vunpack.c.l.b16 %v1114
        %v2420 = vunpack.c.h.b16 %v1114
        %v2421 = vunpack.c.l.b16 %v1115
        %v2422 = vunpack.c.h.b16 %v1115
        %v2423 = vunpack.c.l.b16 %v1116
        %v2424 = vunpack.c.h.b16 %v1116
        %v2425 = vunpack.c.l.b16 %v1117
        %v2426 = vunpack.c.h.b16 %v1117
        %v2427 = vunpack.c.l.b16 %v1118
        %v2428 = vunpack.c.h.b16 %v1118
        %v2429 = vunpack.c.l.b16 %v1119
        %v2430 = vunpack.c.h.b16 %v1119
        %v2431 = vunpack.c.l.b16 %v1120
        %v2432 = vunpack.c.h.b16 %v1120
        %v2433 = vunpack.c.l.b16 %v1121
        %v2434 = vunpack.c.h.b16 %v1121
        %v2435 = vunpack.c.l.b16 %v1122
        %v2436 = vunpack.c.h.b16 %v1122
        %v2437 = vunpack.c.l.b16 %v1123
        %v2438 = vunpack.c.h.b16 %v1123
        %v2439 = vunpack.c.l.b16 %v1124
        %v2440 = vunpack.c.h.b16 %v1124
        %v2441 = vunpack.c.l.b16 %v1125
        %v2442 = vunpack.c.h.b16 %v1125
        %v2443 = vunpack.c.l.b16 %v1126
        %v2444 = vunpack.c.h.b16 %v1126
        %v2445 = vunpack.c.l.b16 %v1127
        %v2446 = vunpack.c.h.b16 %v1127
        %v2447 = vunpack.c.l.b16 %v1128
        %v2448 = vunpack.c.h.b16 %v1128
        %v2449 = vunpack.c.l.b16 %v1129
        %v2450 = vunpack.c.h.b16 %v1129
        %v2451 = vunpack.c.l.b16 %v1130
        %v2452 = vunpack.c.h.b16 %v1130
        %v2453 = vunpack.c.l.b16 %v1131
        %v2454 = vunpack.c.h.b16 %v1131
        %v2455 = vunpack.c.l.b16 %v1132
        %v2456 = vunpack.c.h.b16 %v1132
        %v2457 = vunpack.c.l.b16 %v1133
        %v2458 = vunpack.c.h.b16 %v1133
        %v2459 = vunpack.c.l.b16 %v1134
        %v2460 = vunpack.c.h.b16 %v1134
        %v2461 = vunpack.c.l.b16 %v1135
        %v2462 = vunpack.c.h.b16 %v1135
        %v2463 = vunpack.c.l.b16 %v1136
        %v2464 = vunpack.c.h.b16 %v1136
        %v2465 = vunpack.c.l.b16 %v1137
        %v2466 = vunpack.c.h.b16 %v1137
        %v2467 = vunpack.c.l.b16 %v1138
        %v2468 = vunpack.c.h.b16 %v1138
        %v2469 = vunpack.c.l.b16 %v1139
        %v2470 = vunpack.c.h.b16 %v1139
        %v2471 = vunpack.c.l.b16 %v1140
        %v2472 = vunpack.c.h.b16 %v1140
        %v2473 = vunpack.c.l.b16 %v1141
        %v2474 = vunpack.c.h.b16 %v1141
        %v2475 = vunpack.c.l.b16 %v1142
        %v2476 = vunpack.c.h.b16 %v1142
        %v2477 = vunpack.c.l.b16 %v1143
        %v2478 = vunpack.c.h.b16 %v1143
        %v2479 = vunpack.c.l.b16 %v1144
        %v2480 = vunpack.c.h.b16 %v1144
        %v2481 = vunpack.c.l.b16 %v1145
        %v2482 = vunpack.c.h.b16 %v1145
        %v2483 = vunpack.c.l.b16 %v1146
        %v2484 = vunpack.c.h.b16 %v1146
        %v2485 = vunpack.c.l.b16 %v1147
        %v2486 = vunpack.c.h.b16 %v1147
        %v2487 = vunpack.c.l.b16 %v1148
        %v2488 = vunpack.c.h.b16 %v1148
        %v2489 = vunpack.c.l.b16 %v1149
        %v2490 = vunpack.c.h.b16 %v1149
        %v2491 = vunpack.c.l.b16 %v1150
        %v2492 = vunpack.c.h.b16 %v1150
        %v2493 = vunpack.c.l.b16 %v1151
        %v2494 = vunpack.c.h.b16 %v1151
        %v2495 = vunpack.c.l.b16 %v1152
        %v2496 = vunpack.c.h.b16 %v1152
        %v2497 = vunpack.c.l.b16 %v1153
        %v2498 = vunpack.c.h.b16 %v1153
        %v2499 = vunpack.c.l.b16 %v1154
        %v2500 = vunpack.c.h.b16 %v1154
        %v2501 = vunpack.c.l.b16 %v1155
        %v2502 = vunpack.c.h.b16 %v1155
        %v2503 = vunpack.c.l.b16 %v1156
        %v2504 = vunpack.c.h.b16 %v1156
        %v2505 = vunpack.c.l.b16 %v1157
        %v2506 = vunpack.c.h.b16 %v1157
        %v2507 = vunpack.c.l.b16 %v1158
        %v2508 = vunpack.c.h.b16 %v1158
        %v2509 = vunpack.c.l.b16 %v1159
        %v2510 = vunpack.c.h.b16 %v1159
        %v2511 = vunpack.c.l.b16 %v1160
        %v2512 = vunpack.c.h.b16 %v1160
        %v2513 = vunpack.c.l.b16 %v1161
        %v2514 = vunpack.c.h.b16 %v1161
        %v2515 = vunpack.c.l.b16 %v1162
        %v2516 = vunpack.c.h.b16 %v1162
        %v2517 = vunpack.c.l.b16 %v1163
        %v2518 = vunpack.c.h.b16 %v1163
        %v2519 = vunpack.c.l.b16 %v1164
        %v2520 = vunpack.c.h.b16 %v1164
        %v2521 = vunpack.c.l.b16 %v1165
        %v2522 = vunpack.c.h.b16 %v1165
        %v2523 = vunpack.c.l.b16 %v1166
        %v2524 = vunpack.c.h.b16 %v1166
        %v2525 = vunpack.c.l.b16 %v1167
        %v2526 = vunpack.c.h.b16 %v1167
        %v2527 = vunpack.c.l.b16 %v1168
        %v2528 = vunpack.c.h.b16 %v1168
        %v2529 = vunpack.c.l.b16 %v1169
        %v2530 = vunpack.c.h.b16 %v1169
        %v2531 = vunpack.c.l.b16 %v1170
        %v2532 = vunpack.c.h.b16 %v1170
        %v2533 = vunpack.c.l.b16 %v1171
        %v2534 = vunpack.c.h.b16 %v1171
        %v2535 = vunpack.c.l.b16 %v1172
        %v2536 = vunpack.c.h.b16 %v1172
        %v2537 = vunpack.c.l.b16 %v1173
        %v2538 = vunpack.c.h.b16 %v1173
        %v2539 = vunpack.c.l.b16 %v1174
        %v2540 = vunpack.c.h.b16 %v1174
        %v2541 = vunpack.c.l.b16 %v1175
        %v2542 = vunpack.c.h.b16 %v1175
        %v2543 = vunpack.c.l.b16 %v1176
        %v2544 = vunpack.c.h.b16 %v1176
        %v2545 = vunpack.c.l.b16 %v1177
        %v2546 = vunpack.c.h.b16 %v1177
        %v2547 = vunpack.c.l.b16 %v1178
        %v2548 = vunpack.c.h.b16 %v1178
        %v2549 = vunpack.c.l.b16 %v1179
        %v2550 = vunpack.c.h.b16 %v1179
        %v2551 = vunpack.c.l.b16 %v1180
        %v2552 = vunpack.c.h.b16 %v1180
        %v2553 = vunpack.c.l.b16 %v1181
        %v2554 = vunpack.c.h.b16 %v1181
        %v2555 = vunpack.c.l.b16 %v1182
        %v2556 = vunpack.c.h.b16 %v1182
        %v2557 = vunpack.c.l.b16 %v1183
        %v2558 = vunpack.c.h.b16 %v1183
        %v2559 = vunpack.c.l.b16 %v1184
        %v2560 = vunpack.c.h.b16 %v1184
        %v2561 = vunpack.c.l.b16 %v1185
        %v2562 = vunpack.c.h.b16 %v1185
        %v2563 = vunpack.c.l.b16 %v1186
        %v2564 = vunpack.c.h.b16 %v1186
        %v2565 = vunpack.c.l.b16 %v1187
        %v2566 = vunpack.c.h.b16 %v1187
        %v2567 = vunpack.c.l.b16 %v1188
        %v2568 = vunpack.c.h.b16 %v1188
        %v2569 = vunpack.c.l.b16 %v1189
        %v2570 = vunpack.c.h.b16 %v1189
        %v2571 = vunpack.c.l.b16 %v1190
        %v2572 = vunpack.c.h.b16 %v1190
        %v2573 = vunpack.c.l.b16 %v1191
        %v2574 = vunpack.c.h.b16 %v1191
        %v2575 = vunpack.c.l.b16 %v1192
        %v2576 = vunpack.c.h.b16 %v1192
        %v2577 = vunpack.c.l.b16 %v1193
        %v2578 = vunpack.c.h.b16 %v1193
        %v2579 = vunpack.c.l.b16 %v1194
        %v2580 = vunpack.c.h.b16 %v1194
        %v2581 = vunpack.c.l.b16 %v1195
        %v2582 = vunpack.c.h.b16 %v1195
        %v2583 = vunpack.c.l.b16 %v1196
        %v2584 = vunpack.c.h.b16 %v1196
        %v2585 = vunpack.c.l.b16 %v1197
        %v2586 = vunpack.c.h.b16 %v1197
        %v2587 = vunpack.c.l.b16 %v1198
        %v2588 = vunpack.c.h.b16 %v1198
        %v2589 = vunpack.c.l.b16 %v1199
        %v2590 = vunpack.c.h.b16 %v1199
        %v2591 = vunpack.c.l.b16 %v1200
        %v2592 = vunpack.c.h.b16 %v1200
        %v2593 = vunpack.c.l.b16 %v1201
        %v2594 = vunpack.c.h.b16 %v1201
        %v2595 = vunpack.c.l.b16 %v1202
        %v2596 = vunpack.c.h.b16 %v1202
        %v2597 = vunpack.c.l.b16 %v1203
        %v2598 = vunpack.c.h.b16 %v1203
        %v2599 = vunpack.c.l.b16 %v1204
        %v2600 = vunpack.c.h.b16 %v1204
        %v2601 = vunpack.c.l.b16 %v1205
        %v2602 = vunpack.c.h.b16 %v1205
        %v2603 = vunpack.c.l.b16 %v1206
        %v2604 = vunpack.c.h.b16 %v1206
        %v2605 = vunpack.c.l.b16 %v1207
        %v2606 = vunpack.c.h.b16 %v1207
        %v2607 = vunpack.c.l.b16 %v1208
        %v2608 = vunpack.c.h.b16 %v1208
        %v2609 = vunpack.c.l.b16 %v1209
        %v2610 = vunpack.c.h.b16 %v1209
        %v2611 = vunpack.c.l.b16 %v1210
        %v2612 = vunpack.c.h.b16 %v1210
        %v2613 = vunpack.c.l.b16 %v1211
        %v2614 = vunpack.c.h.b16 %v1211
        %v2615 = vunpack.c.l.b16 %v1212
        %v2616 = vunpack.c.h.b16 %v1212
        %v2617 = vunpack.c.l.b16 %v1213
        %v2618 = vunpack.c.h.b16 %v1213
        %v2619 = vunpack.c.l.b16 %v1214
        %v2620 = vunpack.c.h.b16 %v1214
        %v2621 = vunpack.c.l.b16 %v1215
        %v2622 = vunpack.c.h.b16 %v1215
        %v2623 = vunpack.c.l.b16 %v1216
        %v2624 = vunpack.c.h.b16 %v1216
        %v2625 = vunpack.c.l.b16 %v1217
        %v2626 = vunpack.c.h.b16 %v1217
        %v2627 = vunpack.c.l.b16 %v1218
        %v2628 = vunpack.c.h.b16 %v1218
        %v2629 = vunpack.c.l.b16 %v1219
        %v2630 = vunpack.c.h.b16 %v1219
        %v2631 = vunpack.c.l.b16 %v1220
        %v2632 = vunpack.c.h.b16 %v1220
        %v2633 = vunpack.c.l.b16 %v1221
        %v2634 = vunpack.c.h.b16 %v1221
        %v2635 = vunpack.c.l.b16 %v1222
        %v2636 = vunpack.c.h.b16 %v1222
        %v2637 = vunpack.c.l.b16 %v1223
        %v2638 = vunpack.c.h.b16 %v1223
        %v2639 = vunpack.c.l.b16 %v1224
        %v2640 = vunpack.c.h.b16 %v1224
        %v2641 = vunpack.c.l.b16 %v1225
        %v2642 = vunpack.c.h.b16 %v1225
        %v2643 = vunpack.c.l.b16 %v1226
        %v2644 = vunpack.c.h.b16 %v1226
        %v2645 = vunpack.c.l.b16 %v1227
        %v2646 = vunpack.c.h.b16 %v1227
        %v2647 = vunpack.c.l.b16 %v1228
        %v2648 = vunpack.c.h.b16 %v1228
        %v2649 = vunpack.c.l.b16 %v1229
        %v2650 = vunpack.c.h.b16 %v1229
        %v2651 = vunpack.c.l.b16 %v1230
        %v2652 = vunpack.c.h.b16 %v1230
        %v2653 = vunpack.c.l.b16 %v1231
        %v2654 = vunpack.c.h.b16 %v1231
        %v2655 = vunpack.c.l.b16 %v1232
        %v2656 = vunpack.c.h.b16 %v1232
        %v2657 = vunpack.c.l.b16 %v1233
        %v2658 = vunpack.c.h.b16 %v1233
        %v2659 = vunpack.c.l.b16 %v1234
        %v2660 = vunpack.c.h.b16 %v1234
        %v2661 = vunpack.c.l.b16 %v1235
        %v2662 = vunpack.c.h.b16 %v1235
        %v2663 = vunpack.c.l.b16 %v1236
        %v2664 = vunpack.c.h.b16 %v1236
        %v2665 = vunpack.c.l.b16 %v1237
        %v2666 = vunpack.c.h.b16 %v1237
        %v2667 = vunpack.c.l.b16 %v1238
        %v2668 = vunpack.c.h.b16 %v1238
        %v2669 = vunpack.c.l.b16 %v1239
        %v2670 = vunpack.c.h.b16 %v1239
        %v2671 = vunpack.c.l.b16 %v1240
        %v2672 = vunpack.c.h.b16 %v1240
        %v2673 = vunpack.c.l.b16 %v1241
        %v2674 = vunpack.c.h.b16 %v1241
        %v2675 = vunpack.c.l.b16 %v1242
        %v2676 = vunpack.c.h.b16 %v1242
        %v2677 = vunpack.c.l.b16 %v1243
        %v2678 = vunpack.c.h.b16 %v1243
        %v2679 = vunpack.c.l.b16 %v1244
        %v2680 = vunpack.c.h.b16 %v1244
        %v2681 = vunpack.c.l.b16 %v1245
        %v2682 = vunpack.c.h.b16 %v1245
        %v2683 = vunpack.c.l.b16 %v1246
        %v2684 = vunpack.c.h.b16 %v1246
        %v2685 = vunpack.c.l.b16 %v1247
        %v2686 = vunpack.c.h.b16 %v1247
        %v2687 = vunpack.c.l.b16 %v1248
        %v2688 = vunpack.c.h.b16 %v1248
        %v2689 = vpack.c.b16 %v1899, %v1889
        %v2690 = vpack.c.b16 %v1900, %v1890
        %v2691 = vpack.c.b16 %v1901, %v1891
        %v2692 = vpack.c.b16 %v1902, %v1892
        %v2693 = vpack.c.b16 %v1903, %v1893
        %v2694 = vpack.c.b16 %v1904, %v1894
        %v2695 = vpack.c.b16 %v1905, %v1895
        %v2696 = vpack.c.b16 %v1906, %v1896
        %v2697 = vpack.c.b16 %v1907, %v1897
        %v2698 = vpack.c.b16 %v1908, %v1898
        %v2699 = vpack.c.b16 %v1919, %v1909
        %v2700 = vpack.c.b16 %v1920, %v1910
        %v2701 = vpack.c.b16 %v1921, %v1911
        %v2702 = vpack.c.b16 %v1922, %v1912
        %v2703 = vpack.c.b16 %v1923, %v1913
        %v2704 = vpack.c.b16 %v1924, %v1914
        %v2705 = vpack.c.b16 %v1925, %v1915
        %v2706 = vpack.c.b16 %v1926, %v1916
        %v2707 = vpack.c.b16 %v1927, %v1917
        %v2708 = vpack.c.b16 %v1928, %v1918
        %v2709 = vpack.c.b16 %v1939, %v1929
        %v2710 = vpack.c.b16 %v1940, %v1930
        %v2711 = vpack.c.b16 %v1941, %v1931
        %v2712 = vpack.c.b16 %v1942, %v1932
        %v2713 = vpack.c.b16 %v1943, %v1933
        %v2714 = vpack.c.b16 %v1944, %v1934
        %v2715 = vpack.c.b16 %v1945, %v1935
        %v2716 = vpack.c.b16 %v1946, %v1936
        %v2717 = vpack.c.b16 %v1947, %v1937
        %v2718 = vpack.c.b16 %v1948, %v1938
        %v2719 = vpack.c.b16 %v1959, %v1949
        %v2720 = vpack.c.b16 %v1960, %v1950
        %v2721 = vpack.c.b16 %v1961, %v1951
        %v2722 = vpack.c.b16 %v1962, %v1952
        %v2723 = vpack.c.b16 %v1963, %v1953
        %v2724 = vpack.c.b16 %v1964, %v1954
        %v2725 = vpack.c.b16 %v1965, %v1955
        %v2726 = vpack.c.b16 %v1966, %v1956
        %v2727 = vpack.c.b16 %v1967, %v1957
        %v2728 = vpack.c.b16 %v1968, %v1958
        %v2729 = vpack.c.b16 %v1979, %v1969
        %v2730 = vpack.c.b16 %v1980, %v1970
        %v2731 = vpack.c.b16 %v1981, %v1971
        %v2732 = vpack.c.b16 %v1982, %v1972
        %v2733 = vpack.c.b16 %v1983, %v1973
        %v2734 = vpack.c.b16 %v1984, %v1974
        %v2735 = vpack.c.b16 %v1985, %v1975
        %v2736 = vpack.c.b16 %v1986, %v1976
        %v2737 = vpack.c.b16 %v1987, %v1977
        %v2738 = vpack.c.b16 %v1988, %v1978
        %v2739 = vpack.c.b16 %v1999, %v1989
        %v2740 = vpack.c.b16 %v2000, %v1990
        %v2741 = vpack.c.b16 %v2001, %v1991
        %v2742 = vpack.c.b16 %v2002, %v1992
        %v2743 = vpack.c.b16 %v2003, %v1993
        %v2744 = vpack.c.b16 %v2004, %v1994
        %v2745 = vpack.c.b16 %v2005, %v1995
        %v2746 = vpack.c.b16 %v2006, %v1996
        %v2747 = vpack.c.b16 %v2007, %v1997
        %v2748 = vpack.c.b16 %v2008, %v1998
        %v2749 = vpack.c.b16 %v2019, %v2009
        %v2750 = vpack.c.b16 %v2020, %v2010
        %v2751 = vpack.c.b16 %v2021, %v2011
        %v2752 = vpack.c.b16 %v2022, %v2012
        %v2753 = vpack.c.b16 %v2023, %v2013
        %v2754 = vpack.c.b16 %v2024, %v2014
        %v2755 = vpack.c.b16 %v2025, %v2015
        %v2756 = vpack.c.b16 %v2026, %v2016
        %v2757 = vpack.c.b16 %v2027, %v2017
        %v2758 = vpack.c.b16 %v2028, %v2018
        %v2759 = vpack.c.b16 %v2039, %v2029
        %v2760 = vpack.c.b16 %v2040, %v2030
        %v2761 = vpack.c.b16 %v2041, %v2031
        %v2762 = vpack.c.b16 %v2042, %v2032
        %v2763 = vpack.c.b16 %v2043, %v2033
        %v2764 = vpack.c.b16 %v2044, %v2034
        %v2765 = vpack.c.b16 %v2045, %v2035
        %v2766 = vpack.c.b16 %v2046, %v2036
        %v2767 = vpack.c.b16 %v2047, %v2037
        %v2768 = vpack.c.b16 %v2048, %v2038
        %v2769 = vpack.c.b16 %v2059, %v2049
        %v2770 = vpack.c.b16 %v2060, %v2050
        %v2771 = vpack.c.b16 %v2061, %v2051
        %v2772 = vpack.c.b16 %v2062, %v2052
        %v2773 = vpack.c.b16 %v2063, %v2053
        %v2774 = vpack.c.b16 %v2064, %v2054
        %v2775 = vpack.c.b16 %v2065, %v2055
        %v2776 = vpack.c.b16 %v2066, %v2056
        %v2777 = vpack.c.b16 %v2067, %v2057
        %v2778 = vpack.c.b16 %v2068, %v2058
        %v2779 = vpack.c.b16 %v2079, %v2069
        %v2780 = vpack.c.b16 %v2080, %v2070
        %v2781 = vpack.c.b16 %v2081, %v2071
        %v2782 = vpack.c.b16 %v2082, %v2072
        %v2783 = vpack.c.b16 %v2083, %v2073
        %v2784 = vpack.c.b16 %v2084, %v2074
        %v2785 = vpack.c.b16 %v2085, %v2075
        %v2786 = vpack.c.b16 %v2086, %v2076
        %v2787 = vpack.c.b16 %v2087, %v2077
        %v2788 = vpack.c.b16 %v2088, %v2078
        %v2789 = vpack.c.b16 %v2099, %v2089
        %v2790 = vpack.c.b16 %v2100, %v2090
        %v2791 = vpack.c.b16 %v2101, %v2091
        %v2792 = vpack.c.b16 %v2102, %v2092
        %v2793 = vpack.c.b16 %v2103, %v2093
        %v2794 = vpack.c.b16 %v2104, %v2094
        %v2795 = vpack.c.b16 %v2105, %v2095
        %v2796 = vpack.c.b16 %v2106, %v2096
        %v2797 = vpack.c.b16 %v2107, %v2097
        %v2798 = vpack.c.b16 %v2108, %v2098
        %v2799 = vpack.c.b16 %v2119, %v2109
        %v2800 = vpack.c.b16 %v2120, %v2110
        %v2801 = vpack.c.b16 %v2121, %v2111
        %v2802 = vpack.c.b16 %v2122, %v2112
        %v2803 = vpack.c.b16 %v2123, %v2113
        %v2804 = vpack.c.b16 %v2124, %v2114
        %v2805 = vpack.c.b16 %v2125, %v2115
        %v2806 = vpack.c.b16 %v2126, %v2116
        %v2807 = vpack.c.b16 %v2127, %v2117
        %v2808 = vpack.c.b16 %v2128, %v2118
        %v2809 = vpack.c.b16 %v2139, %v2129
        %v2810 = vpack.c.b16 %v2140, %v2130
        %v2811 = vpack.c.b16 %v2141, %v2131
        %v2812 = vpack.c.b16 %v2142, %v2132
        %v2813 = vpack.c.b16 %v2143, %v2133
        %v2814 = vpack.c.b16 %v2144, %v2134
        %v2815 = vpack.c.b16 %v2145, %v2135
        %v2816 = vpack.c.b16 %v2146, %v2136
        %v2817 = vpack.c.b16 %v2147, %v2137
        %v2818 = vpack.c.b16 %v2148, %v2138
        %v2819 = vpack.c.b16 %v2159, %v2149
        %v2820 = vpack.c.b16 %v2160, %v2150
        %v2821 = vpack.c.b16 %v2161, %v2151
        %v2822 = vpack.c.b16 %v2162, %v2152
        %v2823 = vpack.c.b16 %v2163, %v2153
        %v2824 = vpack.c.b16 %v2164, %v2154
        %v2825 = vpack.c.b16 %v2165, %v2155
        %v2826 = vpack.c.b16 %v2166, %v2156
        %v2827 = vpack.c.b16 %v2167, %v2157
        %v2828 = vpack.c.b16 %v2168, %v2158
        %v2829 = vpack.c.b16 %v2179, %v2169
        %v2830 = vpack.c.b16 %v2180, %v2170
        %v2831 = vpack.c.b16 %v2181, %v2171
        %v2832 = vpack.c.b16 %v2182, %v2172
        %v2833 = vpack.c.b16 %v2183, %v2173
        %v2834 = vpack.c.b16 %v2184, %v2174
        %v2835 = vpack.c.b16 %v2185, %v2175
        %v2836 = vpack.c.b16 %v2186, %v2176
        %v2837 = vpack.c.b16 %v2187, %v2177
        %v2838 = vpack.c.b16 %v2188, %v2178
        %v2839 = vpack.c.b16 %v2199, %v2189
        %v2840 = vpack.c.b16 %v2200, %v2190
        %v2841 = vpack.c.b16 %v2201, %v2191
        %v2842 = vpack.c.b16 %v2202, %v2192
        %v2843 = vpack.c.b16 %v2203, %v2193
        %v2844 = vpack.c.b16 %v2204, %v2194
        %v2845 = vpack.c.b16 %v2205, %v2195
        %v2846 = vpack.c.b16 %v2206, %v2196
        %v2847 = vpack.c.b16 %v2207, %v2197
        %v2848 = vpack.c.b16 %v2208, %v2198
        %v2849 = vpack.c.b16 %v2219, %v2209
        %v2850 = vpack.c.b16 %v2220, %v2210
        %v2851 = vpack.c.b16 %v2221, %v2211
        %v2852 = vpack.c.b16 %v2222, %v2212
        %v2853 = vpack.c.b16 %v2223, %v2213
        %v2854 = vpack.c.b16 %v2224, %v2214
        %v2855 = vpack.c.b16 %v2225, %v2215
        %v2856 = vpack.c.b16 %v2226, %v2216
        %v2857 = vpack.c.b16 %v2227, %v2217
        %v2858 = vpack.c.b16 %v2228, %v2218
        %v2859 = vpack.c.b16 %v2239, %v2229
        %v2860 = vpack.c.b16 %v2240, %v2230
        %v2861 = vpack.c.b16 %v2241, %v2231
        %v2862 = vpack.c.b16 %v2242, %v2232
        %v2863 = vpack.c.b16 %v2243, %v2233
        %v2864 = vpack.c.b16 %v2244, %v2234
        %v2865 = vpack.c.b16 %v2245, %v2235
        %v2866 = vpack.c.b16 %v2246, %v2236
        %v2867 = vpack.c.b16 %v2247, %v2237
        %v2868 = vpack.c.b16 %v2248, %v2238
        %v2869 = vpack.c.b16 %v2259, %v2249
        %v2870 = vpack.c.b16 %v2260, %v2250
        %v2871 = vpack.c.b16 %v2261, %v2251
        %v2872 = vpack.c.b16 %v2262, %v2252
        %v2873 = vpack.c.b16 %v2263, %v2253
        %v2874 = vpack.c.b16 %v2264, %v2254
        %v2875 = vpack.c.b16 %v2265, %v2255
        %v2876 = vpack.c.b16 %v2266, %v2256
        %v2877 = vpack.c.b16 %v2267, %v2257
        %v2878 = vpack.c.b16 %v2268, %v2258
        %v2879 = vpack.c.b16 %v2279, %v2269
        %v2880 = vpack.c.b16 %v2280, %v2270
        %v2881 = vpack.c.b16 %v2281, %v2271
        %v2882 = vpack.c.b16 %v2282, %v2272
        %v2883 = vpack.c.b16 %v2283, %v2273
        %v2884 = vpack.c.b16 %v2284, %v2274
        %v2885 = vpack.c.b16 %v2285, %v2275
        %v2886 = vpack.c.b16 %v2286, %v2276
        %v2887 = vpack.c.b16 %v2287, %v2277
        %v2888 = vpack.c.b16 %v2288, %v2278
        %v2889 = vpack.c.b16 %v2299, %v2289
        %v2890 = vpack.c.b16 %v2300, %v2290
        %v2891 = vpack.c.b16 %v2301, %v2291
        %v2892 = vpack.c.b16 %v2302, %v2292
        %v2893 = vpack.c.b16 %v2303, %v2293
        %v2894 = vpack.c.b16 %v2304, %v2294
        %v2895 = vpack.c.b16 %v2305, %v2295
        %v2896 = vpack.c.b16 %v2306, %v2296
        %v2897 = vpack.c.b16 %v2307, %v2297
        %v2898 = vpack.c.b16 %v2308, %v2298
        %v2899 = vpack.c.b16 %v2319, %v2309
        %v2900 = vpack.c.b16 %v2320, %v2310
        %v2901 = vpack.c.b16 %v2321, %v2311
        %v2902 = vpack.c.b16 %v2322, %v2312
        %v2903 = vpack.c.b16 %v2323, %v2313
        %v2904 = vpack.c.b16 %v2324, %v2314
        %v2905 = vpack.c.b16 %v2325, %v2315
        %v2906 = vpack.c.b16 %v2326, %v2316
        %v2907 = vpack.c.b16 %v2327, %v2317
        %v2908 = vpack.c.b16 %v2328, %v2318
        %v2909 = vpack.c.b16 %v2339, %v2329
        %v2910 = vpack.c.b16 %v2340, %v2330
        %v2911 = vpack.c.b16 %v2341, %v2331
        %v2912 = vpack.c.b16 %v2342, %v2332
        %v2913 = vpack.c.b16 %v2343, %v2333
        %v2914 = vpack.c.b16 %v2344, %v2334
        %v2915 = vpack.c.b16 %v2345, %v2335
        %v2916 = vpack.c.b16 %v2346, %v2336
        %v2917 = vpack.c.b16 %v2347, %v2337
        %v2918 = vpack.c.b16 %v2348, %v2338
        %v2919 = vpack.c.b16 %v2359, %v2349
        %v2920 = vpack.c.b16 %v2360, %v2350
        %v2921 = vpack.c.b16 %v2361, %v2351
        %v2922 = vpack.c.b16 %v2362, %v2352
        %v2923 = vpack.c.b16 %v2363, %v2353
        %v2924 = vpack.c.b16 %v2364, %v2354
        %v2925 = vpack.c.b16 %v2365, %v2355
        %v2926 = vpack.c.b16 %v2366, %v2356
        %v2927 = vpack.c.b16 %v2367, %v2357
        %v2928 = vpack.c.b16 %v2368, %v2358
        %v2929 = vpack.c.b16 %v2379, %v2369
        %v2930 = vpack.c.b16 %v2380, %v2370
        %v2931 = vpack.c.b16 %v2381, %v2371
        %v2932 = vpack.c.b16 %v2382, %v2372
        %v2933 = vpack.c.b16 %v2383, %v2373
        %v2934 = vpack.c.b16 %v2384, %v2374
        %v2935 = vpack.c.b16 %v2385, %v2375
        %v2936 = vpack.c.b16 %v2386, %v2376
        %v2937 = vpack.c.b16 %v2387, %v2377
        %v2938 = vpack.c.b16 %v2388, %v2378
        %v2939 = vpack.c.b16 %v2399, %v2389
        %v2940 = vpack.c.b16 %v2400, %v2390
        %v2941 = vpack.c.b16 %v2401, %v2391
        %v2942 = vpack.c.b16 %v2402, %v2392
        %v2943 = vpack.c.b16 %v2403, %v2393
        %v2944 = vpack.c.b16 %v2404, %v2394
        %v2945 = vpack.c.b16 %v2405, %v2395
        %v2946 = vpack.c.b16 %v2406, %v2396
        %v2947 = vpack.c.b16 %v2407, %v2397
        %v2948 = vpack.c.b16 %v2408, %v2398
        %v2949 = vpack.c.b16 %v2419, %v2409
        %v2950 = vpack.c.b16 %v2420, %v2410
        %v2951 = vpack.c.b16 %v2421, %v2411
        %v2952 = vpack.c.b16 %v2422, %v2412
        %v2953 = vpack.c.b16 %v2423, %v2413
        %v2954 = vpack.c.b16 %v2424, %v2414
        %v2955 = vpack.c.b16 %v2425, %v2415
        %v2956 = vpack.c.b16 %v2426, %v2416
        %v2957 = vpack.c.b16 %v2427, %v2417
        %v2958 = vpack.c.b16 %v2428, %v2418
        %v2959 = vpack.c.b16 %v2439, %v2429
        %v2960 = vpack.c.b16 %v2440, %v2430
        %v2961 = vpack.c.b16 %v2441, %v2431
        %v2962 = vpack.c.b16 %v2442, %v2432
        %v2963 = vpack.c.b16 %v2443, %v2433
        %v2964 = vpack.c.b16 %v2444, %v2434
        %v2965 = vpack.c.b16 %v2445, %v2435
        %v2966 = vpack.c.b16 %v2446, %v2436
        %v2967 = vpack.c.b16 %v2447, %v2437
        %v2968 = vpack.c.b16 %v2448, %v2438
        %v2969 = vpack.c.b16 %v2459, %v2449
        %v2970 = vpack.c.b16 %v2460, %v2450
        %v2971 = vpack.c.b16 %v2461, %v2451
        %v2972 = vpack.c.b16 %v2462, %v2452
        %v2973 = vpack.c.b16 %v2463, %v2453
        %v2974 = vpack.c.b16 %v2464, %v2454
        %v2975 = vpack.c.b16 %v2465, %v2455
        %v2976 = vpack.c.b16 %v2466, %v2456
        %v2977 = vpack.c.b16 %v2467, %v2457
        %v2978 = vpack.c.b16 %v2468, %v2458
        %v2979 = vpack.c.b16 %v2479, %v2469
        %v2980 = vpack.c.b16 %v2480, %v2470
        %v2981 = vpack.c.b16 %v2481, %v2471
        %v2982 = vpack.c.b16 %v2482, %v2472
        %v2983 = vpack.c.b16 %v2483, %v2473
        %v2984 = vpack.c.b16 %v2484, %v2474
        %v2985 = vpack.c.b16 %v2485, %v2475
        %v2986 = vpack.c.b16 %v2486, %v2476
        %v2987 = vpack.c.b16 %v2487, %v2477
        %v2988 = vpack.c.b16 %v2488, %v2478
        %v2989 = vpack.c.b16 %v2499, %v2489
        %v2990 = vpack.c.b16 %v2500, %v2490
        %v2991 = vpack.c.b16 %v2501, %v2491
        %v2992 = vpack.c.b16 %v2502, %v2492
        %v2993 = vpack.c.b16 %v2503, %v2493
        %v2994 = vpack.c.b16 %v2504, %v2494
        %v2995 = vpack.c.b16 %v2505, %v2495
        %v2996 = vpack.c.b16 %v2506, %v2496
        %v2997 = vpack.c.b16 %v2507, %v2497
        %v2998 = vpack.c.b16 %v2508, %v2498
        %v2999 = vpack.c.b16 %v2519, %v2509
        %v3000 = vpack.c.b16 %v2520, %v2510
        %v3001 = vpack.c.b16 %v2521, %v2511
        %v3002 = vpack.c.b16 %v2522, %v2512
        %v3003 = vpack.c.b16 %v2523, %v2513
        %v3004 = vpack.c.b16 %v2524, %v2514
        %v3005 = vpack.c.b16 %v2525, %v2515
        %v3006 = vpack.c.b16 %v2526, %v2516
        %v3007 = vpack.c.b16 %v2527, %v2517
        %v3008 = vpack.c.b16 %v2528, %v2518
        %v3009 = vpack.c.b16 %v2539, %v2529
        %v3010 = vpack.c.b16 %v2540, %v2530
        %v3011 = vpack.c.b16 %v2541, %v2531
        %v3012 = vpack.c.b16 %v2542, %v2532
        %v3013 = vpack.c.b16 %v2543, %v2533
        %v3014 = vpack.c.b16 %v2544, %v2534
        %v3015 = vpack.c.b16 %v2545, %v2535
        %v3016 = vpack.c.b16 %v2546, %v2536
        %v3017 = vpack.c.b16 %v2547, %v2537
        %v3018 = vpack.c.b16 %v2548, %v2538
        %v3019 = vpack.c.b16 %v2559, %v2549
        %v3020 = vpack.c.b16 %v2560, %v2550
        %v3021 = vpack.c.b16 %v2561, %v2551
        %v3022 = vpack.c.b16 %v2562, %v2552
        %v3023 = vpack.c.b16 %v2563, %v2553
        %v3024 = vpack.c.b16 %v2564, %v2554
        %v3025 = vpack.c.b16 %v2565, %v2555
        %v3026 = vpack.c.b16 %v2566, %v2556
        %v3027 = vpack.c.b16 %v2567, %v2557
        %v3028 = vpack.c.b16 %v2568, %v2558
        %v3029 = vpack.c.b16 %v2579, %v2569
        %v3030 = vpack.c.b16 %v2580, %v2570
        %v3031 = vpack.c.b16 %v2581, %v2571
        %v3032 = vpack.c.b16 %v2582, %v2572
        %v3033 = vpack.c.b16 %v2583, %v2573
        %v3034 = vpack.c.b16 %v2584, %v2574
        %v3035 = vpack.c.b16 %v2585, %v2575
        %v3036 = vpack.c.b16 %v2586, %v2576
        %v3037 = vpack.c.b16 %v2587, %v2577
        %v3038 = vpack.c.b16 %v2588, %v2578
        %v3039 = vpack.c.b16 %v2599, %v2589
        %v3040 = vpack.c.b16 %v2600, %v2590
        %v3041 = vpack.c.b16 %v2601, %v2591
        %v3042 = vpack.c.b16 %v2602, %v2592
        %v3043 = vpack.c.b16 %v2603, %v2593
        %v3044 = vpack.c.b16 %v2604, %v2594
        %v3045 = vpack.c.b16 %v2605, %v2595
        %v3046 = vpack.c.b16 %v2606, %v2596
        %v3047 = vpack.c.b16 %v2607, %v2597
        %v3048 = vpack.c.b16 %v2608, %v2598
        %v3049 = vpack.c.b16 %v2619, %v2609
        %v3050 = vpack.c.b16 %v2620, %v2610
        %v3051 = vpack.c.b16 %v2621, %v2611
        %v3052 = vpack.c.b16 %v2622, %v2612
        %v3053 = vpack.c.b16 %v2623, %v2613
        %v3054 = vpack.c.b16 %v2624, %v2614
        %v3055 = vpack.c.b16 %v2625, %v2615
        %v3056 = vpack.c.b16 %v2626, %v2616
        %v3057 = vpack.c.b16 %v2627, %v2617
        %v3058 = vpack.c.b16 %v2628, %v2618
        %v3059 = vpack.c.b16 %v2639, %v2629
        %v3060 = vpack.c.b16 %v2640, %v2630
        %v3061 = vpack.c.b16 %v2641, %v2631
        %v3062 = vpack.c.b16 %v2642, %v2632
        %v3063 = vpack.c.b16 %v2643, %v2633
        %v3064 = vpack.c.b16 %v2644, %v2634
        %v3065 = vpack.c.b16 %v2645, %v2635
        %v3066 = vpack.c.b16 %v2646, %v2636
        %v3067 = vpack.c.b16 %v2647, %v2637
        %v3068 = vpack.c.b16 %v2648, %v2638
        %v3069 = vpack.c.b16 %v2659, %v2649
        %v3070 = vpack.c.b16 %v2660, %v2650
        %v3071 = vpack.c.b16 %v2661, %v2651
        %v3072 = vpack.c.b16 %v2662, %v2652
        %v3073 = vpack.c.b16 %v2663, %v2653
        %v3074 = vpack.c.b16 %v2664, %v2654
        %v3075 = vpack.c.b16 %v2665, %v2655
        %v3076 = vpack.c.b16 %v2666, %v2656
        %v3077 = vpack.c.b16 %v2667, %v2657
        %v3078 = vpack.c.b16 %v2668, %v2658
        %v3079 = vpack.c.b16 %v2679, %v2669
        %v3080 = vpack.c.b16 %v2680, %v2670
        %v3081 = vpack.c.b16 %v2681, %v2671
        %v3082 = vpack.c.b16 %v2682, %v2672
        %v3083 = vpack.c.b16 %v2683, %v2673
        %v3084 = vpack.c.b16 %v2684, %v2674
        %v3085 = vpack.c.b16 %v2685, %v2675
        %v3086 = vpack.c.b16 %v2686, %v2676
        %v3087 = vpack.c.b16 %v2687, %v2677
        %v3088 = vpack.c.b16 %v2688, %v2678
        %3489 = vmatprep.subr.bf16.mxu0 0
        %3490 = vmatpush1.bf16.msra.mxu0 %v1409
        %3491 = vmatprep.subr.bf16.mxu0 0
        %3492 = vmatpush1.bf16.msra.mxu0 %v1410
        %3493 = vmatprep.subr.bf16.mxu0 0
        %3494 = vmatpush1.bf16.msra.mxu0 %v1411
        %3495 = vmatprep.subr.bf16.mxu0 0
        %3496 = vmatpush1.bf16.msra.mxu0 %v1412
        %3497 = vmatprep.subr.bf16.mxu0 0
        %3498 = vmatpush1.bf16.msra.mxu0 %v1413
        %3499 = vmatprep.subr.bf16.mxu0 0
        %3500 = vmatpush1.bf16.msra.mxu0 %v1414
        %3501 = vmatprep.subr.bf16.mxu0 0
        %3502 = vmatpush1.bf16.msra.mxu0 %v1415
        %3503 = vmatprep.subr.bf16.mxu0 0
        %3504 = vmatpush1.bf16.msra.mxu0 %v1416
        %3505 = vmatprep.subr.bf16.mxu0 0
        %3506 = vmatpush1.bf16.msra.mxu0 %v1417
        %3507 = vmatprep.subr.bf16.mxu0 0
        %3508 = vmatpush1.bf16.msra.mxu0 %v1418
        %3509 = vmatprep.subr.bf16.mxu0 0
        %3510 = vmatpush1.bf16.msra.mxu0 %v1419
        %3511 = vmatprep.subr.bf16.mxu0 0
        %3512 = vmatpush1.bf16.msra.mxu0 %v1420
        %3513 = vmatprep.subr.bf16.mxu0 0
        %3514 = vmatpush1.bf16.msra.mxu0 %v1421
        %3515 = vmatprep.subr.bf16.mxu0 0
        %3516 = vmatpush1.bf16.msra.mxu0 %v1422
        %3517 = vmatprep.subr.bf16.mxu0 0
        %3518 = vmatpush1.bf16.msra.mxu0 %v1423
        %3519 = vmatprep.subr.bf16.mxu0 0
        %3520 = vmatpush1.bf16.msra.mxu0 %v1424
        %3521 = vmatprep.mubr.bf16.mxu0 %v2690
        %3522 = vmatmul.mubr.bf16.gmra.mrb[0].mxu0 %v2689
        %v3523 = vpop.f32.mrb[0].mxu0
        %v3524 = vadd.f32 0.0, %v3523
        %v3525 = vpop.f32.mrb[0].mxu0
        %v3526 = vpop.f32.mrb[0].mxu0
        %v3527 = vadd.f32 0.0, %v3526
        %v3528 = vpop.f32.mrb[0].mxu0
        %3529 = vmatprep.mubr.bf16.mxu0 %v2700
        %3530 = vmatmul.mubr.bf16.gmra.mrb[0].mxu0 %v2699
        %v3531 = vpop.f32.mrb[0].mxu0
        %v3532 = vadd.f32 0.0, %v3531
        %v3533 = vpop.f32.mrb[0].mxu0
        %v3534 = vpop.f32.mrb[0].mxu0
        %v3535 = vadd.f32 0.0, %v3534
        %v3536 = vpop.f32.mrb[0].mxu0
        %3537 = vmatprep.mubr.bf16.mxu0 %v2710
        %3538 = vmatmul.mubr.bf16.gmra.mrb[0].mxu0 %v2709
        %v3539 = vpop.f32.mrb[0].mxu0
        %v3540 = vadd.f32 0.0, %v3539
        %v3541 = vpop.f32.mrb[0].mxu0
        %v3542 = vpop.f32.mrb[0].mxu0
        %v3543 = vadd.f32 0.0, %v3542
        %v3544 = vpop.f32.mrb[0].mxu0
        %3545 = vmatprep.mubr.bf16.mxu0 %v2720
        %3546 = vmatmul.mubr.bf16.gmra.mrb[0].mxu0 %v2719
        %v3547 = vpop.f32.mrb[0].mxu0
        %v3548 = vadd.f32 0.0, %v3547
        %v3549 = vpop.f32.mrb[0].mxu0
        %v3550 = vpop.f32.mrb[0].mxu0
        %v3551 = vadd.f32 0.0, %v3550
        %v3552 = vpop.f32.mrb[0].mxu0
        %3553 = vmatprep.mubr.bf16.mxu0 %v2730
        %3554 = vmatmul.mubr.bf16.gmra.mrb[0].mxu0 %v2729
        %v3555 = vpop.f32.mrb[0].mxu0
        %v3556 = vadd.f32 0.0, %v3555
        %v3557 = vpop.f32.mrb[0].mxu0
        %v3558 = vpop.f32.mrb[0].mxu0
        %v3559 = vadd.f32 0.0, %v3558
        %v3560 = vpop.f32.mrb[0].mxu0
        %3561 = vmatprep.mubr.bf16.mxu0 %v2740
        %3562 = vmatmul.mubr.bf16.gmra.mrb[0].mxu0 %v2739
        %v3563 = vpop.f32.mrb[0].mxu0
        %v3564 = vadd.f32 0.0, %v3563
        %v3565 = vpop.f32.mrb[0].mxu0
        %v3566 = vpop.f32.mrb[0].mxu0
        %v3567 = vadd.f32 0.0, %v3566
        %v3568 = vpop.f32.mrb[0].mxu0
        %3569 = vmatprep.mubr.bf16.mxu0 %v2750
        %3570 = vmatmul.mubr.bf16.gmra.mrb[0].mxu0 %v2749
        %v3571 = vpop.f32.mrb[0].mxu0
        %v3572 = vadd.f32 0.0, %v3571
        %v3573 = vpop.f32.mrb[0].mxu0
        %v3574 = vpop.f32.mrb[0].mxu0
        %v3575 = vadd.f32 0.0, %v3574
        %v3576 = vpop.f32.mrb[0].mxu0
        %3577 = vmatprep.mubr.bf16.mxu0 %v2760
        %3578 = vmatmul.mubr.bf16.gmra.mrb[0].mxu0 %v2759
        %v3579 = vpop.f32.mrb[0].mxu0
        %v3580 = vadd.f32 0.0, %v3579
        %v3581 = vpop.f32.mrb[0].mxu0
        %v3582 = vpop.f32.mrb[0].mxu0
        %v3583 = vadd.f32 0.0, %v3582
        %v3584 = vpop.f32.mrb[0].mxu0
        %3585 = vmatprep.mubr.bf16.mxu0 %v2770
        %3586 = vmatmul.mubr.bf16.gmra.mrb[0].mxu0 %v2769
        %v3587 = vpop.f32.mrb[0].mxu0
        %v3588 = vadd.f32 0.0, %v3587
        %v3589 = vpop.f32.mrb[0].mxu0
        %v3590 = vpop.f32.mrb[0].mxu0
        %v3591 = vadd.f32 0.0, %v3590
        %v3592 = vpop.f32.mrb[0].mxu0
        %3593 = vmatprep.mubr.bf16.mxu0 %v2780
        %3594 = vmatmul.mubr.bf16.gmra.mrb[0].mxu0 %v2779
        %v3595 = vpop.f32.mrb[0].mxu0
        %v3596 = vadd.f32 0.0, %v3595
        %v3597 = vpop.f32.mrb[0].mxu0
        %v3598 = vpop.f32.mrb[0].mxu0
        %v3599 = vadd.f32 0.0, %v3598
        %v3600 = vpop.f32.mrb[0].mxu0
        %3601 = vmatprep.mubr.bf16.mxu0 %v2790
        %3602 = vmatmul.mubr.bf16.gmra.mrb[0].mxu0 %v2789
        %v3603 = vpop.f32.mrb[0].mxu0
        %v3604 = vadd.f32 0.0, %v3603
        %v3605 = vpop.f32.mrb[0].mxu0
        %v3606 = vpop.f32.mrb[0].mxu0
        %v3607 = vadd.f32 0.0, %v3606
        %v3608 = vpop.f32.mrb[0].mxu0
        %3609 = vmatprep.mubr.bf16.mxu0 %v2800
        %3610 = vmatmul.mubr.bf16.gmra.mrb[0].mxu0 %v2799
        %v3611 = vpop.f32.mrb[0].mxu0
        %v3612 = vadd.f32 0.0, %v3611
        %v3613 = vpop.f32.mrb[0].mxu0
        %v3614 = vpop.f32.mrb[0].mxu0
        %v3615 = vadd.f32 0.0, %v3614
        %v3616 = vpop.f32.mrb[0].mxu0
        %3617 = vmatprep.mubr.bf16.mxu0 %v2810
        %3618 = vmatmul.mubr.bf16.gmra.mrb[0].mxu0 %v2809
        %v3619 = vpop.f32.mrb[0].mxu0
        %v3620 = vadd.f32 0.0, %v3619
        %v3621 = vpop.f32.mrb[0].mxu0
        %v3622 = vpop.f32.mrb[0].mxu0
        %v3623 = vadd.f32 0.0, %v3622
        %v3624 = vpop.f32.mrb[0].mxu0
        %3625 = vmatprep.mubr.bf16.mxu0 %v2820
        %3626 = vmatmul.mubr.bf16.gmra.mrb[0].mxu0 %v2819
        %v3627 = vpop.f32.mrb[0].mxu0
        %v3628 = vadd.f32 0.0, %v3627
        %v3629 = vpop.f32.mrb[0].mxu0
        %v3630 = vpop.f32.mrb[0].mxu0
        %v3631 = vadd.f32 0.0, %v3630
        %v3632 = vpop.f32.mrb[0].mxu0
        %3633 = vmatprep.mubr.bf16.mxu0 %v2830
        %3634 = vmatmul.mubr.bf16.gmra.mrb[0].mxu0 %v2829
        %v3635 = vpop.f32.mrb[0].mxu0
        %v3636 = vadd.f32 0.0, %v3635
        %v3637 = vpop.f32.mrb[0].mxu0
        %v3638 = vpop.f32.mrb[0].mxu0
        %v3639 = vadd.f32 0.0, %v3638
        %v3640 = vpop.f32.mrb[0].mxu0
        %3641 = vmatprep.mubr.bf16.mxu0 %v2840
        %3642 = vmatmul.mubr.bf16.gmra.mrb[0].mxu0 %v2839
        %v3643 = vpop.f32.mrb[0].mxu0
        %v3644 = vadd.f32 0.0, %v3643
        %v3645 = vpop.f32.mrb[0].mxu0
        %v3646 = vpop.f32.mrb[0].mxu0
        %v3647 = vadd.f32 0.0, %v3646
        %v3648 = vpop.f32.mrb[0].mxu0
        %3649 = vmatprep.mubr.bf16.mxu0 %v2850
        %3650 = vmatmul.mubr.bf16.gmra.mrb[0].mxu0 %v2849
        %v3651 = vpop.f32.mrb[0].mxu0
        %v3652 = vadd.f32 0.0, %v3651
        %v3653 = vpop.f32.mrb[0].mxu0
        %v3654 = vpop.f32.mrb[0].mxu0
        %v3655 = vadd.f32 0.0, %v3654
        %v3656 = vpop.f32.mrb[0].mxu0
        %3657 = vmatprep.mubr.bf16.mxu0 %v2860
        %3658 = vmatmul.mubr.bf16.gmra.mrb[0].mxu0 %v2859
        %v3659 = vpop.f32.mrb[0].mxu0
        %v3660 = vadd.f32 0.0, %v3659
        %v3661 = vpop.f32.mrb[0].mxu0
        %v3662 = vpop.f32.mrb[0].mxu0
        %v3663 = vadd.f32 0.0, %v3662
        %v3664 = vpop.f32.mrb[0].mxu0
        %3665 = vmatprep.mubr.bf16.mxu0 %v2870
        %3666 = vmatmul.mubr.bf16.gmra.mrb[0].mxu0 %v2869
        %v3667 = vpop.f32.mrb[0].mxu0
        %v3668 = vadd.f32 0.0, %v3667
        %v3669 = vpop.f32.mrb[0].mxu0
        %v3670 = vpop.f32.mrb[0].mxu0
        %v3671 = vadd.f32 0.0, %v3670
        %v3672 = vpop.f32.mrb[0].mxu0
        %3673 = vmatprep.mubr.bf16.mxu0 %v2880
        %3674 = vmatmul.mubr.bf16.gmra.mrb[0].mxu0 %v2879
        %v3675 = vpop.f32.mrb[0].mxu0
        %v3676 = vadd.f32 0.0, %v3675
        %v3677 = vpop.f32.mrb[0].mxu0
        %v3678 = vpop.f32.mrb[0].mxu0
        %v3679 = vadd.f32 0.0, %v3678
        %v3680 = vpop.f32.mrb[0].mxu0
        %3681 = vmatprep.mubr.bf16.mxu0 %v2890
        %3682 = vmatmul.mubr.bf16.gmra.mrb[0].mxu0 %v2889
        %v3683 = vpop.f32.mrb[0].mxu0
        %v3684 = vadd.f32 0.0, %v3683
        %v3685 = vpop.f32.mrb[0].mxu0
        %v3686 = vpop.f32.mrb[0].mxu0
        %v3687 = vadd.f32 0.0, %v3686
        %v3688 = vpop.f32.mrb[0].mxu0
        %3689 = vmatprep.mubr.bf16.mxu0 %v2900
        %3690 = vmatmul.mubr.bf16.gmra.mrb[0].mxu0 %v2899
        %v3691 = vpop.f32.mrb[0].mxu0
        %v3692 = vadd.f32 0.0, %v3691
        %v3693 = vpop.f32.mrb[0].mxu0
        %v3694 = vpop.f32.mrb[0].mxu0
        %v3695 = vadd.f32 0.0, %v3694
        %v3696 = vpop.f32.mrb[0].mxu0
        %3697 = vmatprep.mubr.bf16.mxu0 %v2910
        %3698 = vmatmul.mubr.bf16.gmra.mrb[0].mxu0 %v2909
        %v3699 = vpop.f32.mrb[0].mxu0
        %v3700 = vadd.f32 0.0, %v3699
        %v3701 = vpop.f32.mrb[0].mxu0
        %v3702 = vpop.f32.mrb[0].mxu0
        %v3703 = vadd.f32 0.0, %v3702
        %v3704 = vpop.f32.mrb[0].mxu0
        %3705 = vmatprep.mubr.bf16.mxu0 %v2920
        %3706 = vmatmul.mubr.bf16.gmra.mrb[0].mxu0 %v2919
        %v3707 = vpop.f32.mrb[0].mxu0
        %v3708 = vadd.f32 0.0, %v3707
        %v3709 = vpop.f32.mrb[0].mxu0
        %v3710 = vpop.f32.mrb[0].mxu0
        %v3711 = vadd.f32 0.0, %v3710
        %v3712 = vpop.f32.mrb[0].mxu0
        %3713 = vmatprep.mubr.bf16.mxu0 %v2930
        %3714 = vmatmul.mubr.bf16.gmra.mrb[0].mxu0 %v2929
        %v3715 = vpop.f32.mrb[0].mxu0
        %v3716 = vadd.f32 0.0, %v3715
        %v3717 = vpop.f32.mrb[0].mxu0
        %v3718 = vpop.f32.mrb[0].mxu0
        %v3719 = vadd.f32 0.0, %v3718
        %v3720 = vpop.f32.mrb[0].mxu0
        %3721 = vmatprep.mubr.bf16.mxu0 %v2940
        %3722 = vmatmul.mubr.bf16.gmra.mrb[0].mxu0 %v2939
        %v3723 = vpop.f32.mrb[0].mxu0
        %v3724 = vadd.f32 0.0, %v3723
        %v3725 = vpop.f32.mrb[0].mxu0
        %v3726 = vpop.f32.mrb[0].mxu0
        %v3727 = vadd.f32 0.0, %v3726
        %v3728 = vpop.f32.mrb[0].mxu0
        %3729 = vmatprep.mubr.bf16.mxu0 %v2950
        %3730 = vmatmul.mubr.bf16.gmra.mrb[0].mxu0 %v2949
        %v3731 = vpop.f32.mrb[0].mxu0
        %v3732 = vadd.f32 0.0, %v3731
        %v3733 = vpop.f32.mrb[0].mxu0
        %v3734 = vpop.f32.mrb[0].mxu0
        %v3735 = vadd.f32 0.0, %v3734
        %v3736 = vpop.f32.mrb[0].mxu0
        %3737 = vmatprep.mubr.bf16.mxu0 %v2960
        %3738 = vmatmul.mubr.bf16.gmra.mrb[0].mxu0 %v2959
        %v3739 = vpop.f32.mrb[0].mxu0
        %v3740 = vadd.f32 0.0, %v3739
        %v3741 = vpop.f32.mrb[0].mxu0
        %v3742 = vpop.f32.mrb[0].mxu0
        %v3743 = vadd.f32 0.0, %v3742
        %v3744 = vpop.f32.mrb[0].mxu0
        %3745 = vmatprep.mubr.bf16.mxu0 %v2970
        %3746 = vmatmul.mubr.bf16.gmra.mrb[0].mxu0 %v2969
        %v3747 = vpop.f32.mrb[0].mxu0
        %v3748 = vadd.f32 0.0, %v3747
        %v3749 = vpop.f32.mrb[0].mxu0
        %v3750 = vpop.f32.mrb[0].mxu0
        %v3751 = vadd.f32 0.0, %v3750
        %v3752 = vpop.f32.mrb[0].mxu0
        %3753 = vmatprep.mubr.bf16.mxu0 %v2980
        %3754 = vmatmul.mubr.bf16.gmra.mrb[0].mxu0 %v2979
        %v3755 = vpop.f32.mrb[0].mxu0
        %v3756 = vadd.f32 0.0, %v3755
        %v3757 = vpop.f32.mrb[0].mxu0
        %v3758 = vpop.f32.mrb[0].mxu0
        %v3759 = vadd.f32 0.0, %v3758
        %v3760 = vpop.f32.mrb[0].mxu0
        %3761 = vmatprep.mubr.bf16.mxu0 %v2990
        %3762 = vmatmul.mubr.bf16.gmra.mrb[0].mxu0 %v2989
        %v3763 = vpop.f32.mrb[0].mxu0
        %v3764 = vadd.f32 0.0, %v3763
        %v3765 = vpop.f32.mrb[0].mxu0
        %v3766 = vpop.f32.mrb[0].mxu0
        %v3767 = vadd.f32 0.0, %v3766
        %v3768 = vpop.f32.mrb[0].mxu0
        %3769 = vmatprep.mubr.bf16.mxu0 %v3000
        %3770 = vmatmul.mubr.bf16.gmra.mrb[0].mxu0 %v2999
        %v3771 = vpop.f32.mrb[0].mxu0
        %v3772 = vadd.f32 0.0, %v3771
        %v3773 = vpop.f32.mrb[0].mxu0
        %v3774 = vpop.f32.mrb[0].mxu0
        %v3775 = vadd.f32 0.0, %v3774
        %v3776 = vpop.f32.mrb[0].mxu0
        %3777 = vmatprep.mubr.bf16.mxu0 %v3010
        %3778 = vmatmul.mubr.bf16.gmra.mrb[0].mxu0 %v3009
        %v3779 = vpop.f32.mrb[0].mxu0
        %v3780 = vadd.f32 0.0, %v3779
        %v3781 = vpop.f32.mrb[0].mxu0
        %v3782 = vpop.f32.mrb[0].mxu0
        %v3783 = vadd.f32 0.0, %v3782
        %v3784 = vpop.f32.mrb[0].mxu0
        %3785 = vmatprep.mubr.bf16.mxu0 %v3020
        %3786 = vmatmul.mubr.bf16.gmra.mrb[0].mxu0 %v3019
        %v3787 = vpop.f32.mrb[0].mxu0
        %v3788 = vadd.f32 0.0, %v3787
        %v3789 = vpop.f32.mrb[0].mxu0
        %v3790 = vpop.f32.mrb[0].mxu0
        %v3791 = vadd.f32 0.0, %v3790
        %v3792 = vpop.f32.mrb[0].mxu0
        %3793 = vmatprep.mubr.bf16.mxu0 %v3030
        %3794 = vmatmul.mubr.bf16.gmra.mrb[0].mxu0 %v3029
        %v3795 = vpop.f32.mrb[0].mxu0
        %v3796 = vadd.f32 0.0, %v3795
        %v3797 = vpop.f32.mrb[0].mxu0
        %v3798 = vpop.f32.mrb[0].mxu0
        %v3799 = vadd.f32 0.0, %v3798
        %v3800 = vpop.f32.mrb[0].mxu0
        %3801 = vmatprep.mubr.bf16.mxu0 %v3040
        %3802 = vmatmul.mubr.bf16.gmra.mrb[0].mxu0 %v3039
        %v3803 = vpop.f32.mrb[0].mxu0
        %v3804 = vadd.f32 0.0, %v3803
        %v3805 = vpop.f32.mrb[0].mxu0
        %v3806 = vpop.f32.mrb[0].mxu0
        %v3807 = vadd.f32 0.0, %v3806
        %v3808 = vpop.f32.mrb[0].mxu0
        %3809 = vmatprep.mubr.bf16.mxu0 %v3050
        %3810 = vmatmul.mubr.bf16.gmra.mrb[0].mxu0 %v3049
        %v3811 = vpop.f32.mrb[0].mxu0
        %v3812 = vadd.f32 0.0, %v3811
        %v3813 = vpop.f32.mrb[0].mxu0
        %v3814 = vpop.f32.mrb[0].mxu0
        %v3815 = vadd.f32 0.0, %v3814
        %v3816 = vpop.f32.mrb[0].mxu0
        %3817 = vmatprep.mubr.bf16.mxu0 %v3060
        %3818 = vmatmul.mubr.bf16.gmra.mrb[0].mxu0 %v3059
        %v3819 = vpop.f32.mrb[0].mxu0
        %v3820 = vadd.f32 0.0, %v3819
        %v3821 = vpop.f32.mrb[0].mxu0
        %v3822 = vpop.f32.mrb[0].mxu0
        %v3823 = vadd.f32 0.0, %v3822
        %v3824 = vpop.f32.mrb[0].mxu0
        %3825 = vmatprep.mubr.bf16.mxu0 %v3070
        %3826 = vmatmul.mubr.bf16.gmra.mrb[0].mxu0 %v3069
        %v3827 = vpop.f32.mrb[0].mxu0
        %v3828 = vadd.f32 0.0, %v3827
        %v3829 = vpop.f32.mrb[0].mxu0
        %v3830 = vpop.f32.mrb[0].mxu0
        %v3831 = vadd.f32 0.0, %v3830
        %v3832 = vpop.f32.mrb[0].mxu0
        %3833 = vmatprep.mubr.bf16.mxu0 %v3080
        %3834 = vmatmul.mubr.bf16.gmra.mrb[0].mxu0 %v3079
        %v3835 = vpop.f32.mrb[0].mxu0
        %v3836 = vadd.f32 0.0, %v3835
        %v3837 = vpop.f32.mrb[0].mxu0
        %v3838 = vpop.f32.mrb[0].mxu0
        %v3839 = vadd.f32 0.0, %v3838
        %v3840 = vpop.f32.mrb[0].mxu0
        %3841 = vdwg.mxu0
        %3842 = vmatprep.subr.bf16.mxu0 0
        %3843 = vmatpush1.bf16.msra.mxu0 %v1425
        %3844 = vmatprep.subr.bf16.mxu0 0
        %3845 = vmatpush1.bf16.msra.mxu0 %v1426
        %3846 = vmatprep.subr.bf16.mxu0 0
        %3847 = vmatpush1.bf16.msra.mxu0 %v1427
        %3848 = vmatprep.subr.bf16.mxu0 0
        %3849 = vmatpush1.bf16.msra.mxu0 %v1428
        %3850 = vmatprep.subr.bf16.mxu0 0
        %3851 = vmatpush1.bf16.msra.mxu0 %v1429
        %3852 = vmatprep.subr.bf16.mxu0 0
        %3853 = vmatpush1.bf16.msra.mxu0 %v1430
        %3854 = vmatprep.subr.bf16.mxu0 0
        %3855 = vmatpush1.bf16.msra.mxu0 %v1431
        %3856 = vmatprep.subr.bf16.mxu0 0
        %3857 = vmatpush1.bf16.msra.mxu0 %v1432
        %3858 = vmatprep.subr.bf16.mxu0 0
        %3859 = vmatpush1.bf16.msra.mxu0 %v1433
        %3860 = vmatprep.subr.bf16.mxu0 0
        %3861 = vmatpush1.bf16.msra.mxu0 %v1434
        %3862 = vmatprep.subr.bf16.mxu0 0
        %3863 = vmatpush1.bf16.msra.mxu0 %v1435
        %3864 = vmatprep.subr.bf16.mxu0 0
        %3865 = vmatpush1.bf16.msra.mxu0 %v1436
        %3866 = vmatprep.subr.bf16.mxu0 0
        %3867 = vmatpush1.bf16.msra.mxu0 %v1437
        %3868 = vmatprep.subr.bf16.mxu0 0
        %3869 = vmatpush1.bf16.msra.mxu0 %v1438
        %3870 = vmatprep.subr.bf16.mxu0 0
        %3871 = vmatpush1.bf16.msra.mxu0 %v1439
        %3872 = vmatprep.subr.bf16.mxu0 0
        %3873 = vmatpush1.bf16.msra.mxu0 %v1440
        %3874 = vmatprep.mubr.bf16.mxu0 %v2692
        %3875 = vmatmul.mubr.bf16.gmra.mrb[0].mxu0 %v2691
        %v3876 = vpop.f32.mrb[0].mxu0
        %v3877 = vadd.f32 %v3524, %v3876
        %v3878 = vpop.f32.mrb[0].mxu0
        %v3879 = vpop.f32.mrb[0].mxu0
        %v3880 = vadd.f32 %v3527, %v3879
        %v3881 = vpop.f32.mrb[0].mxu0
        %3882 = vmatprep.mubr.bf16.mxu0 %v2702
        %3883 = vmatmul.mubr.bf16.gmra.mrb[0].mxu0 %v2701
        %v3884 = vpop.f32.mrb[0].mxu0
        %v3885 = vadd.f32 %v3532, %v3884
        %v3886 = vpop.f32.mrb[0].mxu0
        %v3887 = vpop.f32.mrb[0].mxu0
        %v3888 = vadd.f32 %v3535, %v3887
        %v3889 = vpop.f32.mrb[0].mxu0
        %3890 = vmatprep.mubr.bf16.mxu0 %v2712
        %3891 = vmatmul.mubr.bf16.gmra.mrb[0].mxu0 %v2711
        %v3892 = vpop.f32.mrb[0].mxu0
        %v3893 = vadd.f32 %v3540, %v3892
        %v3894 = vpop.f32.mrb[0].mxu0
        %v3895 = vpop.f32.mrb[0].mxu0
        %v3896 = vadd.f32 %v3543, %v3895
        %v3897 = vpop.f32.mrb[0].mxu0
        %3898 = vmatprep.mubr.bf16.mxu0 %v2722
        %3899 = vmatmul.mubr.bf16.gmra.mrb[0].mxu0 %v2721
        %v3900 = vpop.f32.mrb[0].mxu0
        %v3901 = vadd.f32 %v3548, %v3900
        %v3902 = vpop.f32.mrb[0].mxu0
        %v3903 = vpop.f32.mrb[0].mxu0
        %v3904 = vadd.f32 %v3551, %v3903
        %v3905 = vpop.f32.mrb[0].mxu0
        %3906 = vmatprep.mubr.bf16.mxu0 %v2732
        %3907 = vmatmul.mubr.bf16.gmra.mrb[0].mxu0 %v2731
        %v3908 = vpop.f32.mrb[0].mxu0
        %v3909 = vadd.f32 %v3556, %v3908
        %v3910 = vpop.f32.mrb[0].mxu0
        %v3911 = vpop.f32.mrb[0].mxu0
        %v3912 = vadd.f32 %v3559, %v3911
        %v3913 = vpop.f32.mrb[0].mxu0
        %3914 = vmatprep.mubr.bf16.mxu0 %v2742
        %3915 = vmatmul.mubr.bf16.gmra.mrb[0].mxu0 %v2741
        %v3916 = vpop.f32.mrb[0].mxu0
        %v3917 = vadd.f32 %v3564, %v3916
        %v3918 = vpop.f32.mrb[0].mxu0
        %v3919 = vpop.f32.mrb[0].mxu0
        %v3920 = vadd.f32 %v3567, %v3919
        %v3921 = vpop.f32.mrb[0].mxu0
        %3922 = vmatprep.mubr.bf16.mxu0 %v2752
        %3923 = vmatmul.mubr.bf16.gmra.mrb[0].mxu0 %v2751
        %v3924 = vpop.f32.mrb[0].mxu0
        %v3925 = vadd.f32 %v3572, %v3924
        %v3926 = vpop.f32.mrb[0].mxu0
        %v3927 = vpop.f32.mrb[0].mxu0
        %v3928 = vadd.f32 %v3575, %v3927
        %v3929 = vpop.f32.mrb[0].mxu0
        %3930 = vmatprep.mubr.bf16.mxu0 %v2762
        %3931 = vmatmul.mubr.bf16.gmra.mrb[0].mxu0 %v2761
        %v3932 = vpop.f32.mrb[0].mxu0
        %v3933 = vadd.f32 %v3580, %v3932
        %v3934 = vpop.f32.mrb[0].mxu0
        %v3935 = vpop.f32.mrb[0].mxu0
        %v3936 = vadd.f32 %v3583, %v3935
        %v3937 = vpop.f32.mrb[0].mxu0
        %3938 = vmatprep.mubr.bf16.mxu0 %v2772
        %3939 = vmatmul.mubr.bf16.gmra.mrb[0].mxu0 %v2771
        %v3940 = vpop.f32.mrb[0].mxu0
        %v3941 = vadd.f32 %v3588, %v3940
        %v3942 = vpop.f32.mrb[0].mxu0
        %v3943 = vpop.f32.mrb[0].mxu0
        %v3944 = vadd.f32 %v3591, %v3943
        %v3945 = vpop.f32.mrb[0].mxu0
        %3946 = vmatprep.mubr.bf16.mxu0 %v2782
        %3947 = vmatmul.mubr.bf16.gmra.mrb[0].mxu0 %v2781
        %v3948 = vpop.f32.mrb[0].mxu0
        %v3949 = vadd.f32 %v3596, %v3948
        %v3950 = vpop.f32.mrb[0].mxu0
        %v3951 = vpop.f32.mrb[0].mxu0
        %v3952 = vadd.f32 %v3599, %v3951
        %v3953 = vpop.f32.mrb[0].mxu0
        %3954 = vmatprep.mubr.bf16.mxu0 %v2792
        %3955 = vmatmul.mubr.bf16.gmra.mrb[0].mxu0 %v2791
        %v3956 = vpop.f32.mrb[0].mxu0
        %v3957 = vadd.f32 %v3604, %v3956
        %v3958 = vpop.f32.mrb[0].mxu0
        %v3959 = vpop.f32.mrb[0].mxu0
        %v3960 = vadd.f32 %v3607, %v3959
        %v3961 = vpop.f32.mrb[0].mxu0
        %3962 = vmatprep.mubr.bf16.mxu0 %v2802
        %3963 = vmatmul.mubr.bf16.gmra.mrb[0].mxu0 %v2801
        %v3964 = vpop.f32.mrb[0].mxu0
        %v3965 = vadd.f32 %v3612, %v3964
        %v3966 = vpop.f32.mrb[0].mxu0
        %v3967 = vpop.f32.mrb[0].mxu0
        %v3968 = vadd.f32 %v3615, %v3967
        %v3969 = vpop.f32.mrb[0].mxu0
        %3970 = vmatprep.mubr.bf16.mxu0 %v2812
        %3971 = vmatmul.mubr.bf16.gmra.mrb[0].mxu0 %v2811
        %v3972 = vpop.f32.mrb[0].mxu0
        %v3973 = vadd.f32 %v3620, %v3972
        %v3974 = vpop.f32.mrb[0].mxu0
        %v3975 = vpop.f32.mrb[0].mxu0
        %v3976 = vadd.f32 %v3623, %v3975
        %v3977 = vpop.f32.mrb[0].mxu0
        %3978 = vmatprep.mubr.bf16.mxu0 %v2822
        %3979 = vmatmul.mubr.bf16.gmra.mrb[0].mxu0 %v2821
        %v3980 = vpop.f32.mrb[0].mxu0
        %v3981 = vadd.f32 %v3628, %v3980
        %v3982 = vpop.f32.mrb[0].mxu0
        %v3983 = vpop.f32.mrb[0].mxu0
        %v3984 = vadd.f32 %v3631, %v3983
        %v3985 = vpop.f32.mrb[0].mxu0
        %3986 = vmatprep.mubr.bf16.mxu0 %v2832
        %3987 = vmatmul.mubr.bf16.gmra.mrb[0].mxu0 %v2831
        %v3988 = vpop.f32.mrb[0].mxu0
        %v3989 = vadd.f32 %v3636, %v3988
        %v3990 = vpop.f32.mrb[0].mxu0
        %v3991 = vpop.f32.mrb[0].mxu0
        %v3992 = vadd.f32 %v3639, %v3991
        %v3993 = vpop.f32.mrb[0].mxu0
        %3994 = vmatprep.mubr.bf16.mxu0 %v2842
        %3995 = vmatmul.mubr.bf16.gmra.mrb[0].mxu0 %v2841
        %v3996 = vpop.f32.mrb[0].mxu0
        %v3997 = vadd.f32 %v3644, %v3996
        %v3998 = vpop.f32.mrb[0].mxu0
        %v3999 = vpop.f32.mrb[0].mxu0
        %v4000 = vadd.f32 %v3647, %v3999
        %v4001 = vpop.f32.mrb[0].mxu0
        %4002 = vmatprep.mubr.bf16.mxu0 %v2852
        %4003 = vmatmul.mubr.bf16.gmra.mrb[0].mxu0 %v2851
        %v4004 = vpop.f32.mrb[0].mxu0
        %v4005 = vadd.f32 %v3652, %v4004
        %v4006 = vpop.f32.mrb[0].mxu0
        %v4007 = vpop.f32.mrb[0].mxu0
        %v4008 = vadd.f32 %v3655, %v4007
        %v4009 = vpop.f32.mrb[0].mxu0
        %4010 = vmatprep.mubr.bf16.mxu0 %v2862
        %4011 = vmatmul.mubr.bf16.gmra.mrb[0].mxu0 %v2861
        %v4012 = vpop.f32.mrb[0].mxu0
        %v4013 = vadd.f32 %v3660, %v4012
        %v4014 = vpop.f32.mrb[0].mxu0
        %v4015 = vpop.f32.mrb[0].mxu0
        %v4016 = vadd.f32 %v3663, %v4015
        %v4017 = vpop.f32.mrb[0].mxu0
        %4018 = vmatprep.mubr.bf16.mxu0 %v2872
        %4019 = vmatmul.mubr.bf16.gmra.mrb[0].mxu0 %v2871
        %v4020 = vpop.f32.mrb[0].mxu0
        %v4021 = vadd.f32 %v3668, %v4020
        %v4022 = vpop.f32.mrb[0].mxu0
        %v4023 = vpop.f32.mrb[0].mxu0
        %v4024 = vadd.f32 %v3671, %v4023
        %v4025 = vpop.f32.mrb[0].mxu0
        %4026 = vmatprep.mubr.bf16.mxu0 %v2882
        %4027 = vmatmul.mubr.bf16.gmra.mrb[0].mxu0 %v2881
        %v4028 = vpop.f32.mrb[0].mxu0
        %v4029 = vadd.f32 %v3676, %v4028
        %v4030 = vpop.f32.mrb[0].mxu0
        %v4031 = vpop.f32.mrb[0].mxu0
        %v4032 = vadd.f32 %v3679, %v4031
        %v4033 = vpop.f32.mrb[0].mxu0
        %4034 = vmatprep.mubr.bf16.mxu0 %v2892
        %4035 = vmatmul.mubr.bf16.gmra.mrb[0].mxu0 %v2891
        %v4036 = vpop.f32.mrb[0].mxu0
        %v4037 = vadd.f32 %v3684, %v4036
        %v4038 = vpop.f32.mrb[0].mxu0
        %v4039 = vpop.f32.mrb[0].mxu0
        %v4040 = vadd.f32 %v3687, %v4039
        %v4041 = vpop.f32.mrb[0].mxu0
        %4042 = vmatprep.mubr.bf16.mxu0 %v2902
        %4043 = vmatmul.mubr.bf16.gmra.mrb[0].mxu0 %v2901
        %v4044 = vpop.f32.mrb[0].mxu0
        %v4045 = vadd.f32 %v3692, %v4044
        %v4046 = vpop.f32.mrb[0].mxu0
        %v4047 = vpop.f32.mrb[0].mxu0
        %v4048 = vadd.f32 %v3695, %v4047
        %v4049 = vpop.f32.mrb[0].mxu0
        %4050 = vmatprep.mubr.bf16.mxu0 %v2912
        %4051 = vmatmul.mubr.bf16.gmra.mrb[0].mxu0 %v2911
        %v4052 = vpop.f32.mrb[0].mxu0
        %v4053 = vadd.f32 %v3700, %v4052
        %v4054 = vpop.f32.mrb[0].mxu0
        %v4055 = vpop.f32.mrb[0].mxu0
        %v4056 = vadd.f32 %v3703, %v4055
        %v4057 = vpop.f32.mrb[0].mxu0
        %4058 = vmatprep.mubr.bf16.mxu0 %v2922
        %4059 = vmatmul.mubr.bf16.gmra.mrb[0].mxu0 %v2921
        %v4060 = vpop.f32.mrb[0].mxu0
        %v4061 = vadd.f32 %v3708, %v4060
        %v4062 = vpop.f32.mrb[0].mxu0
        %v4063 = vpop.f32.mrb[0].mxu0
        %v4064 = vadd.f32 %v3711, %v4063
        %v4065 = vpop.f32.mrb[0].mxu0
        %4066 = vmatprep.mubr.bf16.mxu0 %v2932
        %4067 = vmatmul.mubr.bf16.gmra.mrb[0].mxu0 %v2931
        %v4068 = vpop.f32.mrb[0].mxu0
        %v4069 = vadd.f32 %v3716, %v4068
        %v4070 = vpop.f32.mrb[0].mxu0
        %v4071 = vpop.f32.mrb[0].mxu0
        %v4072 = vadd.f32 %v3719, %v4071
        %v4073 = vpop.f32.mrb[0].mxu0
        %4074 = vmatprep.mubr.bf16.mxu0 %v2942
        %4075 = vmatmul.mubr.bf16.gmra.mrb[0].mxu0 %v2941
        %v4076 = vpop.f32.mrb[0].mxu0
        %v4077 = vadd.f32 %v3724, %v4076
        %v4078 = vpop.f32.mrb[0].mxu0
        %v4079 = vpop.f32.mrb[0].mxu0
        %v4080 = vadd.f32 %v3727, %v4079
        %v4081 = vpop.f32.mrb[0].mxu0
        %4082 = vmatprep.mubr.bf16.mxu0 %v2952
        %4083 = vmatmul.mubr.bf16.gmra.mrb[0].mxu0 %v2951
        %v4084 = vpop.f32.mrb[0].mxu0
        %v4085 = vadd.f32 %v3732, %v4084
        %v4086 = vpop.f32.mrb[0].mxu0
        %v4087 = vpop.f32.mrb[0].mxu0
        %v4088 = vadd.f32 %v3735, %v4087
        %v4089 = vpop.f32.mrb[0].mxu0
        %4090 = vmatprep.mubr.bf16.mxu0 %v2962
        %4091 = vmatmul.mubr.bf16.gmra.mrb[0].mxu0 %v2961
        %v4092 = vpop.f32.mrb[0].mxu0
        %v4093 = vadd.f32 %v3740, %v4092
        %v4094 = vpop.f32.mrb[0].mxu0
        %v4095 = vpop.f32.mrb[0].mxu0
        %v4096 = vadd.f32 %v3743, %v4095
        %v4097 = vpop.f32.mrb[0].mxu0
        %4098 = vmatprep.mubr.bf16.mxu0 %v2972
        %4099 = vmatmul.mubr.bf16.gmra.mrb[0].mxu0 %v2971
        %v4100 = vpop.f32.mrb[0].mxu0
        %v4101 = vadd.f32 %v3748, %v4100
        %v4102 = vpop.f32.mrb[0].mxu0
        %v4103 = vpop.f32.mrb[0].mxu0
        %v4104 = vadd.f32 %v3751, %v4103
        %v4105 = vpop.f32.mrb[0].mxu0
        %4106 = vmatprep.mubr.bf16.mxu0 %v2982
        %4107 = vmatmul.mubr.bf16.gmra.mrb[0].mxu0 %v2981
        %v4108 = vpop.f32.mrb[0].mxu0
        %v4109 = vadd.f32 %v3756, %v4108
        %v4110 = vpop.f32.mrb[0].mxu0
        %v4111 = vpop.f32.mrb[0].mxu0
        %v4112 = vadd.f32 %v3759, %v4111
        %v4113 = vpop.f32.mrb[0].mxu0
        %4114 = vmatprep.mubr.bf16.mxu0 %v2992
        %4115 = vmatmul.mubr.bf16.gmra.mrb[0].mxu0 %v2991
        %v4116 = vpop.f32.mrb[0].mxu0
        %v4117 = vadd.f32 %v3764, %v4116
        %v4118 = vpop.f32.mrb[0].mxu0
        %v4119 = vpop.f32.mrb[0].mxu0
        %v4120 = vadd.f32 %v3767, %v4119
        %v4121 = vpop.f32.mrb[0].mxu0
        %4122 = vmatprep.mubr.bf16.mxu0 %v3002
        %4123 = vmatmul.mubr.bf16.gmra.mrb[0].mxu0 %v3001
        %v4124 = vpop.f32.mrb[0].mxu0
        %v4125 = vadd.f32 %v3772, %v4124
        %v4126 = vpop.f32.mrb[0].mxu0
        %v4127 = vpop.f32.mrb[0].mxu0
        %v4128 = vadd.f32 %v3775, %v4127
        %v4129 = vpop.f32.mrb[0].mxu0
        %4130 = vmatprep.mubr.bf16.mxu0 %v3012
        %4131 = vmatmul.mubr.bf16.gmra.mrb[0].mxu0 %v3011
        %v4132 = vpop.f32.mrb[0].mxu0
        %v4133 = vadd.f32 %v3780, %v4132
        %v4134 = vpop.f32.mrb[0].mxu0
        %v4135 = vpop.f32.mrb[0].mxu0
        %v4136 = vadd.f32 %v3783, %v4135
        %v4137 = vpop.f32.mrb[0].mxu0
        %4138 = vmatprep.mubr.bf16.mxu0 %v3022
        %4139 = vmatmul.mubr.bf16.gmra.mrb[0].mxu0 %v3021
        %v4140 = vpop.f32.mrb[0].mxu0
        %v4141 = vadd.f32 %v3788, %v4140
        %v4142 = vpop.f32.mrb[0].mxu0
        %v4143 = vpop.f32.mrb[0].mxu0
        %v4144 = vadd.f32 %v3791, %v4143
        %v4145 = vpop.f32.mrb[0].mxu0
        %4146 = vmatprep.mubr.bf16.mxu0 %v3032
        %4147 = vmatmul.mubr.bf16.gmra.mrb[0].mxu0 %v3031
        %v4148 = vpop.f32.mrb[0].mxu0
        %v4149 = vadd.f32 %v3796, %v4148
        %v4150 = vpop.f32.mrb[0].mxu0
        %v4151 = vpop.f32.mrb[0].mxu0
        %v4152 = vadd.f32 %v3799, %v4151
        %v4153 = vpop.f32.mrb[0].mxu0
        %4154 = vmatprep.mubr.bf16.mxu0 %v3042
        %4155 = vmatmul.mubr.bf16.gmra.mrb[0].mxu0 %v3041
        %v4156 = vpop.f32.mrb[0].mxu0
        %v4157 = vadd.f32 %v3804, %v4156
        %v4158 = vpop.f32.mrb[0].mxu0
        %v4159 = vpop.f32.mrb[0].mxu0
        %v4160 = vadd.f32 %v3807, %v4159
        %v4161 = vpop.f32.mrb[0].mxu0
        %4162 = vmatprep.mubr.bf16.mxu0 %v3052
        %4163 = vmatmul.mubr.bf16.gmra.mrb[0].mxu0 %v3051
        %v4164 = vpop.f32.mrb[0].mxu0
        %v4165 = vadd.f32 %v3812, %v4164
        %v4166 = vpop.f32.mrb[0].mxu0
        %v4167 = vpop.f32.mrb[0].mxu0
        %v4168 = vadd.f32 %v3815, %v4167
        %v4169 = vpop.f32.mrb[0].mxu0
        %4170 = vmatprep.mubr.bf16.mxu0 %v3062
        %4171 = vmatmul.mubr.bf16.gmra.mrb[0].mxu0 %v3061
        %v4172 = vpop.f32.mrb[0].mxu0
        %v4173 = vadd.f32 %v3820, %v4172
        %v4174 = vpop.f32.mrb[0].mxu0
        %v4175 = vpop.f32.mrb[0].mxu0
        %v4176 = vadd.f32 %v3823, %v4175
        %v4177 = vpop.f32.mrb[0].mxu0
        %4178 = vmatprep.mubr.bf16.mxu0 %v3072
        %4179 = vmatmul.mubr.bf16.gmra.mrb[0].mxu0 %v3071
        %v4180 = vpop.f32.mrb[0].mxu0
        %v4181 = vadd.f32 %v3828, %v4180
        %v4182 = vpop.f32.mrb[0].mxu0
        %v4183 = vpop.f32.mrb[0].mxu0
        %v4184 = vadd.f32 %v3831, %v4183
        %v4185 = vpop.f32.mrb[0].mxu0
        %4186 = vmatprep.mubr.bf16.mxu0 %v3082
        %4187 = vmatmul.mubr.bf16.gmra.mrb[0].mxu0 %v3081
        %v4188 = vpop.f32.mrb[0].mxu0
        %v4189 = vadd.f32 %v3836, %v4188
        %v4190 = vpop.f32.mrb[0].mxu0
        %v4191 = vpop.f32.mrb[0].mxu0
        %v4192 = vadd.f32 %v3839, %v4191
        %v4193 = vpop.f32.mrb[0].mxu0
        %4194 = vdwg.mxu0
        %4195 = vmatprep.subr.bf16.mxu0 0
        %4196 = vmatpush1.bf16.msra.mxu0 %v1441
        %4197 = vmatprep.subr.bf16.mxu0 0
        %4198 = vmatpush1.bf16.msra.mxu0 %v1442
        %4199 = vmatprep.subr.bf16.mxu0 0
        %4200 = vmatpush1.bf16.msra.mxu0 %v1443
        %4201 = vmatprep.subr.bf16.mxu0 0
        %4202 = vmatpush1.bf16.msra.mxu0 %v1444
        %4203 = vmatprep.subr.bf16.mxu0 0
        %4204 = vmatpush1.bf16.msra.mxu0 %v1445
        %4205 = vmatprep.subr.bf16.mxu0 0
        %4206 = vmatpush1.bf16.msra.mxu0 %v1446
        %4207 = vmatprep.subr.bf16.mxu0 0
        %4208 = vmatpush1.bf16.msra.mxu0 %v1447
        %4209 = vmatprep.subr.bf16.mxu0 0
        %4210 = vmatpush1.bf16.msra.mxu0 %v1448
        %4211 = vmatprep.subr.bf16.mxu0 0
        %4212 = vmatpush1.bf16.msra.mxu0 %v1449
        %4213 = vmatprep.subr.bf16.mxu0 0
        %4214 = vmatpush1.bf16.msra.mxu0 %v1450
        %4215 = vmatprep.subr.bf16.mxu0 0
        %4216 = vmatpush1.bf16.msra.mxu0 %v1451
        %4217 = vmatprep.subr.bf16.mxu0 0
        %4218 = vmatpush1.bf16.msra.mxu0 %v1452
        %4219 = vmatprep.subr.bf16.mxu0 0
        %4220 = vmatpush1.bf16.msra.mxu0 %v1453
        %4221 = vmatprep.subr.bf16.mxu0 0
        %4222 = vmatpush1.bf16.msra.mxu0 %v1454
        %4223 = vmatprep.subr.bf16.mxu0 0
        %4224 = vmatpush1.bf16.msra.mxu0 %v1455
        %4225 = vmatprep.subr.bf16.mxu0 0
        %4226 = vmatpush1.bf16.msra.mxu0 %v1456
        %4227 = vmatprep.mubr.bf16.mxu0 %v2694
        %4228 = vmatmul.mubr.bf16.gmra.mrb[0].mxu0 %v2693
        %v4229 = vpop.f32.mrb[0].mxu0
        %v4230 = vadd.f32 %v3877, %v4229
        %v4231 = vpop.f32.mrb[0].mxu0
        %v4232 = vpop.f32.mrb[0].mxu0
        %v4233 = vadd.f32 %v3880, %v4232
        %v4234 = vpop.f32.mrb[0].mxu0
        %4235 = vmatprep.mubr.bf16.mxu0 %v2704
        %4236 = vmatmul.mubr.bf16.gmra.mrb[0].mxu0 %v2703
        %v4237 = vpop.f32.mrb[0].mxu0
        %v4238 = vadd.f32 %v3885, %v4237
        %v4239 = vpop.f32.mrb[0].mxu0
        %v4240 = vpop.f32.mrb[0].mxu0
        %v4241 = vadd.f32 %v3888, %v4240
        %v4242 = vpop.f32.mrb[0].mxu0
        %4243 = vmatprep.mubr.bf16.mxu0 %v2714
        %4244 = vmatmul.mubr.bf16.gmra.mrb[0].mxu0 %v2713
        %v4245 = vpop.f32.mrb[0].mxu0
        %v4246 = vadd.f32 %v3893, %v4245
        %v4247 = vpop.f32.mrb[0].mxu0
        %v4248 = vpop.f32.mrb[0].mxu0
        %v4249 = vadd.f32 %v3896, %v4248
        %v4250 = vpop.f32.mrb[0].mxu0
        %4251 = vmatprep.mubr.bf16.mxu0 %v2724
        %4252 = vmatmul.mubr.bf16.gmra.mrb[0].mxu0 %v2723
        %v4253 = vpop.f32.mrb[0].mxu0
        %v4254 = vadd.f32 %v3901, %v4253
        %v4255 = vpop.f32.mrb[0].mxu0
        %v4256 = vpop.f32.mrb[0].mxu0
        %v4257 = vadd.f32 %v3904, %v4256
        %v4258 = vpop.f32.mrb[0].mxu0
        %4259 = vmatprep.mubr.bf16.mxu0 %v2734
        %4260 = vmatmul.mubr.bf16.gmra.mrb[0].mxu0 %v2733
        %v4261 = vpop.f32.mrb[0].mxu0
        %v4262 = vadd.f32 %v3909, %v4261
        %v4263 = vpop.f32.mrb[0].mxu0
        %v4264 = vpop.f32.mrb[0].mxu0
        %v4265 = vadd.f32 %v3912, %v4264
        %v4266 = vpop.f32.mrb[0].mxu0
        %4267 = vmatprep.mubr.bf16.mxu0 %v2744
        %4268 = vmatmul.mubr.bf16.gmra.mrb[0].mxu0 %v2743
        %v4269 = vpop.f32.mrb[0].mxu0
        %v4270 = vadd.f32 %v3917, %v4269
        %v4271 = vpop.f32.mrb[0].mxu0
        %v4272 = vpop.f32.mrb[0].mxu0
        %v4273 = vadd.f32 %v3920, %v4272
        %v4274 = vpop.f32.mrb[0].mxu0
        %4275 = vmatprep.mubr.bf16.mxu0 %v2754
        %4276 = vmatmul.mubr.bf16.gmra.mrb[0].mxu0 %v2753
        %v4277 = vpop.f32.mrb[0].mxu0
        %v4278 = vadd.f32 %v3925, %v4277
        %v4279 = vpop.f32.mrb[0].mxu0
        %v4280 = vpop.f32.mrb[0].mxu0
        %v4281 = vadd.f32 %v3928, %v4280
        %v4282 = vpop.f32.mrb[0].mxu0
        %4283 = vmatprep.mubr.bf16.mxu0 %v2764
        %4284 = vmatmul.mubr.bf16.gmra.mrb[0].mxu0 %v2763
        %v4285 = vpop.f32.mrb[0].mxu0
        %v4286 = vadd.f32 %v3933, %v4285
        %v4287 = vpop.f32.mrb[0].mxu0
        %v4288 = vpop.f32.mrb[0].mxu0
        %v4289 = vadd.f32 %v3936, %v4288
        %v4290 = vpop.f32.mrb[0].mxu0
        %4291 = vmatprep.mubr.bf16.mxu0 %v2774
        %4292 = vmatmul.mubr.bf16.gmra.mrb[0].mxu0 %v2773
        %v4293 = vpop.f32.mrb[0].mxu0
        %v4294 = vadd.f32 %v3941, %v4293
        %v4295 = vpop.f32.mrb[0].mxu0
        %v4296 = vpop.f32.mrb[0].mxu0
        %v4297 = vadd.f32 %v3944, %v4296
        %v4298 = vpop.f32.mrb[0].mxu0
        %4299 = vmatprep.mubr.bf16.mxu0 %v2784
        %4300 = vmatmul.mubr.bf16.gmra.mrb[0].mxu0 %v2783
        %v4301 = vpop.f32.mrb[0].mxu0
        %v4302 = vadd.f32 %v3949, %v4301
        %v4303 = vpop.f32.mrb[0].mxu0
        %v4304 = vpop.f32.mrb[0].mxu0
        %v4305 = vadd.f32 %v3952, %v4304
        %v4306 = vpop.f32.mrb[0].mxu0
        %4307 = vmatprep.mubr.bf16.mxu0 %v2794
        %4308 = vmatmul.mubr.bf16.gmra.mrb[0].mxu0 %v2793
        %v4309 = vpop.f32.mrb[0].mxu0
        %v4310 = vadd.f32 %v3957, %v4309
        %v4311 = vpop.f32.mrb[0].mxu0
        %v4312 = vpop.f32.mrb[0].mxu0
        %v4313 = vadd.f32 %v3960, %v4312
        %v4314 = vpop.f32.mrb[0].mxu0
        %4315 = vmatprep.mubr.bf16.mxu0 %v2804
        %4316 = vmatmul.mubr.bf16.gmra.mrb[0].mxu0 %v2803
        %v4317 = vpop.f32.mrb[0].mxu0
        %v4318 = vadd.f32 %v3965, %v4317
        %v4319 = vpop.f32.mrb[0].mxu0
        %v4320 = vpop.f32.mrb[0].mxu0
        %v4321 = vadd.f32 %v3968, %v4320
        %v4322 = vpop.f32.mrb[0].mxu0
        %4323 = vmatprep.mubr.bf16.mxu0 %v2814
        %4324 = vmatmul.mubr.bf16.gmra.mrb[0].mxu0 %v2813
        %v4325 = vpop.f32.mrb[0].mxu0
        %v4326 = vadd.f32 %v3973, %v4325
        %v4327 = vpop.f32.mrb[0].mxu0
        %v4328 = vpop.f32.mrb[0].mxu0
        %v4329 = vadd.f32 %v3976, %v4328
        %v4330 = vpop.f32.mrb[0].mxu0
        %4331 = vmatprep.mubr.bf16.mxu0 %v2824
        %4332 = vmatmul.mubr.bf16.gmra.mrb[0].mxu0 %v2823
        %v4333 = vpop.f32.mrb[0].mxu0
        %v4334 = vadd.f32 %v3981, %v4333
        %v4335 = vpop.f32.mrb[0].mxu0
        %v4336 = vpop.f32.mrb[0].mxu0
        %v4337 = vadd.f32 %v3984, %v4336
        %v4338 = vpop.f32.mrb[0].mxu0
        %4339 = vmatprep.mubr.bf16.mxu0 %v2834
        %4340 = vmatmul.mubr.bf16.gmra.mrb[0].mxu0 %v2833
        %v4341 = vpop.f32.mrb[0].mxu0
        %v4342 = vadd.f32 %v3989, %v4341
        %v4343 = vpop.f32.mrb[0].mxu0
        %v4344 = vpop.f32.mrb[0].mxu0
        %v4345 = vadd.f32 %v3992, %v4344
        %v4346 = vpop.f32.mrb[0].mxu0
        %4347 = vmatprep.mubr.bf16.mxu0 %v2844
        %4348 = vmatmul.mubr.bf16.gmra.mrb[0].mxu0 %v2843
        %v4349 = vpop.f32.mrb[0].mxu0
        %v4350 = vadd.f32 %v3997, %v4349
        %v4351 = vpop.f32.mrb[0].mxu0
        %v4352 = vpop.f32.mrb[0].mxu0
        %v4353 = vadd.f32 %v4000, %v4352
        %v4354 = vpop.f32.mrb[0].mxu0
        %4355 = vmatprep.mubr.bf16.mxu0 %v2854
        %4356 = vmatmul.mubr.bf16.gmra.mrb[0].mxu0 %v2853
        %v4357 = vpop.f32.mrb[0].mxu0
        %v4358 = vadd.f32 %v4005, %v4357
        %v4359 = vpop.f32.mrb[0].mxu0
        %v4360 = vpop.f32.mrb[0].mxu0
        %v4361 = vadd.f32 %v4008, %v4360
        %v4362 = vpop.f32.mrb[0].mxu0
        %4363 = vmatprep.mubr.bf16.mxu0 %v2864
        %4364 = vmatmul.mubr.bf16.gmra.mrb[0].mxu0 %v2863
        %v4365 = vpop.f32.mrb[0].mxu0
        %v4366 = vadd.f32 %v4013, %v4365
        %v4367 = vpop.f32.mrb[0].mxu0
        %v4368 = vpop.f32.mrb[0].mxu0
        %v4369 = vadd.f32 %v4016, %v4368
        %v4370 = vpop.f32.mrb[0].mxu0
        %4371 = vmatprep.mubr.bf16.mxu0 %v2874
        %4372 = vmatmul.mubr.bf16.gmra.mrb[0].mxu0 %v2873
        %v4373 = vpop.f32.mrb[0].mxu0
        %v4374 = vadd.f32 %v4021, %v4373
        %v4375 = vpop.f32.mrb[0].mxu0
        %v4376 = vpop.f32.mrb[0].mxu0
        %v4377 = vadd.f32 %v4024, %v4376
        %v4378 = vpop.f32.mrb[0].mxu0
        %4379 = vmatprep.mubr.bf16.mxu0 %v2884
        %4380 = vmatmul.mubr.bf16.gmra.mrb[0].mxu0 %v2883
        %v4381 = vpop.f32.mrb[0].mxu0
        %v4382 = vadd.f32 %v4029, %v4381
        %v4383 = vpop.f32.mrb[0].mxu0
        %v4384 = vpop.f32.mrb[0].mxu0
        %v4385 = vadd.f32 %v4032, %v4384
        %v4386 = vpop.f32.mrb[0].mxu0
        %4387 = vmatprep.mubr.bf16.mxu0 %v2894
        %4388 = vmatmul.mubr.bf16.gmra.mrb[0].mxu0 %v2893
        %v4389 = vpop.f32.mrb[0].mxu0
        %v4390 = vadd.f32 %v4037, %v4389
        %v4391 = vpop.f32.mrb[0].mxu0
        %v4392 = vpop.f32.mrb[0].mxu0
        %v4393 = vadd.f32 %v4040, %v4392
        %v4394 = vpop.f32.mrb[0].mxu0
        %4395 = vmatprep.mubr.bf16.mxu0 %v2904
        %4396 = vmatmul.mubr.bf16.gmra.mrb[0].mxu0 %v2903
        %v4397 = vpop.f32.mrb[0].mxu0
        %v4398 = vadd.f32 %v4045, %v4397
        %v4399 = vpop.f32.mrb[0].mxu0
        %v4400 = vpop.f32.mrb[0].mxu0
        %v4401 = vadd.f32 %v4048, %v4400
        %v4402 = vpop.f32.mrb[0].mxu0
        %4403 = vmatprep.mubr.bf16.mxu0 %v2914
        %4404 = vmatmul.mubr.bf16.gmra.mrb[0].mxu0 %v2913
        %v4405 = vpop.f32.mrb[0].mxu0
        %v4406 = vadd.f32 %v4053, %v4405
        %v4407 = vpop.f32.mrb[0].mxu0
        %v4408 = vpop.f32.mrb[0].mxu0
        %v4409 = vadd.f32 %v4056, %v4408
        %v4410 = vpop.f32.mrb[0].mxu0
        %4411 = vmatprep.mubr.bf16.mxu0 %v2924
        %4412 = vmatmul.mubr.bf16.gmra.mrb[0].mxu0 %v2923
        %v4413 = vpop.f32.mrb[0].mxu0
        %v4414 = vadd.f32 %v4061, %v4413
        %v4415 = vpop.f32.mrb[0].mxu0
        %v4416 = vpop.f32.mrb[0].mxu0
        %v4417 = vadd.f32 %v4064, %v4416
        %v4418 = vpop.f32.mrb[0].mxu0
        %4419 = vmatprep.mubr.bf16.mxu0 %v2934
        %4420 = vmatmul.mubr.bf16.gmra.mrb[0].mxu0 %v2933
        %v4421 = vpop.f32.mrb[0].mxu0
        %v4422 = vadd.f32 %v4069, %v4421
        %v4423 = vpop.f32.mrb[0].mxu0
        %v4424 = vpop.f32.mrb[0].mxu0
        %v4425 = vadd.f32 %v4072, %v4424
        %v4426 = vpop.f32.mrb[0].mxu0
        %4427 = vmatprep.mubr.bf16.mxu0 %v2944
        %4428 = vmatmul.mubr.bf16.gmra.mrb[0].mxu0 %v2943
        %v4429 = vpop.f32.mrb[0].mxu0
        %v4430 = vadd.f32 %v4077, %v4429
        %v4431 = vpop.f32.mrb[0].mxu0
        %v4432 = vpop.f32.mrb[0].mxu0
        %v4433 = vadd.f32 %v4080, %v4432
        %v4434 = vpop.f32.mrb[0].mxu0
        %4435 = vmatprep.mubr.bf16.mxu0 %v2954
        %4436 = vmatmul.mubr.bf16.gmra.mrb[0].mxu0 %v2953
        %v4437 = vpop.f32.mrb[0].mxu0
        %v4438 = vadd.f32 %v4085, %v4437
        %v4439 = vpop.f32.mrb[0].mxu0
        %v4440 = vpop.f32.mrb[0].mxu0
        %v4441 = vadd.f32 %v4088, %v4440
        %v4442 = vpop.f32.mrb[0].mxu0
        %4443 = vmatprep.mubr.bf16.mxu0 %v2964
        %4444 = vmatmul.mubr.bf16.gmra.mrb[0].mxu0 %v2963
        %v4445 = vpop.f32.mrb[0].mxu0
        %v4446 = vadd.f32 %v4093, %v4445
        %v4447 = vpop.f32.mrb[0].mxu0
        %v4448 = vpop.f32.mrb[0].mxu0
        %v4449 = vadd.f32 %v4096, %v4448
        %v4450 = vpop.f32.mrb[0].mxu0
        %4451 = vmatprep.mubr.bf16.mxu0 %v2974
        %4452 = vmatmul.mubr.bf16.gmra.mrb[0].mxu0 %v2973
        %v4453 = vpop.f32.mrb[0].mxu0
        %v4454 = vadd.f32 %v4101, %v4453
        %v4455 = vpop.f32.mrb[0].mxu0
        %v4456 = vpop.f32.mrb[0].mxu0
        %v4457 = vadd.f32 %v4104, %v4456
        %v4458 = vpop.f32.mrb[0].mxu0
        %4459 = vmatprep.mubr.bf16.mxu0 %v2984
        %4460 = vmatmul.mubr.bf16.gmra.mrb[0].mxu0 %v2983
        %v4461 = vpop.f32.mrb[0].mxu0
        %v4462 = vadd.f32 %v4109, %v4461
        %v4463 = vpop.f32.mrb[0].mxu0
        %v4464 = vpop.f32.mrb[0].mxu0
        %v4465 = vadd.f32 %v4112, %v4464
        %v4466 = vpop.f32.mrb[0].mxu0
        %4467 = vmatprep.mubr.bf16.mxu0 %v2994
        %4468 = vmatmul.mubr.bf16.gmra.mrb[0].mxu0 %v2993
        %v4469 = vpop.f32.mrb[0].mxu0
        %v4470 = vadd.f32 %v4117, %v4469
        %v4471 = vpop.f32.mrb[0].mxu0
        %v4472 = vpop.f32.mrb[0].mxu0
        %v4473 = vadd.f32 %v4120, %v4472
        %v4474 = vpop.f32.mrb[0].mxu0
        %4475 = vmatprep.mubr.bf16.mxu0 %v3004
        %4476 = vmatmul.mubr.bf16.gmra.mrb[0].mxu0 %v3003
        %v4477 = vpop.f32.mrb[0].mxu0
        %v4478 = vadd.f32 %v4125, %v4477
        %v4479 = vpop.f32.mrb[0].mxu0
        %v4480 = vpop.f32.mrb[0].mxu0
        %v4481 = vadd.f32 %v4128, %v4480
        %v4482 = vpop.f32.mrb[0].mxu0
        %4483 = vmatprep.mubr.bf16.mxu0 %v3014
        %4484 = vmatmul.mubr.bf16.gmra.mrb[0].mxu0 %v3013
        %v4485 = vpop.f32.mrb[0].mxu0
        %v4486 = vadd.f32 %v4133, %v4485
        %v4487 = vpop.f32.mrb[0].mxu0
        %v4488 = vpop.f32.mrb[0].mxu0
        %v4489 = vadd.f32 %v4136, %v4488
        %v4490 = vpop.f32.mrb[0].mxu0
        %4491 = vmatprep.mubr.bf16.mxu0 %v3024
        %4492 = vmatmul.mubr.bf16.gmra.mrb[0].mxu0 %v3023
        %v4493 = vpop.f32.mrb[0].mxu0
        %v4494 = vadd.f32 %v4141, %v4493
        %v4495 = vpop.f32.mrb[0].mxu0
        %v4496 = vpop.f32.mrb[0].mxu0
        %v4497 = vadd.f32 %v4144, %v4496
        %v4498 = vpop.f32.mrb[0].mxu0
        %4499 = vmatprep.mubr.bf16.mxu0 %v3034
        %4500 = vmatmul.mubr.bf16.gmra.mrb[0].mxu0 %v3033
        %v4501 = vpop.f32.mrb[0].mxu0
        %v4502 = vadd.f32 %v4149, %v4501
        %v4503 = vpop.f32.mrb[0].mxu0
        %v4504 = vpop.f32.mrb[0].mxu0
        %v4505 = vadd.f32 %v4152, %v4504
        %v4506 = vpop.f32.mrb[0].mxu0
        %4507 = vmatprep.mubr.bf16.mxu0 %v3044
        %4508 = vmatmul.mubr.bf16.gmra.mrb[0].mxu0 %v3043
        %v4509 = vpop.f32.mrb[0].mxu0
        %v4510 = vadd.f32 %v4157, %v4509
        %v4511 = vpop.f32.mrb[0].mxu0
        %v4512 = vpop.f32.mrb[0].mxu0
        %v4513 = vadd.f32 %v4160, %v4512
        %v4514 = vpop.f32.mrb[0].mxu0
        %4515 = vmatprep.mubr.bf16.mxu0 %v3054
        %4516 = vmatmul.mubr.bf16.gmra.mrb[0].mxu0 %v3053
        %v4517 = vpop.f32.mrb[0].mxu0
        %v4518 = vadd.f32 %v4165, %v4517
        %v4519 = vpop.f32.mrb[0].mxu0
        %v4520 = vpop.f32.mrb[0].mxu0
        %v4521 = vadd.f32 %v4168, %v4520
        %v4522 = vpop.f32.mrb[0].mxu0
        %4523 = vmatprep.mubr.bf16.mxu0 %v3064
        %4524 = vmatmul.mubr.bf16.gmra.mrb[0].mxu0 %v3063
        %v4525 = vpop.f32.mrb[0].mxu0
        %v4526 = vadd.f32 %v4173, %v4525
        %v4527 = vpop.f32.mrb[0].mxu0
        %v4528 = vpop.f32.mrb[0].mxu0
        %v4529 = vadd.f32 %v4176, %v4528
        %v4530 = vpop.f32.mrb[0].mxu0
        %4531 = vmatprep.mubr.bf16.mxu0 %v3074
        %4532 = vmatmul.mubr.bf16.gmra.mrb[0].mxu0 %v3073
        %v4533 = vpop.f32.mrb[0].mxu0
        %v4534 = vadd.f32 %v4181, %v4533
        %v4535 = vpop.f32.mrb[0].mxu0
        %v4536 = vpop.f32.mrb[0].mxu0
        %v4537 = vadd.f32 %v4184, %v4536
        %v4538 = vpop.f32.mrb[0].mxu0
        %4539 = vmatprep.mubr.bf16.mxu0 %v3084
        %4540 = vmatmul.mubr.bf16.gmra.mrb[0].mxu0 %v3083
        %v4541 = vpop.f32.mrb[0].mxu0
        %v4542 = vadd.f32 %v4189, %v4541
        %v4543 = vpop.f32.mrb[0].mxu0
        %v4544 = vpop.f32.mrb[0].mxu0
        %v4545 = vadd.f32 %v4192, %v4544
        %v4546 = vpop.f32.mrb[0].mxu0
        %4547 = vdwg.mxu0
        %4548 = vmatprep.subr.bf16.mxu0 0
        %4549 = vmatpush1.bf16.msra.mxu0 %v1457
        %4550 = vmatprep.subr.bf16.mxu0 0
        %4551 = vmatpush1.bf16.msra.mxu0 %v1458
        %4552 = vmatprep.subr.bf16.mxu0 0
        %4553 = vmatpush1.bf16.msra.mxu0 %v1459
        %4554 = vmatprep.subr.bf16.mxu0 0
        %4555 = vmatpush1.bf16.msra.mxu0 %v1460
        %4556 = vmatprep.subr.bf16.mxu0 0
        %4557 = vmatpush1.bf16.msra.mxu0 %v1461
        %4558 = vmatprep.subr.bf16.mxu0 0
        %4559 = vmatpush1.bf16.msra.mxu0 %v1462
        %4560 = vmatprep.subr.bf16.mxu0 0
        %4561 = vmatpush1.bf16.msra.mxu0 %v1463
        %4562 = vmatprep.subr.bf16.mxu0 0
        %4563 = vmatpush1.bf16.msra.mxu0 %v1464
        %4564 = vmatprep.subr.bf16.mxu0 0
        %4565 = vmatpush1.bf16.msra.mxu0 %v1465
        %4566 = vmatprep.subr.bf16.mxu0 0
        %4567 = vmatpush1.bf16.msra.mxu0 %v1466
        %4568 = vmatprep.subr.bf16.mxu0 0
        %4569 = vmatpush1.bf16.msra.mxu0 %v1467
        %4570 = vmatprep.subr.bf16.mxu0 0
        %4571 = vmatpush1.bf16.msra.mxu0 %v1468
        %4572 = vmatprep.subr.bf16.mxu0 0
        %4573 = vmatpush1.bf16.msra.mxu0 %v1469
        %4574 = vmatprep.subr.bf16.mxu0 0
        %4575 = vmatpush1.bf16.msra.mxu0 %v1470
        %4576 = vmatprep.subr.bf16.mxu0 0
        %4577 = vmatpush1.bf16.msra.mxu0 %v1471
        %4578 = vmatprep.subr.bf16.mxu0 0
        %4579 = vmatpush1.bf16.msra.mxu0 %v1472
        %4580 = vmatprep.mubr.bf16.mxu0 %v2696
        %4581 = vmatmul.mubr.bf16.gmra.mrb[0].mxu0 %v2695
        %v4582 = vpop.f32.mrb[0].mxu0
        %v4583 = vadd.f32 %v4230, %v4582
        %v4584 = vpop.f32.mrb[0].mxu0
        %v4585 = vpop.f32.mrb[0].mxu0
        %v4586 = vadd.f32 %v4233, %v4585
        %v4587 = vpop.f32.mrb[0].mxu0
        %4588 = vmatprep.mubr.bf16.mxu0 %v2706
        %4589 = vmatmul.mubr.bf16.gmra.mrb[0].mxu0 %v2705
        %v4590 = vpop.f32.mrb[0].mxu0
        %v4591 = vadd.f32 %v4238, %v4590
        %v4592 = vpop.f32.mrb[0].mxu0
        %v4593 = vpop.f32.mrb[0].mxu0
        %v4594 = vadd.f32 %v4241, %v4593
        %v4595 = vpop.f32.mrb[0].mxu0
        %4596 = vmatprep.mubr.bf16.mxu0 %v2716
        %4597 = vmatmul.mubr.bf16.gmra.mrb[0].mxu0 %v2715
        %v4598 = vpop.f32.mrb[0].mxu0
        %v4599 = vadd.f32 %v4246, %v4598
        %v4600 = vpop.f32.mrb[0].mxu0
        %v4601 = vpop.f32.mrb[0].mxu0
        %v4602 = vadd.f32 %v4249, %v4601
        %v4603 = vpop.f32.mrb[0].mxu0
        %4604 = vmatprep.mubr.bf16.mxu0 %v2726
        %4605 = vmatmul.mubr.bf16.gmra.mrb[0].mxu0 %v2725
        %v4606 = vpop.f32.mrb[0].mxu0
        %v4607 = vadd.f32 %v4254, %v4606
        %v4608 = vpop.f32.mrb[0].mxu0
        %v4609 = vpop.f32.mrb[0].mxu0
        %v4610 = vadd.f32 %v4257, %v4609
        %v4611 = vpop.f32.mrb[0].mxu0
        %4612 = vmatprep.mubr.bf16.mxu0 %v2736
        %4613 = vmatmul.mubr.bf16.gmra.mrb[0].mxu0 %v2735
        %v4614 = vpop.f32.mrb[0].mxu0
        %v4615 = vadd.f32 %v4262, %v4614
        %v4616 = vpop.f32.mrb[0].mxu0
        %v4617 = vpop.f32.mrb[0].mxu0
        %v4618 = vadd.f32 %v4265, %v4617
        %v4619 = vpop.f32.mrb[0].mxu0
        %4620 = vmatprep.mubr.bf16.mxu0 %v2746
        %4621 = vmatmul.mubr.bf16.gmra.mrb[0].mxu0 %v2745
        %v4622 = vpop.f32.mrb[0].mxu0
        %v4623 = vadd.f32 %v4270, %v4622
        %v4624 = vpop.f32.mrb[0].mxu0
        %v4625 = vpop.f32.mrb[0].mxu0
        %v4626 = vadd.f32 %v4273, %v4625
        %v4627 = vpop.f32.mrb[0].mxu0
        %4628 = vmatprep.mubr.bf16.mxu0 %v2756
        %4629 = vmatmul.mubr.bf16.gmra.mrb[0].mxu0 %v2755
        %v4630 = vpop.f32.mrb[0].mxu0
        %v4631 = vadd.f32 %v4278, %v4630
        %v4632 = vpop.f32.mrb[0].mxu0
        %v4633 = vpop.f32.mrb[0].mxu0
        %v4634 = vadd.f32 %v4281, %v4633
        %v4635 = vpop.f32.mrb[0].mxu0
        %4636 = vmatprep.mubr.bf16.mxu0 %v2766
        %4637 = vmatmul.mubr.bf16.gmra.mrb[0].mxu0 %v2765
        %v4638 = vpop.f32.mrb[0].mxu0
        %v4639 = vadd.f32 %v4286, %v4638
        %v4640 = vpop.f32.mrb[0].mxu0
        %v4641 = vpop.f32.mrb[0].mxu0
        %v4642 = vadd.f32 %v4289, %v4641
        %v4643 = vpop.f32.mrb[0].mxu0
        %4644 = vmatprep.mubr.bf16.mxu0 %v2776
        %4645 = vmatmul.mubr.bf16.gmra.mrb[0].mxu0 %v2775
        %v4646 = vpop.f32.mrb[0].mxu0
        %v4647 = vadd.f32 %v4294, %v4646
        %v4648 = vpop.f32.mrb[0].mxu0
        %v4649 = vpop.f32.mrb[0].mxu0
        %v4650 = vadd.f32 %v4297, %v4649
        %v4651 = vpop.f32.mrb[0].mxu0
        %4652 = vmatprep.mubr.bf16.mxu0 %v2786
        %4653 = vmatmul.mubr.bf16.gmra.mrb[0].mxu0 %v2785
        %v4654 = vpop.f32.mrb[0].mxu0
        %v4655 = vadd.f32 %v4302, %v4654
        %v4656 = vpop.f32.mrb[0].mxu0
        %v4657 = vpop.f32.mrb[0].mxu0
        %v4658 = vadd.f32 %v4305, %v4657
        %v4659 = vpop.f32.mrb[0].mxu0
        %4660 = vmatprep.mubr.bf16.mxu0 %v2796
        %4661 = vmatmul.mubr.bf16.gmra.mrb[0].mxu0 %v2795
        %v4662 = vpop.f32.mrb[0].mxu0
        %v4663 = vadd.f32 %v4310, %v4662
        %v4664 = vpop.f32.mrb[0].mxu0
        %v4665 = vpop.f32.mrb[0].mxu0
        %v4666 = vadd.f32 %v4313, %v4665
        %v4667 = vpop.f32.mrb[0].mxu0
        %4668 = vmatprep.mubr.bf16.mxu0 %v2806
        %4669 = vmatmul.mubr.bf16.gmra.mrb[0].mxu0 %v2805
        %v4670 = vpop.f32.mrb[0].mxu0
        %v4671 = vadd.f32 %v4318, %v4670
        %v4672 = vpop.f32.mrb[0].mxu0
        %v4673 = vpop.f32.mrb[0].mxu0
        %v4674 = vadd.f32 %v4321, %v4673
        %v4675 = vpop.f32.mrb[0].mxu0
        %4676 = vmatprep.mubr.bf16.mxu0 %v2816
        %4677 = vmatmul.mubr.bf16.gmra.mrb[0].mxu0 %v2815
        %v4678 = vpop.f32.mrb[0].mxu0
        %v4679 = vadd.f32 %v4326, %v4678
        %v4680 = vpop.f32.mrb[0].mxu0
        %v4681 = vpop.f32.mrb[0].mxu0
        %v4682 = vadd.f32 %v4329, %v4681
        %v4683 = vpop.f32.mrb[0].mxu0
        %4684 = vmatprep.mubr.bf16.mxu0 %v2826
        %4685 = vmatmul.mubr.bf16.gmra.mrb[0].mxu0 %v2825
        %v4686 = vpop.f32.mrb[0].mxu0
        %v4687 = vadd.f32 %v4334, %v4686
        %v4688 = vpop.f32.mrb[0].mxu0
        %v4689 = vpop.f32.mrb[0].mxu0
        %v4690 = vadd.f32 %v4337, %v4689
        %v4691 = vpop.f32.mrb[0].mxu0
        %4692 = vmatprep.mubr.bf16.mxu0 %v2836
        %4693 = vmatmul.mubr.bf16.gmra.mrb[0].mxu0 %v2835
        %v4694 = vpop.f32.mrb[0].mxu0
        %v4695 = vadd.f32 %v4342, %v4694
        %v4696 = vpop.f32.mrb[0].mxu0
        %v4697 = vpop.f32.mrb[0].mxu0
        %v4698 = vadd.f32 %v4345, %v4697
        %v4699 = vpop.f32.mrb[0].mxu0
        %4700 = vmatprep.mubr.bf16.mxu0 %v2846
        %4701 = vmatmul.mubr.bf16.gmra.mrb[0].mxu0 %v2845
        %v4702 = vpop.f32.mrb[0].mxu0
        %v4703 = vadd.f32 %v4350, %v4702
        %v4704 = vpop.f32.mrb[0].mxu0
        %v4705 = vpop.f32.mrb[0].mxu0
        %v4706 = vadd.f32 %v4353, %v4705
        %v4707 = vpop.f32.mrb[0].mxu0
        %4708 = vmatprep.mubr.bf16.mxu0 %v2856
        %4709 = vmatmul.mubr.bf16.gmra.mrb[0].mxu0 %v2855
        %v4710 = vpop.f32.mrb[0].mxu0
        %v4711 = vadd.f32 %v4358, %v4710
        %v4712 = vpop.f32.mrb[0].mxu0
        %v4713 = vpop.f32.mrb[0].mxu0
        %v4714 = vadd.f32 %v4361, %v4713
        %v4715 = vpop.f32.mrb[0].mxu0
        %4716 = vmatprep.mubr.bf16.mxu0 %v2866
        %4717 = vmatmul.mubr.bf16.gmra.mrb[0].mxu0 %v2865
        %v4718 = vpop.f32.mrb[0].mxu0
        %v4719 = vadd.f32 %v4366, %v4718
        %v4720 = vpop.f32.mrb[0].mxu0
        %v4721 = vpop.f32.mrb[0].mxu0
        %v4722 = vadd.f32 %v4369, %v4721
        %v4723 = vpop.f32.mrb[0].mxu0
        %4724 = vmatprep.mubr.bf16.mxu0 %v2876
        %4725 = vmatmul.mubr.bf16.gmra.mrb[0].mxu0 %v2875
        %v4726 = vpop.f32.mrb[0].mxu0
        %v4727 = vadd.f32 %v4374, %v4726
        %v4728 = vpop.f32.mrb[0].mxu0
        %v4729 = vpop.f32.mrb[0].mxu0
        %v4730 = vadd.f32 %v4377, %v4729
        %v4731 = vpop.f32.mrb[0].mxu0
        %4732 = vmatprep.mubr.bf16.mxu0 %v2886
        %4733 = vmatmul.mubr.bf16.gmra.mrb[0].mxu0 %v2885
        %v4734 = vpop.f32.mrb[0].mxu0
        %v4735 = vadd.f32 %v4382, %v4734
        %v4736 = vpop.f32.mrb[0].mxu0
        %v4737 = vpop.f32.mrb[0].mxu0
        %v4738 = vadd.f32 %v4385, %v4737
        %v4739 = vpop.f32.mrb[0].mxu0
        %4740 = vmatprep.mubr.bf16.mxu0 %v2896
        %4741 = vmatmul.mubr.bf16.gmra.mrb[0].mxu0 %v2895
        %v4742 = vpop.f32.mrb[0].mxu0
        %v4743 = vadd.f32 %v4390, %v4742
        %v4744 = vpop.f32.mrb[0].mxu0
        %v4745 = vpop.f32.mrb[0].mxu0
        %v4746 = vadd.f32 %v4393, %v4745
        %v4747 = vpop.f32.mrb[0].mxu0
        %4748 = vmatprep.mubr.bf16.mxu0 %v2906
        %4749 = vmatmul.mubr.bf16.gmra.mrb[0].mxu0 %v2905
        %v4750 = vpop.f32.mrb[0].mxu0
        %v4751 = vadd.f32 %v4398, %v4750
        %v4752 = vpop.f32.mrb[0].mxu0
        %v4753 = vpop.f32.mrb[0].mxu0
        %v4754 = vadd.f32 %v4401, %v4753
        %v4755 = vpop.f32.mrb[0].mxu0
        %4756 = vmatprep.mubr.bf16.mxu0 %v2916
        %4757 = vmatmul.mubr.bf16.gmra.mrb[0].mxu0 %v2915
        %v4758 = vpop.f32.mrb[0].mxu0
        %v4759 = vadd.f32 %v4406, %v4758
        %v4760 = vpop.f32.mrb[0].mxu0
        %v4761 = vpop.f32.mrb[0].mxu0
        %v4762 = vadd.f32 %v4409, %v4761
        %v4763 = vpop.f32.mrb[0].mxu0
        %4764 = vmatprep.mubr.bf16.mxu0 %v2926
        %4765 = vmatmul.mubr.bf16.gmra.mrb[0].mxu0 %v2925
        %v4766 = vpop.f32.mrb[0].mxu0
        %v4767 = vadd.f32 %v4414, %v4766
        %v4768 = vpop.f32.mrb[0].mxu0
        %v4769 = vpop.f32.mrb[0].mxu0
        %v4770 = vadd.f32 %v4417, %v4769
        %v4771 = vpop.f32.mrb[0].mxu0
        %4772 = vmatprep.mubr.bf16.mxu0 %v2936
        %4773 = vmatmul.mubr.bf16.gmra.mrb[0].mxu0 %v2935
        %v4774 = vpop.f32.mrb[0].mxu0
        %v4775 = vadd.f32 %v4422, %v4774
        %v4776 = vpop.f32.mrb[0].mxu0
        %v4777 = vpop.f32.mrb[0].mxu0
        %v4778 = vadd.f32 %v4425, %v4777
        %v4779 = vpop.f32.mrb[0].mxu0
        %4780 = vmatprep.mubr.bf16.mxu0 %v2946
        %4781 = vmatmul.mubr.bf16.gmra.mrb[0].mxu0 %v2945
        %v4782 = vpop.f32.mrb[0].mxu0
        %v4783 = vadd.f32 %v4430, %v4782
        %v4784 = vpop.f32.mrb[0].mxu0
        %v4785 = vpop.f32.mrb[0].mxu0
        %v4786 = vadd.f32 %v4433, %v4785
        %v4787 = vpop.f32.mrb[0].mxu0
        %4788 = vmatprep.mubr.bf16.mxu0 %v2956
        %4789 = vmatmul.mubr.bf16.gmra.mrb[0].mxu0 %v2955
        %v4790 = vpop.f32.mrb[0].mxu0
        %v4791 = vadd.f32 %v4438, %v4790
        %v4792 = vpop.f32.mrb[0].mxu0
        %v4793 = vpop.f32.mrb[0].mxu0
        %v4794 = vadd.f32 %v4441, %v4793
        %v4795 = vpop.f32.mrb[0].mxu0
        %4796 = vmatprep.mubr.bf16.mxu0 %v2966
        %4797 = vmatmul.mubr.bf16.gmra.mrb[0].mxu0 %v2965
        %v4798 = vpop.f32.mrb[0].mxu0
        %v4799 = vadd.f32 %v4446, %v4798
        %v4800 = vpop.f32.mrb[0].mxu0
        %v4801 = vpop.f32.mrb[0].mxu0
        %v4802 = vadd.f32 %v4449, %v4801
        %v4803 = vpop.f32.mrb[0].mxu0
        %4804 = vmatprep.mubr.bf16.mxu0 %v2976
        %4805 = vmatmul.mubr.bf16.gmra.mrb[0].mxu0 %v2975
        %v4806 = vpop.f32.mrb[0].mxu0
        %v4807 = vadd.f32 %v4454, %v4806
        %v4808 = vpop.f32.mrb[0].mxu0
        %v4809 = vpop.f32.mrb[0].mxu0
        %v4810 = vadd.f32 %v4457, %v4809
        %v4811 = vpop.f32.mrb[0].mxu0
        %4812 = vmatprep.mubr.bf16.mxu0 %v2986
        %4813 = vmatmul.mubr.bf16.gmra.mrb[0].mxu0 %v2985
        %v4814 = vpop.f32.mrb[0].mxu0
        %v4815 = vadd.f32 %v4462, %v4814
        %v4816 = vpop.f32.mrb[0].mxu0
        %v4817 = vpop.f32.mrb[0].mxu0
        %v4818 = vadd.f32 %v4465, %v4817
        %v4819 = vpop.f32.mrb[0].mxu0
        %4820 = vmatprep.mubr.bf16.mxu0 %v2996
        %4821 = vmatmul.mubr.bf16.gmra.mrb[0].mxu0 %v2995
        %v4822 = vpop.f32.mrb[0].mxu0
        %v4823 = vadd.f32 %v4470, %v4822
        %v4824 = vpop.f32.mrb[0].mxu0
        %v4825 = vpop.f32.mrb[0].mxu0
        %v4826 = vadd.f32 %v4473, %v4825
        %v4827 = vpop.f32.mrb[0].mxu0
        %4828 = vmatprep.mubr.bf16.mxu0 %v3006
        %4829 = vmatmul.mubr.bf16.gmra.mrb[0].mxu0 %v3005
        %v4830 = vpop.f32.mrb[0].mxu0
        %v4831 = vadd.f32 %v4478, %v4830
        %v4832 = vpop.f32.mrb[0].mxu0
        %v4833 = vpop.f32.mrb[0].mxu0
        %v4834 = vadd.f32 %v4481, %v4833
        %v4835 = vpop.f32.mrb[0].mxu0
        %4836 = vmatprep.mubr.bf16.mxu0 %v3016
        %4837 = vmatmul.mubr.bf16.gmra.mrb[0].mxu0 %v3015
        %v4838 = vpop.f32.mrb[0].mxu0
        %v4839 = vadd.f32 %v4486, %v4838
        %v4840 = vpop.f32.mrb[0].mxu0
        %v4841 = vpop.f32.mrb[0].mxu0
        %v4842 = vadd.f32 %v4489, %v4841
        %v4843 = vpop.f32.mrb[0].mxu0
        %4844 = vmatprep.mubr.bf16.mxu0 %v3026
        %4845 = vmatmul.mubr.bf16.gmra.mrb[0].mxu0 %v3025
        %v4846 = vpop.f32.mrb[0].mxu0
        %v4847 = vadd.f32 %v4494, %v4846
        %v4848 = vpop.f32.mrb[0].mxu0
        %v4849 = vpop.f32.mrb[0].mxu0
        %v4850 = vadd.f32 %v4497, %v4849
        %v4851 = vpop.f32.mrb[0].mxu0
        %4852 = vmatprep.mubr.bf16.mxu0 %v3036
        %4853 = vmatmul.mubr.bf16.gmra.mrb[0].mxu0 %v3035
        %v4854 = vpop.f32.mrb[0].mxu0
        %v4855 = vadd.f32 %v4502, %v4854
        %v4856 = vpop.f32.mrb[0].mxu0
        %v4857 = vpop.f32.mrb[0].mxu0
        %v4858 = vadd.f32 %v4505, %v4857
        %v4859 = vpop.f32.mrb[0].mxu0
        %4860 = vmatprep.mubr.bf16.mxu0 %v3046
        %4861 = vmatmul.mubr.bf16.gmra.mrb[0].mxu0 %v3045
        %v4862 = vpop.f32.mrb[0].mxu0
        %v4863 = vadd.f32 %v4510, %v4862
        %v4864 = vpop.f32.mrb[0].mxu0
        %v4865 = vpop.f32.mrb[0].mxu0
        %v4866 = vadd.f32 %v4513, %v4865
        %v4867 = vpop.f32.mrb[0].mxu0
        %4868 = vmatprep.mubr.bf16.mxu0 %v3056
        %4869 = vmatmul.mubr.bf16.gmra.mrb[0].mxu0 %v3055
        %v4870 = vpop.f32.mrb[0].mxu0
        %v4871 = vadd.f32 %v4518, %v4870
        %v4872 = vpop.f32.mrb[0].mxu0
        %v4873 = vpop.f32.mrb[0].mxu0
        %v4874 = vadd.f32 %v4521, %v4873
        %v4875 = vpop.f32.mrb[0].mxu0
        %4876 = vmatprep.mubr.bf16.mxu0 %v3066
        %4877 = vmatmul.mubr.bf16.gmra.mrb[0].mxu0 %v3065
        %v4878 = vpop.f32.mrb[0].mxu0
        %v4879 = vadd.f32 %v4526, %v4878
        %v4880 = vpop.f32.mrb[0].mxu0
        %v4881 = vpop.f32.mrb[0].mxu0
        %v4882 = vadd.f32 %v4529, %v4881
        %v4883 = vpop.f32.mrb[0].mxu0
        %4884 = vmatprep.mubr.bf16.mxu0 %v3076
        %4885 = vmatmul.mubr.bf16.gmra.mrb[0].mxu0 %v3075
        %v4886 = vpop.f32.mrb[0].mxu0
        %v4887 = vadd.f32 %v4534, %v4886
        %v4888 = vpop.f32.mrb[0].mxu0
        %v4889 = vpop.f32.mrb[0].mxu0
        %v4890 = vadd.f32 %v4537, %v4889
        %v4891 = vpop.f32.mrb[0].mxu0
        %4892 = vmatprep.mubr.bf16.mxu0 %v3086
        %4893 = vmatmul.mubr.bf16.gmra.mrb[0].mxu0 %v3085
        %v4894 = vpop.f32.mrb[0].mxu0
        %v4895 = vadd.f32 %v4542, %v4894
        %v4896 = vpop.f32.mrb[0].mxu0
        %v4897 = vpop.f32.mrb[0].mxu0
        %v4898 = vadd.f32 %v4545, %v4897
        %v4899 = vpop.f32.mrb[0].mxu0
        %4900 = vdwg.mxu0
        %4901 = vmatprep.subr.bf16.mxu0 0
        %4902 = vmatpush1.bf16.msra.mxu0 %v1473
        %4903 = vmatprep.subr.bf16.mxu0 0
        %4904 = vmatpush1.bf16.msra.mxu0 %v1474
        %4905 = vmatprep.subr.bf16.mxu0 0
        %4906 = vmatpush1.bf16.msra.mxu0 %v1475
        %4907 = vmatprep.subr.bf16.mxu0 0
        %4908 = vmatpush1.bf16.msra.mxu0 %v1476
        %4909 = vmatprep.subr.bf16.mxu0 0
        %4910 = vmatpush1.bf16.msra.mxu0 %v1477
        %4911 = vmatprep.subr.bf16.mxu0 0
        %4912 = vmatpush1.bf16.msra.mxu0 %v1478
        %4913 = vmatprep.subr.bf16.mxu0 0
        %4914 = vmatpush1.bf16.msra.mxu0 %v1479
        %4915 = vmatprep.subr.bf16.mxu0 0
        %4916 = vmatpush1.bf16.msra.mxu0 %v1480
        %4917 = vmatprep.subr.bf16.mxu0 0
        %4918 = vmatpush1.bf16.msra.mxu0 %v1481
        %4919 = vmatprep.subr.bf16.mxu0 0
        %4920 = vmatpush1.bf16.msra.mxu0 %v1482
        %4921 = vmatprep.subr.bf16.mxu0 0
        %4922 = vmatpush1.bf16.msra.mxu0 %v1483
        %4923 = vmatprep.subr.bf16.mxu0 0
        %4924 = vmatpush1.bf16.msra.mxu0 %v1484
        %4925 = vmatprep.subr.bf16.mxu0 0
        %4926 = vmatpush1.bf16.msra.mxu0 %v1485
        %4927 = vmatprep.subr.bf16.mxu0 0
        %4928 = vmatpush1.bf16.msra.mxu0 %v1486
        %4929 = vmatprep.subr.bf16.mxu0 0
        %4930 = vmatpush1.bf16.msra.mxu0 %v1487
        %4931 = vmatprep.subr.bf16.mxu0 0
        %4932 = vmatpush1.bf16.msra.mxu0 %v1488
        %4933 = vmatprep.mubr.bf16.mxu0 %v2698
        %4934 = vmatmul.mubr.bf16.gmra.mrb[0].mxu0 %v2697
        %v4935 = vpop.f32.mrb[0].mxu0
        %v4936 = vadd.f32 %v4583, %v4935
        %v4937 = vpop.f32.mrb[0].mxu0
        %v4938 = vpop.f32.mrb[0].mxu0
        %v4939 = vadd.f32 %v4586, %v4938
        %v4940 = vpop.f32.mrb[0].mxu0
        %4941 = vmatprep.mubr.bf16.mxu0 %v2708
        %4942 = vmatmul.mubr.bf16.gmra.mrb[0].mxu0 %v2707
        %v4943 = vpop.f32.mrb[0].mxu0
        %v4944 = vadd.f32 %v4591, %v4943
        %v4945 = vpop.f32.mrb[0].mxu0
        %v4946 = vpop.f32.mrb[0].mxu0
        %v4947 = vadd.f32 %v4594, %v4946
        %v4948 = vpop.f32.mrb[0].mxu0
        %4949 = vmatprep.mubr.bf16.mxu0 %v2718
        %4950 = vmatmul.mubr.bf16.gmra.mrb[0].mxu0 %v2717
        %v4951 = vpop.f32.mrb[0].mxu0
        %v4952 = vadd.f32 %v4599, %v4951
        %v4953 = vpop.f32.mrb[0].mxu0
        %v4954 = vpop.f32.mrb[0].mxu0
        %v4955 = vadd.f32 %v4602, %v4954
        %v4956 = vpop.f32.mrb[0].mxu0
        %4957 = vmatprep.mubr.bf16.mxu0 %v2728
        %4958 = vmatmul.mubr.bf16.gmra.mrb[0].mxu0 %v2727
        %v4959 = vpop.f32.mrb[0].mxu0
        %v4960 = vadd.f32 %v4607, %v4959
        %v4961 = vpop.f32.mrb[0].mxu0
        %v4962 = vpop.f32.mrb[0].mxu0
        %v4963 = vadd.f32 %v4610, %v4962
        %v4964 = vpop.f32.mrb[0].mxu0
        %4965 = vmatprep.mubr.bf16.mxu0 %v2738
        %4966 = vmatmul.mubr.bf16.gmra.mrb[0].mxu0 %v2737
        %v4967 = vpop.f32.mrb[0].mxu0
        %v4968 = vadd.f32 %v4615, %v4967
        %v4969 = vpop.f32.mrb[0].mxu0
        %v4970 = vpop.f32.mrb[0].mxu0
        %v4971 = vadd.f32 %v4618, %v4970
        %v4972 = vpop.f32.mrb[0].mxu0
        %4973 = vmatprep.mubr.bf16.mxu0 %v2748
        %4974 = vmatmul.mubr.bf16.gmra.mrb[0].mxu0 %v2747
        %v4975 = vpop.f32.mrb[0].mxu0
        %v4976 = vadd.f32 %v4623, %v4975
        %v4977 = vpop.f32.mrb[0].mxu0
        %v4978 = vpop.f32.mrb[0].mxu0
        %v4979 = vadd.f32 %v4626, %v4978
        %v4980 = vpop.f32.mrb[0].mxu0
        %4981 = vmatprep.mubr.bf16.mxu0 %v2758
        %4982 = vmatmul.mubr.bf16.gmra.mrb[0].mxu0 %v2757
        %v4983 = vpop.f32.mrb[0].mxu0
        %v4984 = vadd.f32 %v4631, %v4983
        %v4985 = vpop.f32.mrb[0].mxu0
        %v4986 = vpop.f32.mrb[0].mxu0
        %v4987 = vadd.f32 %v4634, %v4986
        %v4988 = vpop.f32.mrb[0].mxu0
        %4989 = vmatprep.mubr.bf16.mxu0 %v2768
        %4990 = vmatmul.mubr.bf16.gmra.mrb[0].mxu0 %v2767
        %v4991 = vpop.f32.mrb[0].mxu0
        %v4992 = vadd.f32 %v4639, %v4991
        %v4993 = vpop.f32.mrb[0].mxu0
        %v4994 = vpop.f32.mrb[0].mxu0
        %v4995 = vadd.f32 %v4642, %v4994
        %v4996 = vpop.f32.mrb[0].mxu0
        %4997 = vmatprep.mubr.bf16.mxu0 %v2778
        %4998 = vmatmul.mubr.bf16.gmra.mrb[0].mxu0 %v2777
        %v4999 = vpop.f32.mrb[0].mxu0
        %v5000 = vadd.f32 %v4647, %v4999
        %v5001 = vpop.f32.mrb[0].mxu0
        %v5002 = vpop.f32.mrb[0].mxu0
        %v5003 = vadd.f32 %v4650, %v5002
        %v5004 = vpop.f32.mrb[0].mxu0
        %5005 = vmatprep.mubr.bf16.mxu0 %v2788
        %5006 = vmatmul.mubr.bf16.gmra.mrb[0].mxu0 %v2787
        %v5007 = vpop.f32.mrb[0].mxu0
        %v5008 = vadd.f32 %v4655, %v5007
        %v5009 = vpop.f32.mrb[0].mxu0
        %v5010 = vpop.f32.mrb[0].mxu0
        %v5011 = vadd.f32 %v4658, %v5010
        %v5012 = vpop.f32.mrb[0].mxu0
        %5013 = vmatprep.mubr.bf16.mxu0 %v2798
        %5014 = vmatmul.mubr.bf16.gmra.mrb[0].mxu0 %v2797
        %v5015 = vpop.f32.mrb[0].mxu0
        %v5016 = vadd.f32 %v4663, %v5015
        %v5017 = vpop.f32.mrb[0].mxu0
        %v5018 = vpop.f32.mrb[0].mxu0
        %v5019 = vadd.f32 %v4666, %v5018
        %v5020 = vpop.f32.mrb[0].mxu0
        %5021 = vmatprep.mubr.bf16.mxu0 %v2808
        %5022 = vmatmul.mubr.bf16.gmra.mrb[0].mxu0 %v2807
        %v5023 = vpop.f32.mrb[0].mxu0
        %v5024 = vadd.f32 %v4671, %v5023
        %v5025 = vpop.f32.mrb[0].mxu0
        %v5026 = vpop.f32.mrb[0].mxu0
        %v5027 = vadd.f32 %v4674, %v5026
        %v5028 = vpop.f32.mrb[0].mxu0
        %5029 = vmatprep.mubr.bf16.mxu0 %v2818
        %5030 = vmatmul.mubr.bf16.gmra.mrb[0].mxu0 %v2817
        %v5031 = vpop.f32.mrb[0].mxu0
        %v5032 = vadd.f32 %v4679, %v5031
        %v5033 = vpop.f32.mrb[0].mxu0
        %v5034 = vpop.f32.mrb[0].mxu0
        %v5035 = vadd.f32 %v4682, %v5034
        %v5036 = vpop.f32.mrb[0].mxu0
        %5037 = vmatprep.mubr.bf16.mxu0 %v2828
        %5038 = vmatmul.mubr.bf16.gmra.mrb[0].mxu0 %v2827
        %v5039 = vpop.f32.mrb[0].mxu0
        %v5040 = vadd.f32 %v4687, %v5039
        %v5041 = vpop.f32.mrb[0].mxu0
        %v5042 = vpop.f32.mrb[0].mxu0
        %v5043 = vadd.f32 %v4690, %v5042
        %v5044 = vpop.f32.mrb[0].mxu0
        %5045 = vmatprep.mubr.bf16.mxu0 %v2838
        %5046 = vmatmul.mubr.bf16.gmra.mrb[0].mxu0 %v2837
        %v5047 = vpop.f32.mrb[0].mxu0
        %v5048 = vadd.f32 %v4695, %v5047
        %v5049 = vpop.f32.mrb[0].mxu0
        %v5050 = vpop.f32.mrb[0].mxu0
        %v5051 = vadd.f32 %v4698, %v5050
        %v5052 = vpop.f32.mrb[0].mxu0
        %5053 = vmatprep.mubr.bf16.mxu0 %v2848
        %5054 = vmatmul.mubr.bf16.gmra.mrb[0].mxu0 %v2847
        %v5055 = vpop.f32.mrb[0].mxu0
        %v5056 = vadd.f32 %v4703, %v5055
        %v5057 = vpop.f32.mrb[0].mxu0
        %v5058 = vpop.f32.mrb[0].mxu0
        %v5059 = vadd.f32 %v4706, %v5058
        %v5060 = vpop.f32.mrb[0].mxu0
        %5061 = vmatprep.mubr.bf16.mxu0 %v2858
        %5062 = vmatmul.mubr.bf16.gmra.mrb[0].mxu0 %v2857
        %v5063 = vpop.f32.mrb[0].mxu0
        %v5064 = vadd.f32 %v4711, %v5063
        %v5065 = vpop.f32.mrb[0].mxu0
        %v5066 = vpop.f32.mrb[0].mxu0
        %v5067 = vadd.f32 %v4714, %v5066
        %v5068 = vpop.f32.mrb[0].mxu0
        %5069 = vmatprep.mubr.bf16.mxu0 %v2868
        %5070 = vmatmul.mubr.bf16.gmra.mrb[0].mxu0 %v2867
        %v5071 = vpop.f32.mrb[0].mxu0
        %v5072 = vadd.f32 %v4719, %v5071
        %v5073 = vpop.f32.mrb[0].mxu0
        %v5074 = vpop.f32.mrb[0].mxu0
        %v5075 = vadd.f32 %v4722, %v5074
        %v5076 = vpop.f32.mrb[0].mxu0
        %5077 = vmatprep.mubr.bf16.mxu0 %v2878
        %5078 = vmatmul.mubr.bf16.gmra.mrb[0].mxu0 %v2877
        %v5079 = vpop.f32.mrb[0].mxu0
        %v5080 = vadd.f32 %v4727, %v5079
        %v5081 = vpop.f32.mrb[0].mxu0
        %v5082 = vpop.f32.mrb[0].mxu0
        %v5083 = vadd.f32 %v4730, %v5082
        %v5084 = vpop.f32.mrb[0].mxu0
        %5085 = vmatprep.mubr.bf16.mxu0 %v2888
        %5086 = vmatmul.mubr.bf16.gmra.mrb[0].mxu0 %v2887
        %v5087 = vpop.f32.mrb[0].mxu0
        %v5088 = vadd.f32 %v4735, %v5087
        %v5089 = vpop.f32.mrb[0].mxu0
        %v5090 = vpop.f32.mrb[0].mxu0
        %v5091 = vadd.f32 %v4738, %v5090
        %v5092 = vpop.f32.mrb[0].mxu0
        %5093 = vmatprep.mubr.bf16.mxu0 %v2898
        %5094 = vmatmul.mubr.bf16.gmra.mrb[0].mxu0 %v2897
        %v5095 = vpop.f32.mrb[0].mxu0
        %v5096 = vadd.f32 %v4743, %v5095
        %v5097 = vpop.f32.mrb[0].mxu0
        %v5098 = vpop.f32.mrb[0].mxu0
        %v5099 = vadd.f32 %v4746, %v5098
        %v5100 = vpop.f32.mrb[0].mxu0
        %5101 = vmatprep.mubr.bf16.mxu0 %v2908
        %5102 = vmatmul.mubr.bf16.gmra.mrb[0].mxu0 %v2907
        %v5103 = vpop.f32.mrb[0].mxu0
        %v5104 = vadd.f32 %v4751, %v5103
        %v5105 = vpop.f32.mrb[0].mxu0
        %v5106 = vpop.f32.mrb[0].mxu0
        %v5107 = vadd.f32 %v4754, %v5106
        %v5108 = vpop.f32.mrb[0].mxu0
        %5109 = vmatprep.mubr.bf16.mxu0 %v2918
        %5110 = vmatmul.mubr.bf16.gmra.mrb[0].mxu0 %v2917
        %v5111 = vpop.f32.mrb[0].mxu0
        %v5112 = vadd.f32 %v4759, %v5111
        %v5113 = vpop.f32.mrb[0].mxu0
        %v5114 = vpop.f32.mrb[0].mxu0
        %v5115 = vadd.f32 %v4762, %v5114
        %v5116 = vpop.f32.mrb[0].mxu0
        %5117 = vmatprep.mubr.bf16.mxu0 %v2928
        %5118 = vmatmul.mubr.bf16.gmra.mrb[0].mxu0 %v2927
        %v5119 = vpop.f32.mrb[0].mxu0
        %v5120 = vadd.f32 %v4767, %v5119
        %v5121 = vpop.f32.mrb[0].mxu0
        %v5122 = vpop.f32.mrb[0].mxu0
        %v5123 = vadd.f32 %v4770, %v5122
        %v5124 = vpop.f32.mrb[0].mxu0
        %5125 = vmatprep.mubr.bf16.mxu0 %v2938
        %5126 = vmatmul.mubr.bf16.gmra.mrb[0].mxu0 %v2937
        %v5127 = vpop.f32.mrb[0].mxu0
        %v5128 = vadd.f32 %v4775, %v5127
        %v5129 = vpop.f32.mrb[0].mxu0
        %v5130 = vpop.f32.mrb[0].mxu0
        %v5131 = vadd.f32 %v4778, %v5130
        %v5132 = vpop.f32.mrb[0].mxu0
        %5133 = vmatprep.mubr.bf16.mxu0 %v2948
        %5134 = vmatmul.mubr.bf16.gmra.mrb[0].mxu0 %v2947
        %v5135 = vpop.f32.mrb[0].mxu0
        %v5136 = vadd.f32 %v4783, %v5135
        %v5137 = vpop.f32.mrb[0].mxu0
        %v5138 = vpop.f32.mrb[0].mxu0
        %v5139 = vadd.f32 %v4786, %v5138
        %v5140 = vpop.f32.mrb[0].mxu0
        %5141 = vmatprep.mubr.bf16.mxu0 %v2958
        %5142 = vmatmul.mubr.bf16.gmra.mrb[0].mxu0 %v2957
        %v5143 = vpop.f32.mrb[0].mxu0
        %v5144 = vadd.f32 %v4791, %v5143
        %v5145 = vpop.f32.mrb[0].mxu0
        %v5146 = vpop.f32.mrb[0].mxu0
        %v5147 = vadd.f32 %v4794, %v5146
        %v5148 = vpop.f32.mrb[0].mxu0
        %5149 = vmatprep.mubr.bf16.mxu0 %v2968
        %5150 = vmatmul.mubr.bf16.gmra.mrb[0].mxu0 %v2967
        %v5151 = vpop.f32.mrb[0].mxu0
        %v5152 = vadd.f32 %v4799, %v5151
        %v5153 = vpop.f32.mrb[0].mxu0
        %v5154 = vpop.f32.mrb[0].mxu0
        %v5155 = vadd.f32 %v4802, %v5154
        %v5156 = vpop.f32.mrb[0].mxu0
        %5157 = vmatprep.mubr.bf16.mxu0 %v2978
        %5158 = vmatmul.mubr.bf16.gmra.mrb[0].mxu0 %v2977
        %v5159 = vpop.f32.mrb[0].mxu0
        %v5160 = vadd.f32 %v4807, %v5159
        %v5161 = vpop.f32.mrb[0].mxu0
        %v5162 = vpop.f32.mrb[0].mxu0
        %v5163 = vadd.f32 %v4810, %v5162
        %v5164 = vpop.f32.mrb[0].mxu0
        %5165 = vmatprep.mubr.bf16.mxu0 %v2988
        %5166 = vmatmul.mubr.bf16.gmra.mrb[0].mxu0 %v2987
        %v5167 = vpop.f32.mrb[0].mxu0
        %v5168 = vadd.f32 %v4815, %v5167
        %v5169 = vpop.f32.mrb[0].mxu0
        %v5170 = vpop.f32.mrb[0].mxu0
        %v5171 = vadd.f32 %v4818, %v5170
        %v5172 = vpop.f32.mrb[0].mxu0
        %5173 = vmatprep.mubr.bf16.mxu0 %v2998
        %5174 = vmatmul.mubr.bf16.gmra.mrb[0].mxu0 %v2997
        %v5175 = vpop.f32.mrb[0].mxu0
        %v5176 = vadd.f32 %v4823, %v5175
        %v5177 = vpop.f32.mrb[0].mxu0
        %v5178 = vpop.f32.mrb[0].mxu0
        %v5179 = vadd.f32 %v4826, %v5178
        %v5180 = vpop.f32.mrb[0].mxu0
        %5181 = vmatprep.mubr.bf16.mxu0 %v3008
        %5182 = vmatmul.mubr.bf16.gmra.mrb[0].mxu0 %v3007
        %v5183 = vpop.f32.mrb[0].mxu0
        %v5184 = vadd.f32 %v4831, %v5183
        %v5185 = vpop.f32.mrb[0].mxu0
        %v5186 = vpop.f32.mrb[0].mxu0
        %v5187 = vadd.f32 %v4834, %v5186
        %v5188 = vpop.f32.mrb[0].mxu0
        %5189 = vmatprep.mubr.bf16.mxu0 %v3018
        %5190 = vmatmul.mubr.bf16.gmra.mrb[0].mxu0 %v3017
        %v5191 = vpop.f32.mrb[0].mxu0
        %v5192 = vadd.f32 %v4839, %v5191
        %v5193 = vpop.f32.mrb[0].mxu0
        %v5194 = vpop.f32.mrb[0].mxu0
        %v5195 = vadd.f32 %v4842, %v5194
        %v5196 = vpop.f32.mrb[0].mxu0
        %5197 = vmatprep.mubr.bf16.mxu0 %v3028
        %5198 = vmatmul.mubr.bf16.gmra.mrb[0].mxu0 %v3027
        %v5199 = vpop.f32.mrb[0].mxu0
        %v5200 = vadd.f32 %v4847, %v5199
        %v5201 = vpop.f32.mrb[0].mxu0
        %v5202 = vpop.f32.mrb[0].mxu0
        %v5203 = vadd.f32 %v4850, %v5202
        %v5204 = vpop.f32.mrb[0].mxu0
        %5205 = vmatprep.mubr.bf16.mxu0 %v3038
        %5206 = vmatmul.mubr.bf16.gmra.mrb[0].mxu0 %v3037
        %v5207 = vpop.f32.mrb[0].mxu0
        %v5208 = vadd.f32 %v4855, %v5207
        %v5209 = vpop.f32.mrb[0].mxu0
        %v5210 = vpop.f32.mrb[0].mxu0
        %v5211 = vadd.f32 %v4858, %v5210
        %v5212 = vpop.f32.mrb[0].mxu0
        %5213 = vmatprep.mubr.bf16.mxu0 %v3048
        %5214 = vmatmul.mubr.bf16.gmra.mrb[0].mxu0 %v3047
        %v5215 = vpop.f32.mrb[0].mxu0
        %v5216 = vadd.f32 %v4863, %v5215
        %v5217 = vpop.f32.mrb[0].mxu0
        %v5218 = vpop.f32.mrb[0].mxu0
        %v5219 = vadd.f32 %v4866, %v5218
        %v5220 = vpop.f32.mrb[0].mxu0
        %5221 = vmatprep.mubr.bf16.mxu0 %v3058
        %5222 = vmatmul.mubr.bf16.gmra.mrb[0].mxu0 %v3057
        %v5223 = vpop.f32.mrb[0].mxu0
        %v5224 = vadd.f32 %v4871, %v5223
        %v5225 = vpop.f32.mrb[0].mxu0
        %v5226 = vpop.f32.mrb[0].mxu0
        %v5227 = vadd.f32 %v4874, %v5226
        %v5228 = vpop.f32.mrb[0].mxu0
        %5229 = vmatprep.mubr.bf16.mxu0 %v3068
        %5230 = vmatmul.mubr.bf16.gmra.mrb[0].mxu0 %v3067
        %v5231 = vpop.f32.mrb[0].mxu0
        %v5232 = vadd.f32 %v4879, %v5231
        %v5233 = vpop.f32.mrb[0].mxu0
        %v5234 = vpop.f32.mrb[0].mxu0
        %v5235 = vadd.f32 %v4882, %v5234
        %v5236 = vpop.f32.mrb[0].mxu0
        %5237 = vmatprep.mubr.bf16.mxu0 %v3078
        %5238 = vmatmul.mubr.bf16.gmra.mrb[0].mxu0 %v3077
        %v5239 = vpop.f32.mrb[0].mxu0
        %v5240 = vadd.f32 %v4887, %v5239
        %v5241 = vpop.f32.mrb[0].mxu0
        %v5242 = vpop.f32.mrb[0].mxu0
        %v5243 = vadd.f32 %v4890, %v5242
        %v5244 = vpop.f32.mrb[0].mxu0
        %5245 = vmatprep.mubr.bf16.mxu0 %v3088
        %5246 = vmatmul.mubr.bf16.gmra.mrb[0].mxu0 %v3087
        %v5247 = vpop.f32.mrb[0].mxu0
        %v5248 = vadd.f32 %v4895, %v5247
        %v5249 = vpop.f32.mrb[0].mxu0
        %v5250 = vpop.f32.mrb[0].mxu0
        %v5251 = vadd.f32 %v4898, %v5250
        %v5252 = vpop.f32.mrb[0].mxu0
        %5253 = vdwg.mxu0
        %p5254 = scmp.eq.s32.totalorder %s25, 0
        // Predicated region
        $region41: #{tpu_custom_call.1} parent=31 // pred_check
          %p5255 = pneg %p5254
        $region42: #{tpu_custom_call.1} parent=31 // pred_check_branch
          %5257 = sbr.rel (%p5255) target = $region44
        $region43: #{tpu_custom_call.1} parent=31 // pred_region
          %vm5258 = vcmask 400384
          %5259 = vst.msk [vmem:[%s270] sm:$0xff] %vm5258, %v4936
          %5260 = vst.msk [vmem:[%s270 + $0x8] sm:$0xff] %vm5258, %v4939
          %5261 = vst.msk [vmem:[%s270 + $0x10] sm:$0xff] %vm5258, %v4944
          %5262 = vst.msk [vmem:[%s270 + $0x18] sm:$0xff] %vm5258, %v4947
          %5263 = vst.msk [vmem:[%s270 + $0x20] sm:$0xff] %vm5258, %v4952
          %5264 = vst.msk [vmem:[%s270 + $0x28] sm:$0xff] %vm5258, %v4955
          %5265 = vst.msk [vmem:[%s270 + $0x30] sm:$0xff] %vm5258, %v4960
          %5266 = vst.msk [vmem:[%s270 + $0x38] sm:$0xff] %vm5258, %v4963
          %5267 = vst.msk [vmem:[%s270 + $0x40] sm:$0xff] %vm5258, %v4968
          %5268 = vst.msk [vmem:[%s270 + $0x48] sm:$0xff] %vm5258, %v4971
          %5269 = vst.msk [vmem:[%s270 + $0x50] sm:$0xff] %vm5258, %v4976
          %5270 = vst.msk [vmem:[%s270 + $0x58] sm:$0xff] %vm5258, %v4979
          %5271 = vst.msk [vmem:[%s270 + $0x60] sm:$0xff] %vm5258, %v4984
          %5272 = vst.msk [vmem:[%s270 + $0x68] sm:$0xff] %vm5258, %v4987
          %5273 = vst.msk [vmem:[%s270 + $0x70] sm:$0xff] %vm5258, %v4992
          %5274 = vst.msk [vmem:[%s270 + $0x78] sm:$0xff] %vm5258, %v4995
          %5275 = vst.msk [vmem:[%s270 + $0x80] sm:$0xff] %vm5258, %v5000
          %5276 = vst.msk [vmem:[%s270 + $0x88] sm:$0xff] %vm5258, %v5003
          %5277 = vst.msk [vmem:[%s270 + $0x90] sm:$0xff] %vm5258, %v5008
          %5278 = vst.msk [vmem:[%s270 + $0x98] sm:$0xff] %vm5258, %v5011
          %5279 = vst.msk [vmem:[%s270 + $0xa0] sm:$0xff] %vm5258, %v5016
          %5280 = vst.msk [vmem:[%s270 + $0xa8] sm:$0xff] %vm5258, %v5019
          %5281 = vst.msk [vmem:[%s270 + $0xb0] sm:$0xff] %vm5258, %v5024
          %5282 = vst.msk [vmem:[%s270 + $0xb8] sm:$0xff] %vm5258, %v5027
          %5283 = vst.msk [vmem:[%s270 + $0xc0] sm:$0xff] %vm5258, %v5032
          %5284 = vst.msk [vmem:[%s270 + $0xc8] sm:$0xff] %vm5258, %v5035
          %5285 = vst.msk [vmem:[%s270 + $0xd0] sm:$0xff] %vm5258, %v5040
          %5286 = vst.msk [vmem:[%s270 + $0xd8] sm:$0xff] %vm5258, %v5043
          %5287 = vst.msk [vmem:[%s270 + $0xe0] sm:$0xff] %vm5258, %v5048
          %5288 = vst.msk [vmem:[%s270 + $0xe8] sm:$0xff] %vm5258, %v5051
          %5289 = vst.msk [vmem:[%s270 + $0xf0] sm:$0xff] %vm5258, %v5056
          %5290 = vst.msk [vmem:[%s270 + $0xf8] sm:$0xff] %vm5258, %v5059
          %5291 = vst.msk [vmem:[%s270 + $0x100] sm:$0xff] %vm5258, %v5064
          %5292 = vst.msk [vmem:[%s270 + $0x108] sm:$0xff] %vm5258, %v5067
          %5293 = vst.msk [vmem:[%s270 + $0x110] sm:$0xff] %vm5258, %v5072
          %5294 = vst.msk [vmem:[%s270 + $0x118] sm:$0xff] %vm5258, %v5075
          %5295 = vst.msk [vmem:[%s270 + $0x120] sm:$0xff] %vm5258, %v5080
          %5296 = vst.msk [vmem:[%s270 + $0x128] sm:$0xff] %vm5258, %v5083
          %5297 = vst.msk [vmem:[%s270 + $0x130] sm:$0xff] %vm5258, %v5088
          %5298 = vst.msk [vmem:[%s270 + $0x138] sm:$0xff] %vm5258, %v5091
          %5299 = vst.msk [vmem:[%s270 + $0x140] sm:$0xff] %vm5258, %v5096
          %5300 = vst.msk [vmem:[%s270 + $0x148] sm:$0xff] %vm5258, %v5099
          %5301 = vst.msk [vmem:[%s270 + $0x150] sm:$0xff] %vm5258, %v5104
          %5302 = vst.msk [vmem:[%s270 + $0x158] sm:$0xff] %vm5258, %v5107
          %5303 = vst.msk [vmem:[%s270 + $0x160] sm:$0xff] %vm5258, %v5112
          %5304 = vst.msk [vmem:[%s270 + $0x168] sm:$0xff] %vm5258, %v5115
          %5305 = vst.msk [vmem:[%s270 + $0x170] sm:$0xff] %vm5258, %v5120
          %5306 = vst.msk [vmem:[%s270 + $0x178] sm:$0xff] %vm5258, %v5123
          %5307 = vst.msk [vmem:[%s270 + $0x180] sm:$0xff] %vm5258, %v5128
          %5308 = vst.msk [vmem:[%s270 + $0x188] sm:$0xff] %vm5258, %v5131
          %5309 = vst.msk [vmem:[%s270 + $0x190] sm:$0xff] %vm5258, %v5136
          %5310 = vst.msk [vmem:[%s270 + $0x198] sm:$0xff] %vm5258, %v5139
          %5311 = vst.msk [vmem:[%s270 + $0x1a0] sm:$0xff] %vm5258, %v5144
          %5312 = vst.msk [vmem:[%s270 + $0x1a8] sm:$0xff] %vm5258, %v5147
          %5313 = vst.msk [vmem:[%s270 + $0x1b0] sm:$0xff] %vm5258, %v5152
          %5314 = vst.msk [vmem:[%s270 + $0x1b8] sm:$0xff] %vm5258, %v5155
          %5315 = vst.msk [vmem:[%s270 + $0x1c0] sm:$0xff] %vm5258, %v5160
          %5316 = vst.msk [vmem:[%s270 + $0x1c8] sm:$0xff] %vm5258, %v5163
          %5317 = vst.msk [vmem:[%s270 + $0x1d0] sm:$0xff] %vm5258, %v5168
          %5318 = vst.msk [vmem:[%s270 + $0x1d8] sm:$0xff] %vm5258, %v5171
          %5319 = vst.msk [vmem:[%s270 + $0x1e0] sm:$0xff] %vm5258, %v5176
          %5320 = vst.msk [vmem:[%s270 + $0x1e8] sm:$0xff] %vm5258, %v5179
          %5321 = vst.msk [vmem:[%s270 + $0x1f0] sm:$0xff] %vm5258, %v5184
          %5322 = vst.msk [vmem:[%s270 + $0x1f8] sm:$0xff] %vm5258, %v5187
          %5323 = vst.msk [vmem:[%s270 + $0x200] sm:$0xff] %vm5258, %v5192
          %5324 = vst.msk [vmem:[%s270 + $0x208] sm:$0xff] %vm5258, %v5195
          %5325 = vst.msk [vmem:[%s270 + $0x210] sm:$0xff] %vm5258, %v5200
          %5326 = vst.msk [vmem:[%s270 + $0x218] sm:$0xff] %vm5258, %v5203
          %5327 = vst.msk [vmem:[%s270 + $0x220] sm:$0xff] %vm5258, %v5208
          %5328 = vst.msk [vmem:[%s270 + $0x228] sm:$0xff] %vm5258, %v5211
          %5329 = vst.msk [vmem:[%s270 + $0x230] sm:$0xff] %vm5258, %v5216
          %5330 = vst.msk [vmem:[%s270 + $0x238] sm:$0xff] %vm5258, %v5219
          %5331 = vst.msk [vmem:[%s270 + $0x240] sm:$0xff] %vm5258, %v5224
          %5332 = vst.msk [vmem:[%s270 + $0x248] sm:$0xff] %vm5258, %v5227
          %5333 = vst.msk [vmem:[%s270 + $0x250] sm:$0xff] %vm5258, %v5232
          %5334 = vst.msk [vmem:[%s270 + $0x258] sm:$0xff] %vm5258, %v5235
          %5335 = vst.msk [vmem:[%s270 + $0x260] sm:$0xff] %vm5258, %v5240
          %5336 = vst.msk [vmem:[%s270 + $0x268] sm:$0xff] %vm5258, %v5243
          %5337 = vst.msk [vmem:[%s270 + $0x270] sm:$0xff] %vm5258, %v5248
          %5338 = vst.msk [vmem:[%s270 + $0x278] sm:$0xff] %vm5258, %v5251
        $region44: #{tpu_custom_call.1} parent=31 // pred_fallthru
          _
        %p5339 = scmp.ne.s32.totalorder %s25, 0
        // Predicated region
        $region45: #{tpu_custom_call.1} parent=31 // pred_check
          %p5340 = pneg %p5339
        $region46: #{tpu_custom_call.1} parent=31 // pred_check_branch
          %5342 = sbr.rel (%p5340) target = $region48
        $region47: #{tpu_custom_call.1} parent=31 // pred_region
          %v5343 = vld [vmem:[%s270] sm:$0xff]
          %v5344 = vld [vmem:[%s270 + $0x8] sm:$0xff]
          %v5345 = vld [vmem:[%s270 + $0x10] sm:$0xff]
          %v5346 = vld [vmem:[%s270 + $0x18] sm:$0xff]
          %v5347 = vld [vmem:[%s270 + $0x20] sm:$0xff]
          %v5348 = vld [vmem:[%s270 + $0x28] sm:$0xff]
          %v5349 = vld [vmem:[%s270 + $0x30] sm:$0xff]
          %v5350 = vld [vmem:[%s270 + $0x38] sm:$0xff]
          %v5351 = vld [vmem:[%s270 + $0x40] sm:$0xff]
          %v5352 = vld [vmem:[%s270 + $0x48] sm:$0xff]
          %v5353 = vld [vmem:[%s270 + $0x50] sm:$0xff]
          %v5354 = vld [vmem:[%s270 + $0x58] sm:$0xff]
          %v5355 = vld [vmem:[%s270 + $0x60] sm:$0xff]
          %v5356 = vld [vmem:[%s270 + $0x68] sm:$0xff]
          %v5357 = vld [vmem:[%s270 + $0x70] sm:$0xff]
          %v5358 = vld [vmem:[%s270 + $0x78] sm:$0xff]
          %v5359 = vld [vmem:[%s270 + $0x80] sm:$0xff]
          %v5360 = vld [vmem:[%s270 + $0x88] sm:$0xff]
          %v5361 = vld [vmem:[%s270 + $0x90] sm:$0xff]
          %v5362 = vld [vmem:[%s270 + $0x98] sm:$0xff]
          %v5363 = vld [vmem:[%s270 + $0xa0] sm:$0xff]
          %v5364 = vld [vmem:[%s270 + $0xa8] sm:$0xff]
          %v5365 = vld [vmem:[%s270 + $0xb0] sm:$0xff]
          %v5366 = vld [vmem:[%s270 + $0xb8] sm:$0xff]
          %v5367 = vld [vmem:[%s270 + $0xc0] sm:$0xff]
          %v5368 = vld [vmem:[%s270 + $0xc8] sm:$0xff]
          %v5369 = vld [vmem:[%s270 + $0xd0] sm:$0xff]
          %v5370 = vld [vmem:[%s270 + $0xd8] sm:$0xff]
          %v5371 = vld [vmem:[%s270 + $0xe0] sm:$0xff]
          %v5372 = vld [vmem:[%s270 + $0xe8] sm:$0xff]
          %v5373 = vld [vmem:[%s270 + $0xf0] sm:$0xff]
          %v5374 = vld [vmem:[%s270 + $0xf8] sm:$0xff]
          %v5375 = vld [vmem:[%s270 + $0x100] sm:$0xff]
          %v5376 = vld [vmem:[%s270 + $0x108] sm:$0xff]
          %v5377 = vld [vmem:[%s270 + $0x110] sm:$0xff]
          %v5378 = vld [vmem:[%s270 + $0x118] sm:$0xff]
          %v5379 = vld [vmem:[%s270 + $0x120] sm:$0xff]
          %v5380 = vld [vmem:[%s270 + $0x128] sm:$0xff]
          %v5381 = vld [vmem:[%s270 + $0x130] sm:$0xff]
          %v5382 = vld [vmem:[%s270 + $0x138] sm:$0xff]
          %v5383 = vld [vmem:[%s270 + $0x140] sm:$0xff]
          %v5384 = vld [vmem:[%s270 + $0x148] sm:$0xff]
          %v5385 = vld [vmem:[%s270 + $0x150] sm:$0xff]
          %v5386 = vld [vmem:[%s270 + $0x158] sm:$0xff]
          %v5387 = vld [vmem:[%s270 + $0x160] sm:$0xff]
          %v5388 = vld [vmem:[%s270 + $0x168] sm:$0xff]
          %v5389 = vld [vmem:[%s270 + $0x170] sm:$0xff]
          %v5390 = vld [vmem:[%s270 + $0x178] sm:$0xff]
          %v5391 = vld [vmem:[%s270 + $0x180] sm:$0xff]
          %v5392 = vld [vmem:[%s270 + $0x188] sm:$0xff]
          %v5393 = vld [vmem:[%s270 + $0x190] sm:$0xff]
          %v5394 = vld [vmem:[%s270 + $0x198] sm:$0xff]
          %v5395 = vld [vmem:[%s270 + $0x1a0] sm:$0xff]
          %v5396 = vld [vmem:[%s270 + $0x1a8] sm:$0xff]
          %v5397 = vld [vmem:[%s270 + $0x1b0] sm:$0xff]
          %v5398 = vld [vmem:[%s270 + $0x1b8] sm:$0xff]
          %v5399 = vld [vmem:[%s270 + $0x1c0] sm:$0xff]
          %v5400 = vld [vmem:[%s270 + $0x1c8] sm:$0xff]
          %v5401 = vld [vmem:[%s270 + $0x1d0] sm:$0xff]
          %v5402 = vld [vmem:[%s270 + $0x1d8] sm:$0xff]
          %v5403 = vld [vmem:[%s270 + $0x1e0] sm:$0xff]
          %v5404 = vld [vmem:[%s270 + $0x1e8] sm:$0xff]
          %v5405 = vld [vmem:[%s270 + $0x1f0] sm:$0xff]
          %v5406 = vld [vmem:[%s270 + $0x1f8] sm:$0xff]
          %v5407 = vld [vmem:[%s270 + $0x200] sm:$0xff]
          %v5408 = vld [vmem:[%s270 + $0x208] sm:$0xff]
          %v5409 = vld [vmem:[%s270 + $0x210] sm:$0xff]
          %v5410 = vld [vmem:[%s270 + $0x218] sm:$0xff]
          %v5411 = vld [vmem:[%s270 + $0x220] sm:$0xff]
          %v5412 = vld [vmem:[%s270 + $0x228] sm:$0xff]
          %v5413 = vld [vmem:[%s270 + $0x230] sm:$0xff]
          %v5414 = vld [vmem:[%s270 + $0x238] sm:$0xff]
          %v5415 = vld [vmem:[%s270 + $0x240] sm:$0xff]
          %v5416 = vld [vmem:[%s270 + $0x248] sm:$0xff]
          %v5417 = vld [vmem:[%s270 + $0x250] sm:$0xff]
          %v5418 = vld [vmem:[%s270 + $0x258] sm:$0xff]
          %v5419 = vld [vmem:[%s270 + $0x260] sm:$0xff]
          %v5420 = vld [vmem:[%s270 + $0x268] sm:$0xff]
          %v5421 = vld [vmem:[%s270 + $0x270] sm:$0xff]
          %v5422 = vld [vmem:[%s270 + $0x278] sm:$0xff]
          %v5423 = vadd.f32 %v5343, %v4936
          %v5424 = vadd.f32 %v5344, %v4939
          %v5425 = vadd.f32 %v5345, %v4944
          %v5426 = vadd.f32 %v5346, %v4947
          %v5427 = vadd.f32 %v5347, %v4952
          %v5428 = vadd.f32 %v5348, %v4955
          %v5429 = vadd.f32 %v5349, %v4960
          %v5430 = vadd.f32 %v5350, %v4963
          %v5431 = vadd.f32 %v5351, %v4968
          %v5432 = vadd.f32 %v5352, %v4971
          %v5433 = vadd.f32 %v5353, %v4976
          %v5434 = vadd.f32 %v5354, %v4979
          %v5435 = vadd.f32 %v5355, %v4984
          %v5436 = vadd.f32 %v5356, %v4987
          %v5437 = vadd.f32 %v5357, %v4992
          %v5438 = vadd.f32 %v5358, %v4995
          %v5439 = vadd.f32 %v5359, %v5000
          %v5440 = vadd.f32 %v5360, %v5003
          %v5441 = vadd.f32 %v5361, %v5008
          %v5442 = vadd.f32 %v5362, %v5011
          %v5443 = vadd.f32 %v5363, %v5016
          %v5444 = vadd.f32 %v5364, %v5019
          %v5445 = vadd.f32 %v5365, %v5024
          %v5446 = vadd.f32 %v5366, %v5027
          %v5447 = vadd.f32 %v5367, %v5032
          %v5448 = vadd.f32 %v5368, %v5035
          %v5449 = vadd.f32 %v5369, %v5040
          %v5450 = vadd.f32 %v5370, %v5043
          %v5451 = vadd.f32 %v5371, %v5048
          %v5452 = vadd.f32 %v5372, %v5051
          %v5453 = vadd.f32 %v5373, %v5056
          %v5454 = vadd.f32 %v5374, %v5059
          %v5455 = vadd.f32 %v5375, %v5064
          %v5456 = vadd.f32 %v5376, %v5067
          %v5457 = vadd.f32 %v5377, %v5072
          %v5458 = vadd.f32 %v5378, %v5075
          %v5459 = vadd.f32 %v5379, %v5080
          %v5460 = vadd.f32 %v5380, %v5083
          %v5461 = vadd.f32 %v5381, %v5088
          %v5462 = vadd.f32 %v5382, %v5091
          %v5463 = vadd.f32 %v5383, %v5096
          %v5464 = vadd.f32 %v5384, %v5099
          %v5465 = vadd.f32 %v5385, %v5104
          %v5466 = vadd.f32 %v5386, %v5107
          %v5467 = vadd.f32 %v5387, %v5112
          %v5468 = vadd.f32 %v5388, %v5115
          %v5469 = vadd.f32 %v5389, %v5120
          %v5470 = vadd.f32 %v5390, %v5123
          %v5471 = vadd.f32 %v5391, %v5128
          %v5472 = vadd.f32 %v5392, %v5131
          %v5473 = vadd.f32 %v5393, %v5136
          %v5474 = vadd.f32 %v5394, %v5139
          %v5475 = vadd.f32 %v5395, %v5144
          %v5476 = vadd.f32 %v5396, %v5147
          %v5477 = vadd.f32 %v5397, %v5152
          %v5478 = vadd.f32 %v5398, %v5155
          %v5479 = vadd.f32 %v5399, %v5160
          %v5480 = vadd.f32 %v5400, %v5163
          %v5481 = vadd.f32 %v5401, %v5168
          %v5482 = vadd.f32 %v5402, %v5171
          %v5483 = vadd.f32 %v5403, %v5176
          %v5484 = vadd.f32 %v5404, %v5179
          %v5485 = vadd.f32 %v5405, %v5184
          %v5486 = vadd.f32 %v5406, %v5187
          %v5487 = vadd.f32 %v5407, %v5192
          %v5488 = vadd.f32 %v5408, %v5195
          %v5489 = vadd.f32 %v5409, %v5200
          %v5490 = vadd.f32 %v5410, %v5203
          %v5491 = vadd.f32 %v5411, %v5208
          %v5492 = vadd.f32 %v5412, %v5211
          %v5493 = vadd.f32 %v5413, %v5216
          %v5494 = vadd.f32 %v5414, %v5219
          %v5495 = vadd.f32 %v5415, %v5224
          %v5496 = vadd.f32 %v5416, %v5227
          %v5497 = vadd.f32 %v5417, %v5232
          %v5498 = vadd.f32 %v5418, %v5235
          %v5499 = vadd.f32 %v5419, %v5240
          %v5500 = vadd.f32 %v5420, %v5243
          %v5501 = vadd.f32 %v5421, %v5248
          %v5502 = vadd.f32 %v5422, %v5251
          %vm5503 = vcmask 400384
          %5504 = vst.msk [vmem:[%s270] sm:$0xff] %vm5503, %v5423
          %5505 = vst.msk [vmem:[%s270 + $0x8] sm:$0xff] %vm5503, %v5424
          %5506 = vst.msk [vmem:[%s270 + $0x10] sm:$0xff] %vm5503, %v5425
          %5507 = vst.msk [vmem:[%s270 + $0x18] sm:$0xff] %vm5503, %v5426
          %5508 = vst.msk [vmem:[%s270 + $0x20] sm:$0xff] %vm5503, %v5427
          %5509 = vst.msk [vmem:[%s270 + $0x28] sm:$0xff] %vm5503, %v5428
          %5510 = vst.msk [vmem:[%s270 + $0x30] sm:$0xff] %vm5503, %v5429
          %5511 = vst.msk [vmem:[%s270 + $0x38] sm:$0xff] %vm5503, %v5430
          %5512 = vst.msk [vmem:[%s270 + $0x40] sm:$0xff] %vm5503, %v5431
          %5513 = vst.msk [vmem:[%s270 + $0x48] sm:$0xff] %vm5503, %v5432
          %5514 = vst.msk [vmem:[%s270 + $0x50] sm:$0xff] %vm5503, %v5433
          %5515 = vst.msk [vmem:[%s270 + $0x58] sm:$0xff] %vm5503, %v5434
          %5516 = vst.msk [vmem:[%s270 + $0x60] sm:$0xff] %vm5503, %v5435
          %5517 = vst.msk [vmem:[%s270 + $0x68] sm:$0xff] %vm5503, %v5436
          %5518 = vst.msk [vmem:[%s270 + $0x70] sm:$0xff] %vm5503, %v5437
          %5519 = vst.msk [vmem:[%s270 + $0x78] sm:$0xff] %vm5503, %v5438
          %5520 = vst.msk [vmem:[%s270 + $0x80] sm:$0xff] %vm5503, %v5439
          %5521 = vst.msk [vmem:[%s270 + $0x88] sm:$0xff] %vm5503, %v5440
          %5522 = vst.msk [vmem:[%s270 + $0x90] sm:$0xff] %vm5503, %v5441
          %5523 = vst.msk [vmem:[%s270 + $0x98] sm:$0xff] %vm5503, %v5442
          %5524 = vst.msk [vmem:[%s270 + $0xa0] sm:$0xff] %vm5503, %v5443
          %5525 = vst.msk [vmem:[%s270 + $0xa8] sm:$0xff] %vm5503, %v5444
          %5526 = vst.msk [vmem:[%s270 + $0xb0] sm:$0xff] %vm5503, %v5445
          %5527 = vst.msk [vmem:[%s270 + $0xb8] sm:$0xff] %vm5503, %v5446
          %5528 = vst.msk [vmem:[%s270 + $0xc0] sm:$0xff] %vm5503, %v5447
          %5529 = vst.msk [vmem:[%s270 + $0xc8] sm:$0xff] %vm5503, %v5448
          %5530 = vst.msk [vmem:[%s270 + $0xd0] sm:$0xff] %vm5503, %v5449
          %5531 = vst.msk [vmem:[%s270 + $0xd8] sm:$0xff] %vm5503, %v5450
          %5532 = vst.msk [vmem:[%s270 + $0xe0] sm:$0xff] %vm5503, %v5451
          %5533 = vst.msk [vmem:[%s270 + $0xe8] sm:$0xff] %vm5503, %v5452
          %5534 = vst.msk [vmem:[%s270 + $0xf0] sm:$0xff] %vm5503, %v5453
          %5535 = vst.msk [vmem:[%s270 + $0xf8] sm:$0xff] %vm5503, %v5454
          %5536 = vst.msk [vmem:[%s270 + $0x100] sm:$0xff] %vm5503, %v5455
          %5537 = vst.msk [vmem:[%s270 + $0x108] sm:$0xff] %vm5503, %v5456
          %5538 = vst.msk [vmem:[%s270 + $0x110] sm:$0xff] %vm5503, %v5457
          %5539 = vst.msk [vmem:[%s270 + $0x118] sm:$0xff] %vm5503, %v5458
          %5540 = vst.msk [vmem:[%s270 + $0x120] sm:$0xff] %vm5503, %v5459
          %5541 = vst.msk [vmem:[%s270 + $0x128] sm:$0xff] %vm5503, %v5460
          %5542 = vst.msk [vmem:[%s270 + $0x130] sm:$0xff] %vm5503, %v5461
          %5543 = vst.msk [vmem:[%s270 + $0x138] sm:$0xff] %vm5503, %v5462
          %5544 = vst.msk [vmem:[%s270 + $0x140] sm:$0xff] %vm5503, %v5463
          %5545 = vst.msk [vmem:[%s270 + $0x148] sm:$0xff] %vm5503, %v5464
          %5546 = vst.msk [vmem:[%s270 + $0x150] sm:$0xff] %vm5503, %v5465
          %5547 = vst.msk [vmem:[%s270 + $0x158] sm:$0xff] %vm5503, %v5466
          %5548 = vst.msk [vmem:[%s270 + $0x160] sm:$0xff] %vm5503, %v5467
          %5549 = vst.msk [vmem:[%s270 + $0x168] sm:$0xff] %vm5503, %v5468
          %5550 = vst.msk [vmem:[%s270 + $0x170] sm:$0xff] %vm5503, %v5469
          %5551 = vst.msk [vmem:[%s270 + $0x178] sm:$0xff] %vm5503, %v5470
          %5552 = vst.msk [vmem:[%s270 + $0x180] sm:$0xff] %vm5503, %v5471
          %5553 = vst.msk [vmem:[%s270 + $0x188] sm:$0xff] %vm5503, %v5472
          %5554 = vst.msk [vmem:[%s270 + $0x190] sm:$0xff] %vm5503, %v5473
          %5555 = vst.msk [vmem:[%s270 + $0x198] sm:$0xff] %vm5503, %v5474
          %5556 = vst.msk [vmem:[%s270 + $0x1a0] sm:$0xff] %vm5503, %v5475
          %5557 = vst.msk [vmem:[%s270 + $0x1a8] sm:$0xff] %vm5503, %v5476
          %5558 = vst.msk [vmem:[%s270 + $0x1b0] sm:$0xff] %vm5503, %v5477
          %5559 = vst.msk [vmem:[%s270 + $0x1b8] sm:$0xff] %vm5503, %v5478
          %5560 = vst.msk [vmem:[%s270 + $0x1c0] sm:$0xff] %vm5503, %v5479
          %5561 = vst.msk [vmem:[%s270 + $0x1c8] sm:$0xff] %vm5503, %v5480
          %5562 = vst.msk [vmem:[%s270 + $0x1d0] sm:$0xff] %vm5503, %v5481
          %5563 = vst.msk [vmem:[%s270 + $0x1d8] sm:$0xff] %vm5503, %v5482
          %5564 = vst.msk [vmem:[%s270 + $0x1e0] sm:$0xff] %vm5503, %v5483
          %5565 = vst.msk [vmem:[%s270 + $0x1e8] sm:$0xff] %vm5503, %v5484
          %5566 = vst.msk [vmem:[%s270 + $0x1f0] sm:$0xff] %vm5503, %v5485
          %5567 = vst.msk [vmem:[%s270 + $0x1f8] sm:$0xff] %vm5503, %v5486
          %5568 = vst.msk [vmem:[%s270 + $0x200] sm:$0xff] %vm5503, %v5487
          %5569 = vst.msk [vmem:[%s270 + $0x208] sm:$0xff] %vm5503, %v5488
          %5570 = vst.msk [vmem:[%s270 + $0x210] sm:$0xff] %vm5503, %v5489
          %5571 = vst.msk [vmem:[%s270 + $0x218] sm:$0xff] %vm5503, %v5490
          %5572 = vst.msk [vmem:[%s270 + $0x220] sm:$0xff] %vm5503, %v5491
          %5573 = vst.msk [vmem:[%s270 + $0x228] sm:$0xff] %vm5503, %v5492
          %5574 = vst.msk [vmem:[%s270 + $0x230] sm:$0xff] %vm5503, %v5493
          %5575 = vst.msk [vmem:[%s270 + $0x238] sm:$0xff] %vm5503, %v5494
          %5576 = vst.msk [vmem:[%s270 + $0x240] sm:$0xff] %vm5503, %v5495
          %5577 = vst.msk [vmem:[%s270 + $0x248] sm:$0xff] %vm5503, %v5496
          %5578 = vst.msk [vmem:[%s270 + $0x250] sm:$0xff] %vm5503, %v5497
          %5579 = vst.msk [vmem:[%s270 + $0x258] sm:$0xff] %vm5503, %v5498
          %5580 = vst.msk [vmem:[%s270 + $0x260] sm:$0xff] %vm5503, %v5499
          %5581 = vst.msk [vmem:[%s270 + $0x268] sm:$0xff] %vm5503, %v5500
          %5582 = vst.msk [vmem:[%s270 + $0x270] sm:$0xff] %vm5503, %v5501
          %5583 = vst.msk [vmem:[%s270 + $0x278] sm:$0xff] %vm5503, %v5502
        $region48: #{tpu_custom_call.1} parent=31 // pred_fallthru
          _
        %s5584 = smul.u32 80, %s24
        %p5585 = scmp.lt.s32.totalorder %s5584, 79
        %s5586 = scalar_select %p5585, %s5584, 79
        %s5587 = smul.addr %s5586, 8
        %s5588 = scalar_lea.vmem %s3, %s5587
        // Predicated region
        $region49: #{tpu_custom_call.1} parent=31 // pred_check
          %p5589 = pneg %p130
        $region50: #{tpu_custom_call.1} parent=31 // pred_check_branch
          %5591 = sbr.rel (%p5589) target = $region52
        $region51: #{tpu_custom_call.1} parent=31 // pred_region
          %s5592 = smul.u32 80, %s24
        $region52: #{tpu_custom_call.1} parent=31 // pred_fallthru
          _
        // Predicated region
        $region53: #{tpu_custom_call.1} parent=31 // pred_check
          %p5593 = pneg %p130
        $region54: #{tpu_custom_call.1} parent=31 // pred_check_branch
          %5595 = sbr.rel (%p5593) target = $region56
        $region55: #{tpu_custom_call.1} parent=31 // pred_region
          %s5596 = smul.u32 80, %s24
          %p5597 = scmp.lt.s32.totalorder %s5596, 79
          %s5598 = scalar_select %p5597, %s5596, 79
          %s5599 = smul.addr %s5598, 8
          %s5600 = scalar_lea.vmem %s3, %s5599
        $region56: #{tpu_custom_call.1} parent=31 // pred_fallthru
          _
      $region32: #{tpu_custom_call.1} parent=5 // pred_fallthru
        _
      %p5601 = scmp.le.s32.totalorder 2, %s15
      // Predicated region
      $region57: #{tpu_custom_call.1} parent=5 // pred_check
        %p5602 = pneg %p5601
      $region58: #{tpu_custom_call.1} parent=5 // pred_check_branch
        %5604 = sbr.rel (%p5602) target = $region60
      $region59: #{tpu_custom_call.1} parent=5 // pred_region
        %s5605 = ssub.s32 %s15, 2
      $region60: #{tpu_custom_call.1} parent=5 // pred_fallthru
        _
    $region6: #{tpu_custom_call.1} parent=1 // loop_footer
      %s19 = sadd.s32 1, %s15
    $region7: #{tpu_custom_call.1} parent=1 // loop_footer_branch
      %14 = sbr.rel target = $region3
    $region8: #{tpu_custom_call.1} parent=1 // loop_exit
      _
    %5606 = vsyncpa [#allocation3], 1
    %s5607 = scalar_lea.sflag [#allocation3], 1
    %5608 = vsyncpa %s5607, 1
    %5609 = vsyncpa [#allocation5], 1
    %s5610 = scalar_lea.sflag [#allocation5], 1
    %5611 = vsyncpa %s5610, 1

</llo_original>
